<compile_context>
chip_gen: v6e
topology: v6e:2x2x1
jax: 0.10.0
libtpu: 0.0.40
codegen_flags: <defaults>
</compile_context>

<pallas_src>
import functools

import jax
import jax.numpy as jnp
from jax.experimental import pallas as pl
from jax.experimental.pallas import tpu as pltpu

# DenseCRFParams defaults (crfasrnn):
ALPHA = 160.0  # bilateral spatial std
BETA = 3.0     # bilateral color std
GAMMA = 3.0    # spatial std
SPATIAL_KER_WEIGHT = 3.0
BILATERAL_KER_WEIGHT = 5.0
EPSILON = 1e-8

_PAD_FEAT = 1e3      # feature value for padded voxels -> K(pad, real) underflows to 0
_PAD_LOGIT = -1e30   # logit value for padded labels   -> softmax weight exactly 0


def _default_vmem_limit():
    """Generation-aware VMEM limit: 128MiB parts get cap-12MiB, v7x gets cap-8MiB."""
    try:
        info = pltpu.get_tpu_info()
        cap = int(getattr(info, "vmem_capacity_bytes", 64 << 20))
    except Exception:
        cap = 64 << 20
    if cap >= (96 << 20):                      # v5e / v6e class (128 MiB per core)
        return cap - (12 << 20)
    return max(32 << 20, cap - (8 << 20))      # v7x class (64 MiB per core)


_VMEM_LIMIT_BYTES = _default_vmem_limit()


def _gaussian_exp_dtype():
    """bf16 exp only where the VPU/EUP are bf16-capable (v6e/v7x); f32 on v5e & unknown."""
    try:
        kind = jax.devices()[0].device_kind.lower()
    except Exception:
        return jnp.float32
    if ("v6" in kind) or ("v7" in kind) or ("tpu7" in kind):
        return jnp.bfloat16
    return jnp.float32


def _round_up(x, m):
    return (x + m - 1) // m * m


def _pick_col_tile(n_pad):
    """Largest lane-column tile (multiple of 128) dividing n_pad, capped at 1024."""
    for tj in (1024, 512, 256, 128):
        if n_pad % tj == 0:
            return tj
    return 128


def _make_crf_kernel(num_iterations, n_pad, tile_j, exp_dtype):
    npad = n_pad
    nt = n_pad // tile_j

    def kernel(as_l_ref, as_r_ref, ab_l_ref, ab_r_ref,
               logits_ref, unary_ref, ws_ref, wb_ref, out_ref, k_ref):
        # ----- Phase 1: build the stacked, normalized Gaussian kernel in k_ref -----
        # k_ref (bf16, (2*Np, Np)):
        #   rows [0, Np)    : Ks_n[j, i] = exp(-.5||fs_j - fs_i||^2) * norm_s[i]
        #   rows [Np, 2*Np) : Kb_n[j, i] = exp(-.5||fb_j - fb_i||^2) * norm_b[i]
        # Built one lane-column tile at a time: only one (Np, TJ) f32 temp live.
        def build_half(lhs_ref, rhs_ref, row_off, col):
            rhs_tile = rhs_ref[pl.ds(col, tile_j), :]                 # (TJ, F)
            neg_half_d2 = jax.lax.dot_general(                        # (Np, TJ) f32
                lhs_ref[...], rhs_tile, (((1,), (1,)), ((), ())),
                preferred_element_type=jnp.float32)
            k_tile = jnp.exp(neg_half_d2.astype(exp_dtype))
            # normalization = 1 / filter(all-ones); exact reciprocal (one-time),
            # column sums accumulated in f32.
            colsum = jnp.sum(k_tile.astype(jnp.float32), axis=0, keepdims=True)
            norm = 1.0 / (colsum + EPSILON)                           # (1, TJ) f32
            k_ref[pl.ds(row_off, npad), pl.ds(col, tile_j)] = (
                k_tile * norm.astype(exp_dtype)).astype(jnp.bfloat16)

        @pl.loop(0, nt)
        def _(t):
            col = pl.multiple_of(t * tile_j, 128)
            build_half(as_l_ref, as_r_ref, 0, col)      # spatial half
            build_half(ab_l_ref, ab_r_ref, npad, col)   # bilateral half

        # ----- Phase 2: mean-field iterations -----
        ws_eff = ws_ref[...]     # (Lp, Lp) = compatibility @ spatial weights (hoisted)
        wb_eff = wb_ref[...]     # (Lp, Lp) = compatibility @ bilateral weights (hoisted)
        unary = unary_ref[...]   # (Lp, Np)
        cur = logits_ref[...]    # (Lp, Np)

        def softmax_labels(x, approx):   # softmax over the label (sublane) axis
            m = jnp.max(x, axis=0, keepdims=True)
            e = jnp.exp(x - m)
            s = jnp.sum(e, axis=0, keepdims=True)
            if approx:
                return e * pl.reciprocal(s, approx=True)
            return e / s

        q = softmax_labels(cur, approx=True)
        for it in range(num_iterations):
            # Associativity fold:
            #   msg = ws'@(q@Ks_n) + wb'@(q@Kb_n) = [ws'@q | wb'@q] @ [Ks_n ; Kb_n]
            qs = jnp.dot(ws_eff, q, preferred_element_type=jnp.float32)   # (Lp, Np)
            qb = jnp.dot(wb_eff, q, preferred_element_type=jnp.float32)   # (Lp, Np)
            lhs = jnp.concatenate(
                [qs.astype(jnp.bfloat16), qb.astype(jnp.bfloat16)], axis=1)  # (Lp, 2Np)
            msg = jnp.dot(lhs, k_ref[...],
                          preferred_element_type=jnp.float32)             # (Lp, Np)
            cur = unary + msg
            # exact reciprocal only on the final softmax (output fidelity)
            q = softmax_labels(cur, approx=(it < num_iterations - 1))

        out_ref[...] = q

    return kernel


@functools.partial(jax.jit, static_argnames=("num_iterations",))
def crfrnn_forward(image, logits, unary, spatial_ker_weights,
                   bilateral_ker_weights, compatibility_matrix,
                   num_iterations=5):
    """image: (1, C, D, H, W); logits, unary: (1, L, D, H, W).  Returns (1, L, D, H, W)."""
    img = image[0]          # (C, D, H, W)
    lg = logits[0]          # (L, D, H, W)
    un = unary[0]           # (L, D, H, W)
    c, d, h, w = img.shape
    num_labels = lg.shape[0]
    n = d * h * w
    n_pad = _round_up(max(n, 128), 128)          # lane-dense voxel axis
    l_pad = _round_up(max(num_labels, 8), 8)     # full-sublane label axis
    tile_j = _pick_col_tile(n_pad)
    exp_dtype = _gaussian_exp_dtype()

    # ---- filter features (plain JAX glue) ----
    zz, yy, xx = jnp.meshgrid(jnp.arange(d), jnp.arange(h), jnp.arange(w),
                              indexing="ij")
    coords = jnp.stack([zz, yy, xx], axis=0).reshape(3, n).astype(jnp.float32)
    rgb = img.reshape(c, n).astype(jnp.float32)

    feat_s = (coords / GAMMA).T                                       # (n, 3)
    feat_b = jnp.concatenate([coords / ALPHA, rgb / BETA], axis=0).T  # (n, 3+C)
    fdim = max(8, _round_up(feat_b.shape[1] + 2, 8))  # augmented width per filter

    def pad_vox_feat(f):
        # Padded voxels get a far-away feature so K(pad, real) underflows to 0.
        return jnp.pad(f, ((0, n_pad - n), (0, 0)), constant_values=_PAD_FEAT)

    def augment(f):
        # lhs_j . rhs_i == f_j.f_i - 0.5|f_j|^2 - 0.5|f_i|^2 == -0.5 ||f_j-f_i||^2
        sq = -0.5 * jnp.sum(f * f, axis=-1, keepdims=True)
        ones = jnp.ones_like(sq)
        lhs = jnp.concatenate([f, sq, ones], axis=-1)
        rhs = jnp.concatenate([f, ones, sq], axis=-1)
        pad = fdim - lhs.shape[-1]
        return (jnp.pad(lhs, ((0, 0), (0, pad))),
                jnp.pad(rhs, ((0, 0), (0, pad))))

    as_l, as_r = augment(pad_vox_feat(feat_s))   # (Np, F) each, spatial filter
    ab_l, ab_r = augment(pad_vox_feat(feat_b))   # (Np, F) each, bilateral filter

    # ---- logits / unary, padded to (Lp, Np) ----
    def pad_lx(x):
        x = x.reshape(num_labels, n).astype(jnp.float32)
        x = jnp.pad(x, ((0, l_pad - num_labels), (0, 0)),
                    constant_values=_PAD_LOGIT)       # padded labels never win
        return jnp.pad(x, ((0, 0), (0, n_pad - n)))   # padded voxels: zeros
    logits2d = pad_lx(lg)
    unary2d = pad_lx(un)

    # ---- hoist the compatibility transform out of the kernel loop ----
    def pad_w(m):
        out = jnp.eye(l_pad, dtype=jnp.float32)       # identity-extend
        return out.at[:num_labels, :num_labels].set(m.astype(jnp.float32))
    comp_p = pad_w(compatibility_matrix)
    ws_eff = jnp.dot(comp_p, pad_w(spatial_ker_weights))     # (Lp, Lp)
    wb_eff = jnp.dot(comp_p, pad_w(bilateral_ker_weights))   # (Lp, Lp)

    vmem_spec = pl.BlockSpec(memory_space=pltpu.MemorySpace.VMEM)
    q_pad = pl.pallas_call(
        _make_crf_kernel(num_iterations, n_pad, tile_j, exp_dtype),
        out_shape=jax.ShapeDtypeStruct((l_pad, n_pad), jnp.float32),
        in_specs=[vmem_spec] * 8,
        out_specs=vmem_spec,
        scratch_shapes=[pltpu.VMEM((2 * n_pad, n_pad), jnp.bfloat16)],
        compiler_params=pltpu.CompilerParams(
            vmem_limit_bytes=_VMEM_LIMIT_BYTES),
    )(as_l, as_r, ab_l, ab_r, logits2d, unary2d, ws_eff, wb_eff)

    return q_pad[:num_labels, :n].reshape(1, num_labels, d, h, w)


if __name__ == "__main__":
    num_labels = 4
    num_iterations = 5
    D, H, W = 4, 8, 8

    key = jax.random.PRNGKey(0)
    k_img, k_logits, k_unary = jax.random.split(key, 3)
    image = jax.random.uniform(k_img, (1, 3, D, H, W), jnp.float32) * 255.0
    logits = jax.random.normal(k_logits, (1, num_labels, D, H, W), jnp.float32)
    unary = jax.random.normal(k_unary, (1, num_labels, D, H, W), jnp.float32)

    # Deterministic parameter init, matching nn.Parameter shapes in __init__.
    spatial_ker_weights = SPATIAL_KER_WEIGHT * jnp.eye(num_labels, dtype=jnp.float32)
    bilateral_ker_weights = BILATERAL_KER_WEIGHT * jnp.eye(num_labels, dtype=jnp.float32)
    compatibility_matrix = jnp.eye(num_labels, dtype=jnp.float32)

    q_hat = crfrnn_forward(image, logits, unary, spatial_ker_weights,
                           bilateral_ker_weights, compatibility_matrix,
                           num_iterations=num_iterations)
    q_hat = jax.block_until_ready(q_hat)

    assert q_hat.shape == (1, num_labels, D, H, W)
    assert bool(jnp.all(jnp.isfinite(q_hat)))
    # Output is a softmax over labels -> per-voxel probabilities sum to ~1
    # (final softmax uses an exact reciprocal, so this is tight).
    sums = jnp.sum(q_hat, axis=1)
    assert bool(jnp.allclose(sums, 1.0, atol=1e-2))
    print("KERNEL_OK")
</pallas_src>

<mosaic_0001>
module attributes {stable_mosaic.version = 11 : i64} {
  func.func @kernel(%arg0: memref<256x8xf32, #tpu.memory_space<vmem>>, %arg1: memref<256x8xf32, #tpu.memory_space<vmem>>, %arg2: memref<256x8xf32, #tpu.memory_space<vmem>>, %arg3: memref<256x8xf32, #tpu.memory_space<vmem>>, %arg4: memref<8x256xf32, #tpu.memory_space<vmem>>, %arg5: memref<8x256xf32, #tpu.memory_space<vmem>>, %arg6: memref<8x8xf32, #tpu.memory_space<vmem>>, %arg7: memref<8x8xf32, #tpu.memory_space<vmem>>, %arg8: memref<8x256xf32, #tpu.memory_space<vmem>>, %arg9: memref<512x256xbf16, #tpu.memory_space<vmem>>) attributes {dimension_semantics = [], scalar_prefetch = 0 : i64, scratch_operands = 1 : i64, tpu.core_type = #tpu.core_type<tc>} {
    %c0_i32 = arith.constant 0 : i32
    %c1_i32 = arith.constant 1 : i32
    %0 = arith.muli %c0_i32, %c1_i32 : i32
    %c0_i32_0 = arith.constant 0 : i32
    %1 = arith.addi %c0_i32_0, %0 : i32
    %c256_i32 = arith.constant 256 : i32
    %2 = arith.muli %1, %c256_i32 : i32
    %3 = tpu.assume_multiple %2, 128 : i32
    %4 = arith.index_cast %3 : i32 to index
    %c0 = arith.constant 0 : index
    %5 = vector.load %arg1[%4, %c0] : memref<256x8xf32, #tpu.memory_space<vmem>>, vector<256x8xf32>
    %c0_1 = arith.constant 0 : index
    %c0_2 = arith.constant 0 : index
    %6 = vector.load %arg0[%c0_1, %c0_2] : memref<256x8xf32, #tpu.memory_space<vmem>>, vector<256x8xf32>
    %cst = arith.constant dense<0.000000e+00> : vector<256x256xf32>
    %7 = tpu.matmul %6, %5, %cst {dimension_numbers = #tpu.dot_dimension_numbers<[1], [1], [0], [0], [0, 0, 1, 0], [], []>} : vector<256x8xf32>, vector<256x8xf32>, vector<256x256xf32> -> vector<256x256xf32>
    %8 = math.exp %7 : vector<256x256xf32>
    %cst_3 = arith.constant dense<0.000000e+00> : vector<256xf32>
    %9 = vector.multi_reduction <add>, %8, %cst_3 [0] : vector<256x256xf32> to vector<256xf32>
    %10 = vector.shape_cast %9 : vector<256xf32> to vector<1x256xf32>
    %cst_4 = arith.constant 9.99999993E-9 : f32
    %11 = vector.broadcast %cst_4 : f32 to vector<1x256xf32>
    %12 = arith.addf %10, %11 : vector<1x256xf32>
    %cst_5 = arith.constant 1.000000e+00 : f32
    %13 = vector.broadcast %cst_5 : f32 to vector<1x256xf32>
    %14 = arith.divf %13, %12 : vector<1x256xf32>
    %15 = vector.broadcast %14 : vector<1x256xf32> to vector<256x256xf32>
    %16 = arith.mulf %8, %15 : vector<256x256xf32>
    %17 = arith.truncf %16 : vector<256x256xf32> to vector<256x256xbf16>
    %c0_6 = arith.constant 0 : index
    %18 = arith.index_cast %3 : i32 to index
    %19 = vector.load %arg9[%c0_6, %18] : memref<512x256xbf16, #tpu.memory_space<vmem>>, vector<256x256xbf16>
    tpu.vector_store %arg9[%c0_6, %18], %17 {strides = array<i32>} : memref<512x256xbf16, #tpu.memory_space<vmem>>, vector<256x256xbf16>,
    %20 = arith.index_cast %3 : i32 to index
    %c0_7 = arith.constant 0 : index
    %21 = vector.load %arg3[%20, %c0_7] : memref<256x8xf32, #tpu.memory_space<vmem>>, vector<256x8xf32>
    %c0_8 = arith.constant 0 : index
    %c0_9 = arith.constant 0 : index
    %22 = vector.load %arg2[%c0_8, %c0_9] : memref<256x8xf32, #tpu.memory_space<vmem>>, vector<256x8xf32>
    %cst_10 = arith.constant dense<0.000000e+00> : vector<256x256xf32>
    %23 = tpu.matmul %22, %21, %cst_10 {dimension_numbers = #tpu.dot_dimension_numbers<[1], [1], [0], [0], [0, 0, 1, 0], [], []>} : vector<256x8xf32>, vector<256x8xf32>, vector<256x256xf32> -> vector<256x256xf32>
    %24 = math.exp %23 : vector<256x256xf32>
    %cst_11 = arith.constant dense<0.000000e+00> : vector<256xf32>
    %25 = vector.multi_reduction <add>, %24, %cst_11 [0] : vector<256x256xf32> to vector<256xf32>
    %26 = vector.shape_cast %25 : vector<256xf32> to vector<1x256xf32>
    %cst_12 = arith.constant 9.99999993E-9 : f32
    %27 = vector.broadcast %cst_12 : f32 to vector<1x256xf32>
    %28 = arith.addf %26, %27 : vector<1x256xf32>
    %cst_13 = arith.constant 1.000000e+00 : f32
    %29 = vector.broadcast %cst_13 : f32 to vector<1x256xf32>
    %30 = arith.divf %29, %28 : vector<1x256xf32>
    %31 = vector.broadcast %30 : vector<1x256xf32> to vector<256x256xf32>
    %32 = arith.mulf %24, %31 : vector<256x256xf32>
    %33 = arith.truncf %32 : vector<256x256xf32> to vector<256x256xbf16>
    %c256 = arith.constant 256 : index
    %34 = arith.index_cast %3 : i32 to index
    %35 = vector.load %arg9[%c256, %34] : memref<512x256xbf16, #tpu.memory_space<vmem>>, vector<256x256xbf16>
    tpu.vector_store %arg9[%c256, %34], %33 {strides = array<i32>} : memref<512x256xbf16, #tpu.memory_space<vmem>>, vector<256x256xbf16>,
    %c1_i32_14 = arith.constant 1 : i32
    %c0_15 = arith.constant 0 : index
    %c0_16 = arith.constant 0 : index
    %36 = vector.load %arg6[%c0_15, %c0_16] : memref<8x8xf32, #tpu.memory_space<vmem>>, vector<8x8xf32>
    %c0_17 = arith.constant 0 : index
    %c0_18 = arith.constant 0 : index
    %37 = vector.load %arg7[%c0_17, %c0_18] : memref<8x8xf32, #tpu.memory_space<vmem>>, vector<8x8xf32>
    %c0_19 = arith.constant 0 : index
    %c0_20 = arith.constant 0 : index
    %38 = vector.load %arg5[%c0_19, %c0_20] : memref<8x256xf32, #tpu.memory_space<vmem>>, vector<8x256xf32>
    %c0_21 = arith.constant 0 : index
    %c0_22 = arith.constant 0 : index
    %39 = vector.load %arg4[%c0_21, %c0_22] : memref<8x256xf32, #tpu.memory_space<vmem>>, vector<8x256xf32>
    %cst_23 = arith.constant dense<0xFF800000> : vector<256xf32>
    %40 = vector.multi_reduction <maximumf>, %39, %cst_23 [0] : vector<8x256xf32> to vector<256xf32>
    %41 = vector.shape_cast %40 : vector<256xf32> to vector<1x256xf32>
    %42 = vector.broadcast %41 : vector<1x256xf32> to vector<8x256xf32>
    %43 = arith.subf %39, %42 : vector<8x256xf32>
    %44 = math.exp %43 : vector<8x256xf32>
    %cst_24 = arith.constant dense<0.000000e+00> : vector<256xf32>
    %45 = vector.multi_reduction <add>, %44, %cst_24 [0] : vector<8x256xf32> to vector<256xf32>
    %46 = vector.shape_cast %45 : vector<256xf32> to vector<1x256xf32>
    %47 = tpu.reciprocal %46 {approx = true} : vector<1x256xf32> -> vector<1x256xf32>
    %48 = vector.broadcast %47 : vector<1x256xf32> to vector<8x256xf32>
    %49 = arith.mulf %44, %48 : vector<8x256xf32>
    %cst_25 = arith.constant dense<0.000000e+00> : vector<8x256xf32>
    %50 = tpu.matmul %36, %49, %cst_25 {dimension_numbers = #tpu.dot_dimension_numbers<[1], [0], [0], [1], [0, 0, 1, 1], [], []>} : vector<8x8xf32>, vector<8x256xf32>, vector<8x256xf32> -> vector<8x256xf32>
    %cst_26 = arith.constant dense<0.000000e+00> : vector<8x256xf32>
    %51 = tpu.matmul %37, %49, %cst_26 {dimension_numbers = #tpu.dot_dimension_numbers<[1], [0], [0], [1], [0, 0, 1, 1], [], []>} : vector<8x8xf32>, vector<8x256xf32>, vector<8x256xf32> -> vector<8x256xf32>
    %52 = arith.truncf %50 : vector<8x256xf32> to vector<8x256xbf16>
    %53 = arith.truncf %51 : vector<8x256xf32> to vector<8x256xbf16>
    %54 = tpu.concatenate %52, %53 in 1 : vector<8x256xbf16>, vector<8x256xbf16> -> vector<8x512xbf16>
    %c0_27 = arith.constant 0 : index
    %c0_28 = arith.constant 0 : index
    %55 = vector.load %arg9[%c0_27, %c0_28] : memref<512x256xbf16, #tpu.memory_space<vmem>>, vector<512x256xbf16>
    %cst_29 = arith.constant dense<0.000000e+00> : vector<8x256xf32>
    %56 = tpu.matmul %54, %55, %cst_29 {dimension_numbers = #tpu.dot_dimension_numbers<[1], [0], [0], [1], [0, 0, 1, 1], [], []>} : vector<8x512xbf16>, vector<512x256xbf16>, vector<8x256xf32> -> vector<8x256xf32>
    %57 = arith.addf %38, %56 : vector<8x256xf32>
    %cst_30 = arith.constant dense<0xFF800000> : vector<256xf32>
    %58 = vector.multi_reduction <maximumf>, %57, %cst_30 [0] : vector<8x256xf32> to vector<256xf32>
    %59 = vector.shape_cast %58 : vector<256xf32> to vector<1x256xf32>
    %60 = vector.broadcast %59 : vector<1x256xf32> to vector<8x256xf32>
    %61 = arith.subf %57, %60 : vector<8x256xf32>
    %62 = math.exp %61 : vector<8x256xf32>
    %cst_31 = arith.constant dense<0.000000e+00> : vector<256xf32>
    %63 = vector.multi_reduction <add>, %62, %cst_31 [0] : vector<8x256xf32> to vector<256xf32>
    %64 = vector.shape_cast %63 : vector<256xf32> to vector<1x256xf32>
    %65 = tpu.reciprocal %64 {approx = true} : vector<1x256xf32> -> vector<1x256xf32>
    %66 = vector.broadcast %65 : vector<1x256xf32> to vector<8x256xf32>
    %67 = arith.mulf %62, %66 : vector<8x256xf32>
    %cst_32 = arith.constant dense<0.000000e+00> : vector<8x256xf32>
    %68 = tpu.matmul %36, %67, %cst_32 {dimension_numbers = #tpu.dot_dimension_numbers<[1], [0], [0], [1], [0, 0, 1, 1], [], []>} : vector<8x8xf32>, vector<8x256xf32>, vector<8x256xf32> -> vector<8x256xf32>
    %cst_33 = arith.constant dense<0.000000e+00> : vector<8x256xf32>
    %69 = tpu.matmul %37, %67, %cst_33 {dimension_numbers = #tpu.dot_dimension_numbers<[1], [0], [0], [1], [0, 0, 1, 1], [], []>} : vector<8x8xf32>, vector<8x256xf32>, vector<8x256xf32> -> vector<8x256xf32>
    %70 = arith.truncf %68 : vector<8x256xf32> to vector<8x256xbf16>
    %71 = arith.truncf %69 : vector<8x256xf32> to vector<8x256xbf16>
    %72 = tpu.concatenate %70, %71 in 1 : vector<8x256xbf16>, vector<8x256xbf16> -> vector<8x512xbf16>
    %c0_34 = arith.constant 0 : index
    %c0_35 = arith.constant 0 : index
    %73 = vector.load %arg9[%c0_34, %c0_35] : memref<512x256xbf16, #tpu.memory_space<vmem>>, vector<512x256xbf16>
    %cst_36 = arith.constant dense<0.000000e+00> : vector<8x256xf32>
    %74 = tpu.matmul %72, %73, %cst_36 {dimension_numbers = #tpu.dot_dimension_numbers<[1], [0], [0], [1], [0, 0, 1, 1], [], []>} : vector<8x512xbf16>, vector<512x256xbf16>, vector<8x256xf32> -> vector<8x256xf32>
    %75 = arith.addf %38, %74 : vector<8x256xf32>
    %cst_37 = arith.constant dense<0xFF800000> : vector<256xf32>
    %76 = vector.multi_reduction <maximumf>, %75, %cst_37 [0] : vector<8x256xf32> to vector<256xf32>
    %77 = vector.shape_cast %76 : vector<256xf32> to vector<1x256xf32>
    %78 = vector.broadcast %77 : vector<1x256xf32> to vector<8x256xf32>
    %79 = arith.subf %75, %78 : vector<8x256xf32>
    %80 = math.exp %79 : vector<8x256xf32>
    %cst_38 = arith.constant dense<0.000000e+00> : vector<256xf32>
    %81 = vector.multi_reduction <add>, %80, %cst_38 [0] : vector<8x256xf32> to vector<256xf32>
    %82 = vector.shape_cast %81 : vector<256xf32> to vector<1x256xf32>
    %83 = tpu.reciprocal %82 {approx = true} : vector<1x256xf32> -> vector<1x256xf32>
    %84 = vector.broadcast %83 : vector<1x256xf32> to vector<8x256xf32>
    %85 = arith.mulf %80, %84 : vector<8x256xf32>
    %cst_39 = arith.constant dense<0.000000e+00> : vector<8x256xf32>
    %86 = tpu.matmul %36, %85, %cst_39 {dimension_numbers = #tpu.dot_dimension_numbers<[1], [0], [0], [1], [0, 0, 1, 1], [], []>} : vector<8x8xf32>, vector<8x256xf32>, vector<8x256xf32> -> vector<8x256xf32>
    %cst_40 = arith.constant dense<0.000000e+00> : vector<8x256xf32>
    %87 = tpu.matmul %37, %85, %cst_40 {dimension_numbers = #tpu.dot_dimension_numbers<[1], [0], [0], [1], [0, 0, 1, 1], [], []>} : vector<8x8xf32>, vector<8x256xf32>, vector<8x256xf32> -> vector<8x256xf32>
    %88 = arith.truncf %86 : vector<8x256xf32> to vector<8x256xbf16>
    %89 = arith.truncf %87 : vector<8x256xf32> to vector<8x256xbf16>
    %90 = tpu.concatenate %88, %89 in 1 : vector<8x256xbf16>, vector<8x256xbf16> -> vector<8x512xbf16>
    %c0_41 = arith.constant 0 : index
    %c0_42 = arith.constant 0 : index
    %91 = vector.load %arg9[%c0_41, %c0_42] : memref<512x256xbf16, #tpu.memory_space<vmem>>, vector<512x256xbf16>
    %cst_43 = arith.constant dense<0.000000e+00> : vector<8x256xf32>
    %92 = tpu.matmul %90, %91, %cst_43 {dimension_numbers = #tpu.dot_dimension_numbers<[1], [0], [0], [1], [0, 0, 1, 1], [], []>} : vector<8x512xbf16>, vector<512x256xbf16>, vector<8x256xf32> -> vector<8x256xf32>
    %93 = arith.addf %38, %92 : vector<8x256xf32>
    %cst_44 = arith.constant dense<0xFF800000> : vector<256xf32>
    %94 = vector.multi_reduction <maximumf>, %93, %cst_44 [0] : vector<8x256xf32> to vector<256xf32>
    %95 = vector.shape_cast %94 : vector<256xf32> to vector<1x256xf32>
    %96 = vector.broadcast %95 : vector<1x256xf32> to vector<8x256xf32>
    %97 = arith.subf %93, %96 : vector<8x256xf32>
    %98 = math.exp %97 : vector<8x256xf32>
    %cst_45 = arith.constant dense<0.000000e+00> : vector<256xf32>
    %99 = vector.multi_reduction <add>, %98, %cst_45 [0] : vector<8x256xf32> to vector<256xf32>
    %100 = vector.shape_cast %99 : vector<256xf32> to vector<1x256xf32>
    %101 = tpu.reciprocal %100 {approx = true} : vector<1x256xf32> -> vector<1x256xf32>
    %102 = vector.broadcast %101 : vector<1x256xf32> to vector<8x256xf32>
    %103 = arith.mulf %98, %102 : vector<8x256xf32>
    %cst_46 = arith.constant dense<0.000000e+00> : vector<8x256xf32>
    %104 = tpu.matmul %36, %103, %cst_46 {dimension_numbers = #tpu.dot_dimension_numbers<[1], [0], [0], [1], [0, 0, 1, 1], [], []>} : vector<8x8xf32>, vector<8x256xf32>, vector<8x256xf32> -> vector<8x256xf32>
    %cst_47 = arith.constant dense<0.000000e+00> : vector<8x256xf32>
    %105 = tpu.matmul %37, %103, %cst_47 {dimension_numbers = #tpu.dot_dimension_numbers<[1], [0], [0], [1], [0, 0, 1, 1], [], []>} : vector<8x8xf32>, vector<8x256xf32>, vector<8x256xf32> -> vector<8x256xf32>
    %106 = arith.truncf %104 : vector<8x256xf32> to vector<8x256xbf16>
    %107 = arith.truncf %105 : vector<8x256xf32> to vector<8x256xbf16>
    %108 = tpu.concatenate %106, %107 in 1 : vector<8x256xbf16>, vector<8x256xbf16> -> vector<8x512xbf16>
    %c0_48 = arith.constant 0 : index
    %c0_49 = arith.constant 0 : index
    %109 = vector.load %arg9[%c0_48, %c0_49] : memref<512x256xbf16, #tpu.memory_space<vmem>>, vector<512x256xbf16>
    %cst_50 = arith.constant dense<0.000000e+00> : vector<8x256xf32>
    %110 = tpu.matmul %108, %109, %cst_50 {dimension_numbers = #tpu.dot_dimension_numbers<[1], [0], [0], [1], [0, 0, 1, 1], [], []>} : vector<8x512xbf16>, vector<512x256xbf16>, vector<8x256xf32> -> vector<8x256xf32>
    %111 = arith.addf %38, %110 : vector<8x256xf32>
    %cst_51 = arith.constant dense<0xFF800000> : vector<256xf32>
    %112 = vector.multi_reduction <maximumf>, %111, %cst_51 [0] : vector<8x256xf32> to vector<256xf32>
    %113 = vector.shape_cast %112 : vector<256xf32> to vector<1x256xf32>
    %114 = vector.broadcast %113 : vector<1x256xf32> to vector<8x256xf32>
    %115 = arith.subf %111, %114 : vector<8x256xf32>
    %116 = math.exp %115 : vector<8x256xf32>
    %cst_52 = arith.constant dense<0.000000e+00> : vector<256xf32>
    %117 = vector.multi_reduction <add>, %116, %cst_52 [0] : vector<8x256xf32> to vector<256xf32>
    %118 = vector.shape_cast %117 : vector<256xf32> to vector<1x256xf32>
    %119 = tpu.reciprocal %118 {approx = true} : vector<1x256xf32> -> vector<1x256xf32>
    %120 = vector.broadcast %119 : vector<1x256xf32> to vector<8x256xf32>
    %121 = arith.mulf %116, %120 : vector<8x256xf32>
    %cst_53 = arith.constant dense<0.000000e+00> : vector<8x256xf32>
    %122 = tpu.matmul %36, %121, %cst_53 {dimension_numbers = #tpu.dot_dimension_numbers<[1], [0], [0], [1], [0, 0, 1, 1], [], []>} : vector<8x8xf32>, vector<8x256xf32>, vector<8x256xf32> -> vector<8x256xf32>
    %cst_54 = arith.constant dense<0.000000e+00> : vector<8x256xf32>
    %123 = tpu.matmul %37, %121, %cst_54 {dimension_numbers = #tpu.dot_dimension_numbers<[1], [0], [0], [1], [0, 0, 1, 1], [], []>} : vector<8x8xf32>, vector<8x256xf32>, vector<8x256xf32> -> vector<8x256xf32>
    %124 = arith.truncf %122 : vector<8x256xf32> to vector<8x256xbf16>
    %125 = arith.truncf %123 : vector<8x256xf32> to vector<8x256xbf16>
    %126 = tpu.concatenate %124, %125 in 1 : vector<8x256xbf16>, vector<8x256xbf16> -> vector<8x512xbf16>
    %c0_55 = arith.constant 0 : index
    %c0_56 = arith.constant 0 : index
    %127 = vector.load %arg9[%c0_55, %c0_56] : memref<512x256xbf16, #tpu.memory_space<vmem>>, vector<512x256xbf16>
    %cst_57 = arith.constant dense<0.000000e+00> : vector<8x256xf32>
    %128 = tpu.matmul %126, %127, %cst_57 {dimension_numbers = #tpu.dot_dimension_numbers<[1], [0], [0], [1], [0, 0, 1, 1], [], []>} : vector<8x512xbf16>, vector<512x256xbf16>, vector<8x256xf32> -> vector<8x256xf32>
    %129 = arith.addf %38, %128 : vector<8x256xf32>
    %cst_58 = arith.constant dense<0xFF800000> : vector<256xf32>
    %130 = vector.multi_reduction <maximumf>, %129, %cst_58 [0] : vector<8x256xf32> to vector<256xf32>
    %131 = vector.shape_cast %130 : vector<256xf32> to vector<1x256xf32>
    %132 = vector.broadcast %131 : vector<1x256xf32> to vector<8x256xf32>
    %133 = arith.subf %129, %132 : vector<8x256xf32>
    %134 = math.exp %133 : vector<8x256xf32>
    %cst_59 = arith.constant dense<0.000000e+00> : vector<256xf32>
    %135 = vector.multi_reduction <add>, %134, %cst_59 [0] : vector<8x256xf32> to vector<256xf32>
    %136 = vector.shape_cast %135 : vector<256xf32> to vector<1x256xf32>
    %137 = vector.broadcast %136 : vector<1x256xf32> to vector<8x256xf32>
    %138 = arith.divf %134, %137 : vector<8x256xf32>
    %c0_60 = arith.constant 0 : index
    %c0_61 = arith.constant 0 : index
    %139 = vector.load %arg8[%c0_60, %c0_61] : memref<8x256xf32, #tpu.memory_space<vmem>>, vector<8x256xf32>
    tpu.vector_store %arg8[%c0_60, %c0_61], %138 {strides = array<i32>} : memref<8x256xf32, #tpu.memory_space<vmem>>, vector<8x256xf32>,
    return
  }
}

</mosaic_0001>

<llo_original>
// kernel: squeeze.4
$region0: #{squeeze.4}
  %s0 = inlined_call_operand.hbm [shape: f32[1,4,4,8,8], index: 0, kind: input, shape index: {}]
  %s1 = inlined_call_operand.vmem [shape: f32[4,256], index: 1, kind: output, shape index: {}]
  $region1: #{squeeze.4} parent=0
    #allocation0 [shape = 'u8[65536]{0}', space=vmem, size = 0x10000, scoped, tag = 'operand span for operand 0']
    #allocation1 [shape = 's32[1]{0}', space=sflag, size = 0x4, scoped, tag = 'scoped memory for squeeze.4']
    #allocation2 [shape = 'u8[8192]{0}', space=vmem, size = 0x2000, scoped, tag = 'scoped mem for output reshape']
    %2 = vsyncpa [#allocation1], 0
    %s4 = ssub.s32 2048, 2048
    %5 = vsyncadd [#allocation1], %s4
    %s7 = sshll.u32 [#allocation0], 4
    %s8 = int_to_ptr.vmem [resolvable:$true] %s7
    %10 = dma.hbm_to_vmem [thread:$0]  %s0, 2048, %s8, [#allocation1]
    %11 = dma.done [#allocation1], 2048
    %s12 = smov 3
    %v13 = vld [vmem:[#allocation0] ss:$16 sm:%s12]
    %s14 = smov 12
    %v15 = vld [vmem:[#allocation0] ss:$16 sm:%s14]
    %vm16 = vcmask 1043458
    %v17 = vsel %vm16, %v15, %v13
    %s18 = smov 48
    %v19 = vld [vmem:[#allocation0] ss:$16 sm:%s18]
    %vm20 = vcmask 1045508
    %v21 = vsel %vm20, %v19, %v17
    %s22 = smov 192
    %v23 = vld [vmem:[#allocation0] ss:$16 sm:%s22]
    %vm24 = vcmask 1047558
    %v25 = vsel %vm24, %v23, %v21
    %vm26 = vcmask 64512
    %27 = vst.msk [vmem:[#allocation2] ss:$8 sm:$0x3] %vm26, %v25
    %s28 = scalar_lea.vmem [#allocation2], 4294967281
    %29 = vst.msk [vmem:[%s28] ss:$8 sm:$0xc] %vm26, %v25
    %s30 = scalar_lea.vmem [#allocation2], 4294967266
    %31 = vst.msk [vmem:[%s30] ss:$8 sm:$0x30] %vm26, %v25
    %s32 = scalar_lea.vmem [#allocation2], 4294967251
    %33 = vst.msk [vmem:[%s32] ss:$8 sm:$0xc0] %vm26, %v25
    %s34 = scalar_lea.vmem [#allocation0], 15
    %v35 = vld [vmem:[%s34] sm:$0x1]
    %s36 = scalar_lea.vmem [#allocation0], 46
    %v37 = vld [vmem:[%s36] sm:$0x2]
    %vm38 = vcmask 1041409
    %v39 = vsel %vm38, %v37, %v35
    %s40 = scalar_lea.vmem [#allocation0], 77
    %v41 = vld [vmem:[%s40] sm:$0x4]
    %vm42 = vcmask 1042434
    %v43 = vsel %vm42, %v41, %v39
    %s44 = scalar_lea.vmem [#allocation0], 351
    %s45 = smov 24
    %v46 = vld [vmem:[%s44] ss:$-80 sm:%s45]
    %vm47 = vcmask 1044483
    %v48 = vsel %vm47, %v46, %v43
    %s49 = scalar_lea.vmem [#allocation0], 58
    %v50 = vld [vmem:[%s49] sm:$0x20]
    %vm51 = vcmask 1045509
    %v52 = vsel %vm51, %v50, %v48
    %s53 = scalar_lea.vmem [#allocation0], 89
    %v54 = vld [vmem:[%s53] sm:$0x40]
    %vm55 = vcmask 1046534
    %v56 = vsel %vm55, %v54, %v52
    %s57 = scalar_lea.vmem [#allocation0], 120
    %v58 = vld [vmem:[%s57] sm:$0x80]
    %vm59 = vcmask 1047559
    %v60 = vsel %vm59, %v58, %v56
    %61 = vrot.lane.b32.xlu0 %v60, 120
    %v62 = vpop.permute.xlu0 %61
    %vm63 = vcmask 1048512
    %64 = vst.msk [vmem:[#allocation2] sm:$0xf] %vm63, %v62
    %s65 = scalar_lea.vmem [#allocation2], 4
    %66 = vst.msk [vmem:[%s65] sm:$0xf0] %vm63, %v62
    %s67 = scalar_lea.vmem [#allocation0], 14
    %v68 = vld [vmem:[%s67] sm:$0x1]
    %s69 = scalar_lea.vmem [#allocation0], 45
    %v70 = vld [vmem:[%s69] sm:$0x2]
    %vm71 = vcmask 1041409
    %v72 = vsel %vm71, %v70, %v68
    %s73 = scalar_lea.vmem [#allocation0], 76
    %v74 = vld [vmem:[%s73] sm:$0x4]
    %vm75 = vcmask 1042434
    %v76 = vsel %vm75, %v74, %v72
    %s77 = scalar_lea.vmem [#allocation0], 350
    %s78 = smov 24
    %v79 = vld [vmem:[%s77] ss:$-80 sm:%s78]
    %vm80 = vcmask 1044483
    %v81 = vsel %vm80, %v79, %v76
    %s82 = scalar_lea.vmem [#allocation0], 57
    %v83 = vld [vmem:[%s82] sm:$0x20]
    %vm84 = vcmask 1045509
    %v85 = vsel %vm84, %v83, %v81
    %s86 = scalar_lea.vmem [#allocation0], 88
    %v87 = vld [vmem:[%s86] sm:$0x40]
    %vm88 = vcmask 1046534
    %v89 = vsel %vm88, %v87, %v85
    %s90 = scalar_lea.vmem [#allocation0], 119
    %v91 = vld [vmem:[%s90] sm:$0x80]
    %vm92 = vcmask 1047559
    %v93 = vsel %vm92, %v91, %v89
    %94 = vrot.lane.b32.xlu0 %v93, 112
    %v95 = vpop.permute.xlu0 %94
    %vm96 = vcmask 982912
    %97 = vst.msk [vmem:[#allocation2] sm:$0xf] %vm96, %v95
    %s98 = scalar_lea.vmem [#allocation2], 4
    %99 = vst.msk [vmem:[%s98] sm:$0xf0] %vm96, %v95
    %s100 = scalar_lea.vmem [#allocation0], 13
    %v101 = vld [vmem:[%s100] sm:$0x1]
    %s102 = scalar_lea.vmem [#allocation0], 44
    %v103 = vld [vmem:[%s102] sm:$0x2]
    %vm104 = vcmask 1041409
    %v105 = vsel %vm104, %v103, %v101
    %s106 = scalar_lea.vmem [#allocation0], 75
    %v107 = vld [vmem:[%s106] sm:$0x4]
    %vm108 = vcmask 1042434
    %v109 = vsel %vm108, %v107, %v105
    %s110 = scalar_lea.vmem [#allocation0], 349
    %s111 = smov 24
    %v112 = vld [vmem:[%s110] ss:$-80 sm:%s111]
    %vm113 = vcmask 1044483
    %v114 = vsel %vm113, %v112, %v109
    %s115 = scalar_lea.vmem [#allocation0], 56
    %v116 = vld [vmem:[%s115] sm:$0x20]
    %vm117 = vcmask 1045509
    %v118 = vsel %vm117, %v116, %v114
    %s119 = scalar_lea.vmem [#allocation0], 87
    %v120 = vld [vmem:[%s119] sm:$0x40]
    %vm121 = vcmask 1046534
    %v122 = vsel %vm121, %v120, %v118
    %s123 = scalar_lea.vmem [#allocation0], 118
    %v124 = vld [vmem:[%s123] sm:$0x80]
    %vm125 = vcmask 1047559
    %v126 = vsel %vm125, %v124, %v122
    %127 = vrot.lane.b32.xlu0 %v126, 104
    %v128 = vpop.permute.xlu0 %127
    %vm129 = vcmask 917312
    %130 = vst.msk [vmem:[#allocation2] sm:$0xf] %vm129, %v128
    %s131 = scalar_lea.vmem [#allocation2], 4
    %132 = vst.msk [vmem:[%s131] sm:$0xf0] %vm129, %v128
    %s133 = scalar_lea.vmem [#allocation0], 12
    %v134 = vld [vmem:[%s133] sm:$0x1]
    %s135 = scalar_lea.vmem [#allocation0], 43
    %v136 = vld [vmem:[%s135] sm:$0x2]
    %vm137 = vcmask 1041409
    %v138 = vsel %vm137, %v136, %v134
    %s139 = scalar_lea.vmem [#allocation0], 74
    %v140 = vld [vmem:[%s139] sm:$0x4]
    %vm141 = vcmask 1042434
    %v142 = vsel %vm141, %v140, %v138
    %s143 = scalar_lea.vmem [#allocation0], 348
    %s144 = smov 24
    %v145 = vld [vmem:[%s143] ss:$-80 sm:%s144]
    %vm146 = vcmask 1044483
    %v147 = vsel %vm146, %v145, %v142
    %s148 = scalar_lea.vmem [#allocation0], 55
    %v149 = vld [vmem:[%s148] sm:$0x20]
    %vm150 = vcmask 1045509
    %v151 = vsel %vm150, %v149, %v147
    %s152 = scalar_lea.vmem [#allocation0], 86
    %v153 = vld [vmem:[%s152] sm:$0x40]
    %vm154 = vcmask 1046534
    %v155 = vsel %vm154, %v153, %v151
    %s156 = scalar_lea.vmem [#allocation0], 117
    %v157 = vld [vmem:[%s156] sm:$0x80]
    %vm158 = vcmask 1047559
    %v159 = vsel %vm158, %v157, %v155
    %160 = vrot.lane.b32.xlu0 %v159, 96
    %v161 = vpop.permute.xlu0 %160
    %vm162 = vcmask 851712
    %163 = vst.msk [vmem:[#allocation2] sm:$0xf] %vm162, %v161
    %s164 = scalar_lea.vmem [#allocation2], 4
    %165 = vst.msk [vmem:[%s164] sm:$0xf0] %vm162, %v161
    %s166 = scalar_lea.vmem [#allocation0], 11
    %v167 = vld [vmem:[%s166] sm:$0x1]
    %s168 = scalar_lea.vmem [#allocation0], 42
    %v169 = vld [vmem:[%s168] sm:$0x2]
    %vm170 = vcmask 1041409
    %v171 = vsel %vm170, %v169, %v167
    %s172 = scalar_lea.vmem [#allocation0], 73
    %v173 = vld [vmem:[%s172] sm:$0x4]
    %vm174 = vcmask 1042434
    %v175 = vsel %vm174, %v173, %v171
    %s176 = scalar_lea.vmem [#allocation0], 347
    %s177 = smov 24
    %v178 = vld [vmem:[%s176] ss:$-80 sm:%s177]
    %vm179 = vcmask 1044483
    %v180 = vsel %vm179, %v178, %v175
    %s181 = scalar_lea.vmem [#allocation0], 54
    %v182 = vld [vmem:[%s181] sm:$0x20]
    %vm183 = vcmask 1045509
    %v184 = vsel %vm183, %v182, %v180
    %s185 = scalar_lea.vmem [#allocation0], 85
    %v186 = vld [vmem:[%s185] sm:$0x40]
    %vm187 = vcmask 1046534
    %v188 = vsel %vm187, %v186, %v184
    %s189 = scalar_lea.vmem [#allocation0], 116
    %v190 = vld [vmem:[%s189] sm:$0x80]
    %vm191 = vcmask 1047559
    %v192 = vsel %vm191, %v190, %v188
    %193 = vrot.lane.b32.xlu0 %v192, 88
    %v194 = vpop.permute.xlu0 %193
    %vm195 = vcmask 786112
    %196 = vst.msk [vmem:[#allocation2] sm:$0xf] %vm195, %v194
    %s197 = scalar_lea.vmem [#allocation2], 4
    %198 = vst.msk [vmem:[%s197] sm:$0xf0] %vm195, %v194
    %s199 = scalar_lea.vmem [#allocation0], 10
    %v200 = vld [vmem:[%s199] sm:$0x1]
    %s201 = scalar_lea.vmem [#allocation0], 41
    %v202 = vld [vmem:[%s201] sm:$0x2]
    %vm203 = vcmask 1041409
    %v204 = vsel %vm203, %v202, %v200
    %s205 = scalar_lea.vmem [#allocation0], 72
    %v206 = vld [vmem:[%s205] sm:$0x4]
    %vm207 = vcmask 1042434
    %v208 = vsel %vm207, %v206, %v204
    %s209 = scalar_lea.vmem [#allocation0], 346
    %s210 = smov 24
    %v211 = vld [vmem:[%s209] ss:$-80 sm:%s210]
    %vm212 = vcmask 1044483
    %v213 = vsel %vm212, %v211, %v208
    %s214 = scalar_lea.vmem [#allocation0], 53
    %v215 = vld [vmem:[%s214] sm:$0x20]
    %vm216 = vcmask 1045509
    %v217 = vsel %vm216, %v215, %v213
    %s218 = scalar_lea.vmem [#allocation0], 84
    %v219 = vld [vmem:[%s218] sm:$0x40]
    %vm220 = vcmask 1046534
    %v221 = vsel %vm220, %v219, %v217
    %s222 = scalar_lea.vmem [#allocation0], 115
    %v223 = vld [vmem:[%s222] sm:$0x80]
    %vm224 = vcmask 1047559
    %v225 = vsel %vm224, %v223, %v221
    %226 = vrot.lane.b32.xlu0 %v225, 80
    %v227 = vpop.permute.xlu0 %226
    %vm228 = vcmask 720512
    %229 = vst.msk [vmem:[#allocation2] sm:$0xf] %vm228, %v227
    %s230 = scalar_lea.vmem [#allocation2], 4
    %231 = vst.msk [vmem:[%s230] sm:$0xf0] %vm228, %v227
    %s232 = scalar_lea.vmem [#allocation0], 9
    %v233 = vld [vmem:[%s232] sm:$0x1]
    %s234 = scalar_lea.vmem [#allocation0], 40
    %v235 = vld [vmem:[%s234] sm:$0x2]
    %vm236 = vcmask 1041409
    %v237 = vsel %vm236, %v235, %v233
    %s238 = scalar_lea.vmem [#allocation0], 71
    %v239 = vld [vmem:[%s238] sm:$0x4]
    %vm240 = vcmask 1042434
    %v241 = vsel %vm240, %v239, %v237
    %s242 = scalar_lea.vmem [#allocation0], 345
    %s243 = smov 24
    %v244 = vld [vmem:[%s242] ss:$-80 sm:%s243]
    %vm245 = vcmask 1044483
    %v246 = vsel %vm245, %v244, %v241
    %s247 = scalar_lea.vmem [#allocation0], 52
    %v248 = vld [vmem:[%s247] sm:$0x20]
    %vm249 = vcmask 1045509
    %v250 = vsel %vm249, %v248, %v246
    %s251 = scalar_lea.vmem [#allocation0], 83
    %v252 = vld [vmem:[%s251] sm:$0x40]
    %vm253 = vcmask 1046534
    %v254 = vsel %vm253, %v252, %v250
    %s255 = scalar_lea.vmem [#allocation0], 114
    %v256 = vld [vmem:[%s255] sm:$0x80]
    %vm257 = vcmask 1047559
    %v258 = vsel %vm257, %v256, %v254
    %259 = vrot.lane.b32.xlu0 %v258, 72
    %v260 = vpop.permute.xlu0 %259
    %vm261 = vcmask 654912
    %262 = vst.msk [vmem:[#allocation2] sm:$0xf] %vm261, %v260
    %s263 = scalar_lea.vmem [#allocation2], 4
    %264 = vst.msk [vmem:[%s263] sm:$0xf0] %vm261, %v260
    %s265 = scalar_lea.vmem [#allocation0], 8
    %v266 = vld [vmem:[%s265] sm:$0x1]
    %s267 = scalar_lea.vmem [#allocation0], 39
    %v268 = vld [vmem:[%s267] sm:$0x2]
    %vm269 = vcmask 1041409
    %v270 = vsel %vm269, %v268, %v266
    %s271 = scalar_lea.vmem [#allocation0], 70
    %v272 = vld [vmem:[%s271] sm:$0x4]
    %vm273 = vcmask 1042434
    %v274 = vsel %vm273, %v272, %v270
    %s275 = scalar_lea.vmem [#allocation0], 344
    %s276 = smov 24
    %v277 = vld [vmem:[%s275] ss:$-80 sm:%s276]
    %vm278 = vcmask 1044483
    %v279 = vsel %vm278, %v277, %v274
    %s280 = scalar_lea.vmem [#allocation0], 51
    %v281 = vld [vmem:[%s280] sm:$0x20]
    %vm282 = vcmask 1045509
    %v283 = vsel %vm282, %v281, %v279
    %s284 = scalar_lea.vmem [#allocation0], 82
    %v285 = vld [vmem:[%s284] sm:$0x40]
    %vm286 = vcmask 1046534
    %v287 = vsel %vm286, %v285, %v283
    %s288 = scalar_lea.vmem [#allocation0], 113
    %v289 = vld [vmem:[%s288] sm:$0x80]
    %vm290 = vcmask 1047559
    %v291 = vsel %vm290, %v289, %v287
    %292 = vrot.lane.b32.xlu0 %v291, 64
    %v293 = vpop.permute.xlu0 %292
    %vm294 = vcmask 589312
    %295 = vst.msk [vmem:[#allocation2] sm:$0xf] %vm294, %v293
    %s296 = scalar_lea.vmem [#allocation2], 4
    %297 = vst.msk [vmem:[%s296] sm:$0xf0] %vm294, %v293
    %s298 = scalar_lea.vmem [#allocation0], 7
    %v299 = vld [vmem:[%s298] sm:$0x1]
    %s300 = scalar_lea.vmem [#allocation0], 38
    %v301 = vld [vmem:[%s300] sm:$0x2]
    %vm302 = vcmask 1041409
    %v303 = vsel %vm302, %v301, %v299
    %s304 = scalar_lea.vmem [#allocation0], 69
    %v305 = vld [vmem:[%s304] sm:$0x4]
    %vm306 = vcmask 1042434
    %v307 = vsel %vm306, %v305, %v303
    %s308 = scalar_lea.vmem [#allocation0], 343
    %s309 = smov 24
    %v310 = vld [vmem:[%s308] ss:$-80 sm:%s309]
    %vm311 = vcmask 1044483
    %v312 = vsel %vm311, %v310, %v307
    %s313 = scalar_lea.vmem [#allocation0], 50
    %v314 = vld [vmem:[%s313] sm:$0x20]
    %vm315 = vcmask 1045509
    %v316 = vsel %vm315, %v314, %v312
    %s317 = scalar_lea.vmem [#allocation0], 81
    %v318 = vld [vmem:[%s317] sm:$0x40]
    %vm319 = vcmask 1046534
    %v320 = vsel %vm319, %v318, %v316
    %s321 = scalar_lea.vmem [#allocation0], 112
    %v322 = vld [vmem:[%s321] sm:$0x80]
    %vm323 = vcmask 1047559
    %v324 = vsel %vm323, %v322, %v320
    %325 = vrot.lane.b32.xlu0 %v324, 56
    %v326 = vpop.permute.xlu0 %325
    %vm327 = vcmask 523712
    %328 = vst.msk [vmem:[#allocation2] sm:$0xf] %vm327, %v326
    %s329 = scalar_lea.vmem [#allocation2], 4
    %330 = vst.msk [vmem:[%s329] sm:$0xf0] %vm327, %v326
    %s331 = scalar_lea.vmem [#allocation0], 6
    %v332 = vld [vmem:[%s331] sm:$0x1]
    %s333 = scalar_lea.vmem [#allocation0], 37
    %v334 = vld [vmem:[%s333] sm:$0x2]
    %vm335 = vcmask 1041409
    %v336 = vsel %vm335, %v334, %v332
    %s337 = scalar_lea.vmem [#allocation0], 68
    %v338 = vld [vmem:[%s337] sm:$0x4]
    %vm339 = vcmask 1042434
    %v340 = vsel %vm339, %v338, %v336
    %s341 = scalar_lea.vmem [#allocation0], 342
    %s342 = smov 24
    %v343 = vld [vmem:[%s341] ss:$-80 sm:%s342]
    %vm344 = vcmask 1044483
    %v345 = vsel %vm344, %v343, %v340
    %s346 = scalar_lea.vmem [#allocation0], 49
    %v347 = vld [vmem:[%s346] sm:$0x20]
    %vm348 = vcmask 1045509
    %v349 = vsel %vm348, %v347, %v345
    %s350 = scalar_lea.vmem [#allocation0], 80
    %v351 = vld [vmem:[%s350] sm:$0x40]
    %vm352 = vcmask 1046534
    %v353 = vsel %vm352, %v351, %v349
    %s354 = scalar_lea.vmem [#allocation0], 111
    %v355 = vld [vmem:[%s354] sm:$0x80]
    %vm356 = vcmask 1047559
    %v357 = vsel %vm356, %v355, %v353
    %358 = vrot.lane.b32.xlu0 %v357, 48
    %v359 = vpop.permute.xlu0 %358
    %vm360 = vcmask 458112
    %361 = vst.msk [vmem:[#allocation2] sm:$0xf] %vm360, %v359
    %s362 = scalar_lea.vmem [#allocation2], 4
    %363 = vst.msk [vmem:[%s362] sm:$0xf0] %vm360, %v359
    %s364 = scalar_lea.vmem [#allocation0], 5
    %v365 = vld [vmem:[%s364] sm:$0x1]
    %s366 = scalar_lea.vmem [#allocation0], 36
    %v367 = vld [vmem:[%s366] sm:$0x2]
    %vm368 = vcmask 1041409
    %v369 = vsel %vm368, %v367, %v365
    %s370 = scalar_lea.vmem [#allocation0], 67
    %v371 = vld [vmem:[%s370] sm:$0x4]
    %vm372 = vcmask 1042434
    %v373 = vsel %vm372, %v371, %v369
    %s374 = scalar_lea.vmem [#allocation0], 341
    %s375 = smov 24
    %v376 = vld [vmem:[%s374] ss:$-80 sm:%s375]
    %vm377 = vcmask 1044483
    %v378 = vsel %vm377, %v376, %v373
    %s379 = scalar_lea.vmem [#allocation0], 48
    %v380 = vld [vmem:[%s379] sm:$0x20]
    %vm381 = vcmask 1045509
    %v382 = vsel %vm381, %v380, %v378
    %s383 = scalar_lea.vmem [#allocation0], 79
    %v384 = vld [vmem:[%s383] sm:$0x40]
    %vm385 = vcmask 1046534
    %v386 = vsel %vm385, %v384, %v382
    %s387 = scalar_lea.vmem [#allocation0], 110
    %v388 = vld [vmem:[%s387] sm:$0x80]
    %vm389 = vcmask 1047559
    %v390 = vsel %vm389, %v388, %v386
    %391 = vrot.lane.b32.xlu0 %v390, 40
    %v392 = vpop.permute.xlu0 %391
    %vm393 = vcmask 392512
    %394 = vst.msk [vmem:[#allocation2] sm:$0xf] %vm393, %v392
    %s395 = scalar_lea.vmem [#allocation2], 4
    %396 = vst.msk [vmem:[%s395] sm:$0xf0] %vm393, %v392
    %s397 = scalar_lea.vmem [#allocation0], 4
    %v398 = vld [vmem:[%s397] sm:$0x1]
    %s399 = scalar_lea.vmem [#allocation0], 35
    %v400 = vld [vmem:[%s399] sm:$0x2]
    %vm401 = vcmask 1041409
    %v402 = vsel %vm401, %v400, %v398
    %s403 = scalar_lea.vmem [#allocation0], 66
    %v404 = vld [vmem:[%s403] sm:$0x4]
    %vm405 = vcmask 1042434
    %v406 = vsel %vm405, %v404, %v402
    %s407 = scalar_lea.vmem [#allocation0], 340
    %s408 = smov 24
    %v409 = vld [vmem:[%s407] ss:$-80 sm:%s408]
    %vm410 = vcmask 1044483
    %v411 = vsel %vm410, %v409, %v406
    %s412 = scalar_lea.vmem [#allocation0], 47
    %v413 = vld [vmem:[%s412] sm:$0x20]
    %vm414 = vcmask 1045509
    %v415 = vsel %vm414, %v413, %v411
    %s416 = scalar_lea.vmem [#allocation0], 78
    %v417 = vld [vmem:[%s416] sm:$0x40]
    %vm418 = vcmask 1046534
    %v419 = vsel %vm418, %v417, %v415
    %s420 = scalar_lea.vmem [#allocation0], 109
    %v421 = vld [vmem:[%s420] sm:$0x80]
    %vm422 = vcmask 1047559
    %v423 = vsel %vm422, %v421, %v419
    %424 = vrot.lane.b32.xlu0 %v423, 32
    %v425 = vpop.permute.xlu0 %424
    %vm426 = vcmask 326912
    %427 = vst.msk [vmem:[#allocation2] sm:$0xf] %vm426, %v425
    %s428 = scalar_lea.vmem [#allocation2], 4
    %429 = vst.msk [vmem:[%s428] sm:$0xf0] %vm426, %v425
    %s430 = scalar_lea.vmem [#allocation0], 3
    %v431 = vld [vmem:[%s430] sm:$0x1]
    %s432 = scalar_lea.vmem [#allocation0], 34
    %v433 = vld [vmem:[%s432] sm:$0x2]
    %vm434 = vcmask 1041409
    %v435 = vsel %vm434, %v433, %v431
    %s436 = scalar_lea.vmem [#allocation0], 65
    %v437 = vld [vmem:[%s436] sm:$0x4]
    %vm438 = vcmask 1042434
    %v439 = vsel %vm438, %v437, %v435
    %s440 = scalar_lea.vmem [#allocation0], 339
    %s441 = smov 24
    %v442 = vld [vmem:[%s440] ss:$-80 sm:%s441]
    %vm443 = vcmask 1044483
    %v444 = vsel %vm443, %v442, %v439
    %s445 = scalar_lea.vmem [#allocation0], 46
    %v446 = vld [vmem:[%s445] sm:$0x20]
    %vm447 = vcmask 1045509
    %v448 = vsel %vm447, %v446, %v444
    %s449 = scalar_lea.vmem [#allocation0], 77
    %v450 = vld [vmem:[%s449] sm:$0x40]
    %vm451 = vcmask 1046534
    %v452 = vsel %vm451, %v450, %v448
    %s453 = scalar_lea.vmem [#allocation0], 108
    %v454 = vld [vmem:[%s453] sm:$0x80]
    %vm455 = vcmask 1047559
    %v456 = vsel %vm455, %v454, %v452
    %457 = vrot.lane.b32.xlu0 %v456, 24
    %v458 = vpop.permute.xlu0 %457
    %vm459 = vcmask 261312
    %460 = vst.msk [vmem:[#allocation2] sm:$0xf] %vm459, %v458
    %s461 = scalar_lea.vmem [#allocation2], 4
    %462 = vst.msk [vmem:[%s461] sm:$0xf0] %vm459, %v458
    %s463 = scalar_lea.vmem [#allocation0], 2
    %v464 = vld [vmem:[%s463] sm:$0x1]
    %s465 = scalar_lea.vmem [#allocation0], 33
    %v466 = vld [vmem:[%s465] sm:$0x2]
    %vm467 = vcmask 1041409
    %v468 = vsel %vm467, %v466, %v464
    %s469 = scalar_lea.vmem [#allocation0], 64
    %v470 = vld [vmem:[%s469] sm:$0x4]
    %vm471 = vcmask 1042434
    %v472 = vsel %vm471, %v470, %v468
    %s473 = scalar_lea.vmem [#allocation0], 338
    %s474 = smov 24
    %v475 = vld [vmem:[%s473] ss:$-80 sm:%s474]
    %vm476 = vcmask 1044483
    %v477 = vsel %vm476, %v475, %v472
    %s478 = scalar_lea.vmem [#allocation0], 45
    %v479 = vld [vmem:[%s478] sm:$0x20]
    %vm480 = vcmask 1045509
    %v481 = vsel %vm480, %v479, %v477
    %s482 = scalar_lea.vmem [#allocation0], 76
    %v483 = vld [vmem:[%s482] sm:$0x40]
    %vm484 = vcmask 1046534
    %v485 = vsel %vm484, %v483, %v481
    %s486 = scalar_lea.vmem [#allocation0], 107
    %v487 = vld [vmem:[%s486] sm:$0x80]
    %vm488 = vcmask 1047559
    %v489 = vsel %vm488, %v487, %v485
    %490 = vrot.lane.b32.xlu0 %v489, 16
    %v491 = vpop.permute.xlu0 %490
    %vm492 = vcmask 195712
    %493 = vst.msk [vmem:[#allocation2] sm:$0xf] %vm492, %v491
    %s494 = scalar_lea.vmem [#allocation2], 4
    %495 = vst.msk [vmem:[%s494] sm:$0xf0] %vm492, %v491
    %s496 = scalar_lea.vmem [#allocation0], 1
    %v497 = vld [vmem:[%s496] sm:$0x1]
    %s498 = scalar_lea.vmem [#allocation0], 32
    %v499 = vld [vmem:[%s498] sm:$0x2]
    %vm500 = vcmask 1041409
    %v501 = vsel %vm500, %v499, %v497
    %s502 = scalar_lea.vmem [#allocation0], 63
    %v503 = vld [vmem:[%s502] sm:$0x4]
    %vm504 = vcmask 1042434
    %v505 = vsel %vm504, %v503, %v501
    %s506 = scalar_lea.vmem [#allocation0], 337
    %s507 = smov 24
    %v508 = vld [vmem:[%s506] ss:$-80 sm:%s507]
    %vm509 = vcmask 1044483
    %v510 = vsel %vm509, %v508, %v505
    %s511 = scalar_lea.vmem [#allocation0], 44
    %v512 = vld [vmem:[%s511] sm:$0x20]
    %vm513 = vcmask 1045509
    %v514 = vsel %vm513, %v512, %v510
    %s515 = scalar_lea.vmem [#allocation0], 75
    %v516 = vld [vmem:[%s515] sm:$0x40]
    %vm517 = vcmask 1046534
    %v518 = vsel %vm517, %v516, %v514
    %s519 = scalar_lea.vmem [#allocation0], 106
    %v520 = vld [vmem:[%s519] sm:$0x80]
    %vm521 = vcmask 1047559
    %v522 = vsel %vm521, %v520, %v518
    %523 = vrot.lane.b32.xlu0 %v522, 8
    %v524 = vpop.permute.xlu0 %523
    %vm525 = vcmask 130112
    %526 = vst.msk [vmem:[#allocation2] sm:$0xf] %vm525, %v524
    %s527 = scalar_lea.vmem [#allocation2], 4
    %528 = vst.msk [vmem:[%s527] sm:$0xf0] %vm525, %v524
    %s530 = sshll.u32 1, 4
    %s531 = ssub.s32 %s530, 1
    %v533 = vld [vmem:[#allocation2] sm:%s531]
    %s534 = sshll.u32 1, 4
    %s535 = ssub.s32 %s534, 1
    %536 = vst [vmem:[%s1] sm:%s535] %v533
    %s537 = scalar_lea.vmem [#allocation2], 8
    %v538 = vld [vmem:[%s537] sm:%s531]
    %s539 = sshll.u32 1, 4
    %s540 = ssub.s32 %s539, 1
    %s541 = scalar_lea.vmem %s1, 4
    %542 = vst [vmem:[%s541] sm:%s540] %v538
    %543 = vsyncpa [#allocation1], 1

// kernel: squeeze.5
$region0: #{squeeze.5}
  %s0 = inlined_call_operand.vmem [shape: f32[1,4,4,8,8], index: 0, kind: input, shape index: {}]
  %s1 = inlined_call_operand.vmem [shape: f32[4,256], index: 1, kind: output, shape index: {}]
  $region1: #{squeeze.5} parent=0
    #allocation0 [shape = 'u8[8192]{0}', space=vmem, size = 0x2000, scoped, tag = 'scoped mem for output reshape']
    %s2 = smov 3
    %v3 = vld [vmem:[%s0] ss:$16 sm:%s2]
    %s4 = smov 12
    %v5 = vld [vmem:[%s0] ss:$16 sm:%s4]
    %vm6 = vcmask 1043458
    %v7 = vsel %vm6, %v5, %v3
    %s8 = smov 48
    %v9 = vld [vmem:[%s0] ss:$16 sm:%s8]
    %vm10 = vcmask 1045508
    %v11 = vsel %vm10, %v9, %v7
    %s12 = smov 192
    %v13 = vld [vmem:[%s0] ss:$16 sm:%s12]
    %vm14 = vcmask 1047558
    %v15 = vsel %vm14, %v13, %v11
    %vm16 = vcmask 64512
    %17 = vst.msk [vmem:[#allocation0] ss:$8 sm:$0x3] %vm16, %v15
    %s18 = scalar_lea.vmem [#allocation0], 4294967281
    %19 = vst.msk [vmem:[%s18] ss:$8 sm:$0xc] %vm16, %v15
    %s20 = scalar_lea.vmem [#allocation0], 4294967266
    %21 = vst.msk [vmem:[%s20] ss:$8 sm:$0x30] %vm16, %v15
    %s22 = scalar_lea.vmem [#allocation0], 4294967251
    %23 = vst.msk [vmem:[%s22] ss:$8 sm:$0xc0] %vm16, %v15
    %s24 = scalar_lea.vmem %s0, 15
    %v25 = vld [vmem:[%s24] sm:$0x1]
    %s26 = scalar_lea.vmem %s0, 46
    %v27 = vld [vmem:[%s26] sm:$0x2]
    %vm28 = vcmask 1041409
    %v29 = vsel %vm28, %v27, %v25
    %s30 = scalar_lea.vmem %s0, 77
    %v31 = vld [vmem:[%s30] sm:$0x4]
    %vm32 = vcmask 1042434
    %v33 = vsel %vm32, %v31, %v29
    %s34 = scalar_lea.vmem %s0, 351
    %s35 = smov 24
    %v36 = vld [vmem:[%s34] ss:$-80 sm:%s35]
    %vm37 = vcmask 1044483
    %v38 = vsel %vm37, %v36, %v33
    %s39 = scalar_lea.vmem %s0, 58
    %v40 = vld [vmem:[%s39] sm:$0x20]
    %vm41 = vcmask 1045509
    %v42 = vsel %vm41, %v40, %v38
    %s43 = scalar_lea.vmem %s0, 89
    %v44 = vld [vmem:[%s43] sm:$0x40]
    %vm45 = vcmask 1046534
    %v46 = vsel %vm45, %v44, %v42
    %s47 = scalar_lea.vmem %s0, 120
    %v48 = vld [vmem:[%s47] sm:$0x80]
    %vm49 = vcmask 1047559
    %v50 = vsel %vm49, %v48, %v46
    %51 = vrot.lane.b32.xlu0 %v50, 120
    %v52 = vpop.permute.xlu0 %51
    %vm53 = vcmask 1048512
    %54 = vst.msk [vmem:[#allocation0] sm:$0xf] %vm53, %v52
    %s55 = scalar_lea.vmem [#allocation0], 4
    %56 = vst.msk [vmem:[%s55] sm:$0xf0] %vm53, %v52
    %s57 = scalar_lea.vmem %s0, 14
    %v58 = vld [vmem:[%s57] sm:$0x1]
    %s59 = scalar_lea.vmem %s0, 45
    %v60 = vld [vmem:[%s59] sm:$0x2]
    %vm61 = vcmask 1041409
    %v62 = vsel %vm61, %v60, %v58
    %s63 = scalar_lea.vmem %s0, 76
    %v64 = vld [vmem:[%s63] sm:$0x4]
    %vm65 = vcmask 1042434
    %v66 = vsel %vm65, %v64, %v62
    %s67 = scalar_lea.vmem %s0, 350
    %s68 = smov 24
    %v69 = vld [vmem:[%s67] ss:$-80 sm:%s68]
    %vm70 = vcmask 1044483
    %v71 = vsel %vm70, %v69, %v66
    %s72 = scalar_lea.vmem %s0, 57
    %v73 = vld [vmem:[%s72] sm:$0x20]
    %vm74 = vcmask 1045509
    %v75 = vsel %vm74, %v73, %v71
    %s76 = scalar_lea.vmem %s0, 88
    %v77 = vld [vmem:[%s76] sm:$0x40]
    %vm78 = vcmask 1046534
    %v79 = vsel %vm78, %v77, %v75
    %s80 = scalar_lea.vmem %s0, 119
    %v81 = vld [vmem:[%s80] sm:$0x80]
    %vm82 = vcmask 1047559
    %v83 = vsel %vm82, %v81, %v79
    %84 = vrot.lane.b32.xlu0 %v83, 112
    %v85 = vpop.permute.xlu0 %84
    %vm86 = vcmask 982912
    %87 = vst.msk [vmem:[#allocation0] sm:$0xf] %vm86, %v85
    %s88 = scalar_lea.vmem [#allocation0], 4
    %89 = vst.msk [vmem:[%s88] sm:$0xf0] %vm86, %v85
    %s90 = scalar_lea.vmem %s0, 13
    %v91 = vld [vmem:[%s90] sm:$0x1]
    %s92 = scalar_lea.vmem %s0, 44
    %v93 = vld [vmem:[%s92] sm:$0x2]
    %vm94 = vcmask 1041409
    %v95 = vsel %vm94, %v93, %v91
    %s96 = scalar_lea.vmem %s0, 75
    %v97 = vld [vmem:[%s96] sm:$0x4]
    %vm98 = vcmask 1042434
    %v99 = vsel %vm98, %v97, %v95
    %s100 = scalar_lea.vmem %s0, 349
    %s101 = smov 24
    %v102 = vld [vmem:[%s100] ss:$-80 sm:%s101]
    %vm103 = vcmask 1044483
    %v104 = vsel %vm103, %v102, %v99
    %s105 = scalar_lea.vmem %s0, 56
    %v106 = vld [vmem:[%s105] sm:$0x20]
    %vm107 = vcmask 1045509
    %v108 = vsel %vm107, %v106, %v104
    %s109 = scalar_lea.vmem %s0, 87
    %v110 = vld [vmem:[%s109] sm:$0x40]
    %vm111 = vcmask 1046534
    %v112 = vsel %vm111, %v110, %v108
    %s113 = scalar_lea.vmem %s0, 118
    %v114 = vld [vmem:[%s113] sm:$0x80]
    %vm115 = vcmask 1047559
    %v116 = vsel %vm115, %v114, %v112
    %117 = vrot.lane.b32.xlu0 %v116, 104
    %v118 = vpop.permute.xlu0 %117
    %vm119 = vcmask 917312
    %120 = vst.msk [vmem:[#allocation0] sm:$0xf] %vm119, %v118
    %s121 = scalar_lea.vmem [#allocation0], 4
    %122 = vst.msk [vmem:[%s121] sm:$0xf0] %vm119, %v118
    %s123 = scalar_lea.vmem %s0, 12
    %v124 = vld [vmem:[%s123] sm:$0x1]
    %s125 = scalar_lea.vmem %s0, 43
    %v126 = vld [vmem:[%s125] sm:$0x2]
    %vm127 = vcmask 1041409
    %v128 = vsel %vm127, %v126, %v124
    %s129 = scalar_lea.vmem %s0, 74
    %v130 = vld [vmem:[%s129] sm:$0x4]
    %vm131 = vcmask 1042434
    %v132 = vsel %vm131, %v130, %v128
    %s133 = scalar_lea.vmem %s0, 348
    %s134 = smov 24
    %v135 = vld [vmem:[%s133] ss:$-80 sm:%s134]
    %vm136 = vcmask 1044483
    %v137 = vsel %vm136, %v135, %v132
    %s138 = scalar_lea.vmem %s0, 55
    %v139 = vld [vmem:[%s138] sm:$0x20]
    %vm140 = vcmask 1045509
    %v141 = vsel %vm140, %v139, %v137
    %s142 = scalar_lea.vmem %s0, 86
    %v143 = vld [vmem:[%s142] sm:$0x40]
    %vm144 = vcmask 1046534
    %v145 = vsel %vm144, %v143, %v141
    %s146 = scalar_lea.vmem %s0, 117
    %v147 = vld [vmem:[%s146] sm:$0x80]
    %vm148 = vcmask 1047559
    %v149 = vsel %vm148, %v147, %v145
    %150 = vrot.lane.b32.xlu0 %v149, 96
    %v151 = vpop.permute.xlu0 %150
    %vm152 = vcmask 851712
    %153 = vst.msk [vmem:[#allocation0] sm:$0xf] %vm152, %v151
    %s154 = scalar_lea.vmem [#allocation0], 4
    %155 = vst.msk [vmem:[%s154] sm:$0xf0] %vm152, %v151
    %s156 = scalar_lea.vmem %s0, 11
    %v157 = vld [vmem:[%s156] sm:$0x1]
    %s158 = scalar_lea.vmem %s0, 42
    %v159 = vld [vmem:[%s158] sm:$0x2]
    %vm160 = vcmask 1041409
    %v161 = vsel %vm160, %v159, %v157
    %s162 = scalar_lea.vmem %s0, 73
    %v163 = vld [vmem:[%s162] sm:$0x4]
    %vm164 = vcmask 1042434
    %v165 = vsel %vm164, %v163, %v161
    %s166 = scalar_lea.vmem %s0, 347
    %s167 = smov 24
    %v168 = vld [vmem:[%s166] ss:$-80 sm:%s167]
    %vm169 = vcmask 1044483
    %v170 = vsel %vm169, %v168, %v165
    %s171 = scalar_lea.vmem %s0, 54
    %v172 = vld [vmem:[%s171] sm:$0x20]
    %vm173 = vcmask 1045509
    %v174 = vsel %vm173, %v172, %v170
    %s175 = scalar_lea.vmem %s0, 85
    %v176 = vld [vmem:[%s175] sm:$0x40]
    %vm177 = vcmask 1046534
    %v178 = vsel %vm177, %v176, %v174
    %s179 = scalar_lea.vmem %s0, 116
    %v180 = vld [vmem:[%s179] sm:$0x80]
    %vm181 = vcmask 1047559
    %v182 = vsel %vm181, %v180, %v178
    %183 = vrot.lane.b32.xlu0 %v182, 88
    %v184 = vpop.permute.xlu0 %183
    %vm185 = vcmask 786112
    %186 = vst.msk [vmem:[#allocation0] sm:$0xf] %vm185, %v184
    %s187 = scalar_lea.vmem [#allocation0], 4
    %188 = vst.msk [vmem:[%s187] sm:$0xf0] %vm185, %v184
    %s189 = scalar_lea.vmem %s0, 10
    %v190 = vld [vmem:[%s189] sm:$0x1]
    %s191 = scalar_lea.vmem %s0, 41
    %v192 = vld [vmem:[%s191] sm:$0x2]
    %vm193 = vcmask 1041409
    %v194 = vsel %vm193, %v192, %v190
    %s195 = scalar_lea.vmem %s0, 72
    %v196 = vld [vmem:[%s195] sm:$0x4]
    %vm197 = vcmask 1042434
    %v198 = vsel %vm197, %v196, %v194
    %s199 = scalar_lea.vmem %s0, 346
    %s200 = smov 24
    %v201 = vld [vmem:[%s199] ss:$-80 sm:%s200]
    %vm202 = vcmask 1044483
    %v203 = vsel %vm202, %v201, %v198
    %s204 = scalar_lea.vmem %s0, 53
    %v205 = vld [vmem:[%s204] sm:$0x20]
    %vm206 = vcmask 1045509
    %v207 = vsel %vm206, %v205, %v203
    %s208 = scalar_lea.vmem %s0, 84
    %v209 = vld [vmem:[%s208] sm:$0x40]
    %vm210 = vcmask 1046534
    %v211 = vsel %vm210, %v209, %v207
    %s212 = scalar_lea.vmem %s0, 115
    %v213 = vld [vmem:[%s212] sm:$0x80]
    %vm214 = vcmask 1047559
    %v215 = vsel %vm214, %v213, %v211
    %216 = vrot.lane.b32.xlu0 %v215, 80
    %v217 = vpop.permute.xlu0 %216
    %vm218 = vcmask 720512
    %219 = vst.msk [vmem:[#allocation0] sm:$0xf] %vm218, %v217
    %s220 = scalar_lea.vmem [#allocation0], 4
    %221 = vst.msk [vmem:[%s220] sm:$0xf0] %vm218, %v217
    %s222 = scalar_lea.vmem %s0, 9
    %v223 = vld [vmem:[%s222] sm:$0x1]
    %s224 = scalar_lea.vmem %s0, 40
    %v225 = vld [vmem:[%s224] sm:$0x2]
    %vm226 = vcmask 1041409
    %v227 = vsel %vm226, %v225, %v223
    %s228 = scalar_lea.vmem %s0, 71
    %v229 = vld [vmem:[%s228] sm:$0x4]
    %vm230 = vcmask 1042434
    %v231 = vsel %vm230, %v229, %v227
    %s232 = scalar_lea.vmem %s0, 345
    %s233 = smov 24
    %v234 = vld [vmem:[%s232] ss:$-80 sm:%s233]
    %vm235 = vcmask 1044483
    %v236 = vsel %vm235, %v234, %v231
    %s237 = scalar_lea.vmem %s0, 52
    %v238 = vld [vmem:[%s237] sm:$0x20]
    %vm239 = vcmask 1045509
    %v240 = vsel %vm239, %v238, %v236
    %s241 = scalar_lea.vmem %s0, 83
    %v242 = vld [vmem:[%s241] sm:$0x40]
    %vm243 = vcmask 1046534
    %v244 = vsel %vm243, %v242, %v240
    %s245 = scalar_lea.vmem %s0, 114
    %v246 = vld [vmem:[%s245] sm:$0x80]
    %vm247 = vcmask 1047559
    %v248 = vsel %vm247, %v246, %v244
    %249 = vrot.lane.b32.xlu0 %v248, 72
    %v250 = vpop.permute.xlu0 %249
    %vm251 = vcmask 654912
    %252 = vst.msk [vmem:[#allocation0] sm:$0xf] %vm251, %v250
    %s253 = scalar_lea.vmem [#allocation0], 4
    %254 = vst.msk [vmem:[%s253] sm:$0xf0] %vm251, %v250
    %s255 = scalar_lea.vmem %s0, 8
    %v256 = vld [vmem:[%s255] sm:$0x1]
    %s257 = scalar_lea.vmem %s0, 39
    %v258 = vld [vmem:[%s257] sm:$0x2]
    %vm259 = vcmask 1041409
    %v260 = vsel %vm259, %v258, %v256
    %s261 = scalar_lea.vmem %s0, 70
    %v262 = vld [vmem:[%s261] sm:$0x4]
    %vm263 = vcmask 1042434
    %v264 = vsel %vm263, %v262, %v260
    %s265 = scalar_lea.vmem %s0, 344
    %s266 = smov 24
    %v267 = vld [vmem:[%s265] ss:$-80 sm:%s266]
    %vm268 = vcmask 1044483
    %v269 = vsel %vm268, %v267, %v264
    %s270 = scalar_lea.vmem %s0, 51
    %v271 = vld [vmem:[%s270] sm:$0x20]
    %vm272 = vcmask 1045509
    %v273 = vsel %vm272, %v271, %v269
    %s274 = scalar_lea.vmem %s0, 82
    %v275 = vld [vmem:[%s274] sm:$0x40]
    %vm276 = vcmask 1046534
    %v277 = vsel %vm276, %v275, %v273
    %s278 = scalar_lea.vmem %s0, 113
    %v279 = vld [vmem:[%s278] sm:$0x80]
    %vm280 = vcmask 1047559
    %v281 = vsel %vm280, %v279, %v277
    %282 = vrot.lane.b32.xlu0 %v281, 64
    %v283 = vpop.permute.xlu0 %282
    %vm284 = vcmask 589312
    %285 = vst.msk [vmem:[#allocation0] sm:$0xf] %vm284, %v283
    %s286 = scalar_lea.vmem [#allocation0], 4
    %287 = vst.msk [vmem:[%s286] sm:$0xf0] %vm284, %v283
    %s288 = scalar_lea.vmem %s0, 7
    %v289 = vld [vmem:[%s288] sm:$0x1]
    %s290 = scalar_lea.vmem %s0, 38
    %v291 = vld [vmem:[%s290] sm:$0x2]
    %vm292 = vcmask 1041409
    %v293 = vsel %vm292, %v291, %v289
    %s294 = scalar_lea.vmem %s0, 69
    %v295 = vld [vmem:[%s294] sm:$0x4]
    %vm296 = vcmask 1042434
    %v297 = vsel %vm296, %v295, %v293
    %s298 = scalar_lea.vmem %s0, 343
    %s299 = smov 24
    %v300 = vld [vmem:[%s298] ss:$-80 sm:%s299]
    %vm301 = vcmask 1044483
    %v302 = vsel %vm301, %v300, %v297
    %s303 = scalar_lea.vmem %s0, 50
    %v304 = vld [vmem:[%s303] sm:$0x20]
    %vm305 = vcmask 1045509
    %v306 = vsel %vm305, %v304, %v302
    %s307 = scalar_lea.vmem %s0, 81
    %v308 = vld [vmem:[%s307] sm:$0x40]
    %vm309 = vcmask 1046534
    %v310 = vsel %vm309, %v308, %v306
    %s311 = scalar_lea.vmem %s0, 112
    %v312 = vld [vmem:[%s311] sm:$0x80]
    %vm313 = vcmask 1047559
    %v314 = vsel %vm313, %v312, %v310
    %315 = vrot.lane.b32.xlu0 %v314, 56
    %v316 = vpop.permute.xlu0 %315
    %vm317 = vcmask 523712
    %318 = vst.msk [vmem:[#allocation0] sm:$0xf] %vm317, %v316
    %s319 = scalar_lea.vmem [#allocation0], 4
    %320 = vst.msk [vmem:[%s319] sm:$0xf0] %vm317, %v316
    %s321 = scalar_lea.vmem %s0, 6
    %v322 = vld [vmem:[%s321] sm:$0x1]
    %s323 = scalar_lea.vmem %s0, 37
    %v324 = vld [vmem:[%s323] sm:$0x2]
    %vm325 = vcmask 1041409
    %v326 = vsel %vm325, %v324, %v322
    %s327 = scalar_lea.vmem %s0, 68
    %v328 = vld [vmem:[%s327] sm:$0x4]
    %vm329 = vcmask 1042434
    %v330 = vsel %vm329, %v328, %v326
    %s331 = scalar_lea.vmem %s0, 342
    %s332 = smov 24
    %v333 = vld [vmem:[%s331] ss:$-80 sm:%s332]
    %vm334 = vcmask 1044483
    %v335 = vsel %vm334, %v333, %v330
    %s336 = scalar_lea.vmem %s0, 49
    %v337 = vld [vmem:[%s336] sm:$0x20]
    %vm338 = vcmask 1045509
    %v339 = vsel %vm338, %v337, %v335
    %s340 = scalar_lea.vmem %s0, 80
    %v341 = vld [vmem:[%s340] sm:$0x40]
    %vm342 = vcmask 1046534
    %v343 = vsel %vm342, %v341, %v339
    %s344 = scalar_lea.vmem %s0, 111
    %v345 = vld [vmem:[%s344] sm:$0x80]
    %vm346 = vcmask 1047559
    %v347 = vsel %vm346, %v345, %v343
    %348 = vrot.lane.b32.xlu0 %v347, 48
    %v349 = vpop.permute.xlu0 %348
    %vm350 = vcmask 458112
    %351 = vst.msk [vmem:[#allocation0] sm:$0xf] %vm350, %v349
    %s352 = scalar_lea.vmem [#allocation0], 4
    %353 = vst.msk [vmem:[%s352] sm:$0xf0] %vm350, %v349
    %s354 = scalar_lea.vmem %s0, 5
    %v355 = vld [vmem:[%s354] sm:$0x1]
    %s356 = scalar_lea.vmem %s0, 36
    %v357 = vld [vmem:[%s356] sm:$0x2]
    %vm358 = vcmask 1041409
    %v359 = vsel %vm358, %v357, %v355
    %s360 = scalar_lea.vmem %s0, 67
    %v361 = vld [vmem:[%s360] sm:$0x4]
    %vm362 = vcmask 1042434
    %v363 = vsel %vm362, %v361, %v359
    %s364 = scalar_lea.vmem %s0, 341
    %s365 = smov 24
    %v366 = vld [vmem:[%s364] ss:$-80 sm:%s365]
    %vm367 = vcmask 1044483
    %v368 = vsel %vm367, %v366, %v363
    %s369 = scalar_lea.vmem %s0, 48
    %v370 = vld [vmem:[%s369] sm:$0x20]
    %vm371 = vcmask 1045509
    %v372 = vsel %vm371, %v370, %v368
    %s373 = scalar_lea.vmem %s0, 79
    %v374 = vld [vmem:[%s373] sm:$0x40]
    %vm375 = vcmask 1046534
    %v376 = vsel %vm375, %v374, %v372
    %s377 = scalar_lea.vmem %s0, 110
    %v378 = vld [vmem:[%s377] sm:$0x80]
    %vm379 = vcmask 1047559
    %v380 = vsel %vm379, %v378, %v376
    %381 = vrot.lane.b32.xlu0 %v380, 40
    %v382 = vpop.permute.xlu0 %381
    %vm383 = vcmask 392512
    %384 = vst.msk [vmem:[#allocation0] sm:$0xf] %vm383, %v382
    %s385 = scalar_lea.vmem [#allocation0], 4
    %386 = vst.msk [vmem:[%s385] sm:$0xf0] %vm383, %v382
    %s387 = scalar_lea.vmem %s0, 4
    %v388 = vld [vmem:[%s387] sm:$0x1]
    %s389 = scalar_lea.vmem %s0, 35
    %v390 = vld [vmem:[%s389] sm:$0x2]
    %vm391 = vcmask 1041409
    %v392 = vsel %vm391, %v390, %v388
    %s393 = scalar_lea.vmem %s0, 66
    %v394 = vld [vmem:[%s393] sm:$0x4]
    %vm395 = vcmask 1042434
    %v396 = vsel %vm395, %v394, %v392
    %s397 = scalar_lea.vmem %s0, 340
    %s398 = smov 24
    %v399 = vld [vmem:[%s397] ss:$-80 sm:%s398]
    %vm400 = vcmask 1044483
    %v401 = vsel %vm400, %v399, %v396
    %s402 = scalar_lea.vmem %s0, 47
    %v403 = vld [vmem:[%s402] sm:$0x20]
    %vm404 = vcmask 1045509
    %v405 = vsel %vm404, %v403, %v401
    %s406 = scalar_lea.vmem %s0, 78
    %v407 = vld [vmem:[%s406] sm:$0x40]
    %vm408 = vcmask 1046534
    %v409 = vsel %vm408, %v407, %v405
    %s410 = scalar_lea.vmem %s0, 109
    %v411 = vld [vmem:[%s410] sm:$0x80]
    %vm412 = vcmask 1047559
    %v413 = vsel %vm412, %v411, %v409
    %414 = vrot.lane.b32.xlu0 %v413, 32
    %v415 = vpop.permute.xlu0 %414
    %vm416 = vcmask 326912
    %417 = vst.msk [vmem:[#allocation0] sm:$0xf] %vm416, %v415
    %s418 = scalar_lea.vmem [#allocation0], 4
    %419 = vst.msk [vmem:[%s418] sm:$0xf0] %vm416, %v415
    %s420 = scalar_lea.vmem %s0, 3
    %v421 = vld [vmem:[%s420] sm:$0x1]
    %s422 = scalar_lea.vmem %s0, 34
    %v423 = vld [vmem:[%s422] sm:$0x2]
    %vm424 = vcmask 1041409
    %v425 = vsel %vm424, %v423, %v421
    %s426 = scalar_lea.vmem %s0, 65
    %v427 = vld [vmem:[%s426] sm:$0x4]
    %vm428 = vcmask 1042434
    %v429 = vsel %vm428, %v427, %v425
    %s430 = scalar_lea.vmem %s0, 339
    %s431 = smov 24
    %v432 = vld [vmem:[%s430] ss:$-80 sm:%s431]
    %vm433 = vcmask 1044483
    %v434 = vsel %vm433, %v432, %v429
    %s435 = scalar_lea.vmem %s0, 46
    %v436 = vld [vmem:[%s435] sm:$0x20]
    %vm437 = vcmask 1045509
    %v438 = vsel %vm437, %v436, %v434
    %s439 = scalar_lea.vmem %s0, 77
    %v440 = vld [vmem:[%s439] sm:$0x40]
    %vm441 = vcmask 1046534
    %v442 = vsel %vm441, %v440, %v438
    %s443 = scalar_lea.vmem %s0, 108
    %v444 = vld [vmem:[%s443] sm:$0x80]
    %vm445 = vcmask 1047559
    %v446 = vsel %vm445, %v444, %v442
    %447 = vrot.lane.b32.xlu0 %v446, 24
    %v448 = vpop.permute.xlu0 %447
    %vm449 = vcmask 261312
    %450 = vst.msk [vmem:[#allocation0] sm:$0xf] %vm449, %v448
    %s451 = scalar_lea.vmem [#allocation0], 4
    %452 = vst.msk [vmem:[%s451] sm:$0xf0] %vm449, %v448
    %s453 = scalar_lea.vmem %s0, 2
    %v454 = vld [vmem:[%s453] sm:$0x1]
    %s455 = scalar_lea.vmem %s0, 33
    %v456 = vld [vmem:[%s455] sm:$0x2]
    %vm457 = vcmask 1041409
    %v458 = vsel %vm457, %v456, %v454
    %s459 = scalar_lea.vmem %s0, 64
    %v460 = vld [vmem:[%s459] sm:$0x4]
    %vm461 = vcmask 1042434
    %v462 = vsel %vm461, %v460, %v458
    %s463 = scalar_lea.vmem %s0, 338
    %s464 = smov 24
    %v465 = vld [vmem:[%s463] ss:$-80 sm:%s464]
    %vm466 = vcmask 1044483
    %v467 = vsel %vm466, %v465, %v462
    %s468 = scalar_lea.vmem %s0, 45
    %v469 = vld [vmem:[%s468] sm:$0x20]
    %vm470 = vcmask 1045509
    %v471 = vsel %vm470, %v469, %v467
    %s472 = scalar_lea.vmem %s0, 76
    %v473 = vld [vmem:[%s472] sm:$0x40]
    %vm474 = vcmask 1046534
    %v475 = vsel %vm474, %v473, %v471
    %s476 = scalar_lea.vmem %s0, 107
    %v477 = vld [vmem:[%s476] sm:$0x80]
    %vm478 = vcmask 1047559
    %v479 = vsel %vm478, %v477, %v475
    %480 = vrot.lane.b32.xlu0 %v479, 16
    %v481 = vpop.permute.xlu0 %480
    %vm482 = vcmask 195712
    %483 = vst.msk [vmem:[#allocation0] sm:$0xf] %vm482, %v481
    %s484 = scalar_lea.vmem [#allocation0], 4
    %485 = vst.msk [vmem:[%s484] sm:$0xf0] %vm482, %v481
    %s486 = scalar_lea.vmem %s0, 1
    %v487 = vld [vmem:[%s486] sm:$0x1]
    %s488 = scalar_lea.vmem %s0, 32
    %v489 = vld [vmem:[%s488] sm:$0x2]
    %vm490 = vcmask 1041409
    %v491 = vsel %vm490, %v489, %v487
    %s492 = scalar_lea.vmem %s0, 63
    %v493 = vld [vmem:[%s492] sm:$0x4]
    %vm494 = vcmask 1042434
    %v495 = vsel %vm494, %v493, %v491
    %s496 = scalar_lea.vmem %s0, 337
    %s497 = smov 24
    %v498 = vld [vmem:[%s496] ss:$-80 sm:%s497]
    %vm499 = vcmask 1044483
    %v500 = vsel %vm499, %v498, %v495
    %s501 = scalar_lea.vmem %s0, 44
    %v502 = vld [vmem:[%s501] sm:$0x20]
    %vm503 = vcmask 1045509
    %v504 = vsel %vm503, %v502, %v500
    %s505 = scalar_lea.vmem %s0, 75
    %v506 = vld [vmem:[%s505] sm:$0x40]
    %vm507 = vcmask 1046534
    %v508 = vsel %vm507, %v506, %v504
    %s509 = scalar_lea.vmem %s0, 106
    %v510 = vld [vmem:[%s509] sm:$0x80]
    %vm511 = vcmask 1047559
    %v512 = vsel %vm511, %v510, %v508
    %513 = vrot.lane.b32.xlu0 %v512, 8
    %v514 = vpop.permute.xlu0 %513
    %vm515 = vcmask 130112
    %516 = vst.msk [vmem:[#allocation0] sm:$0xf] %vm515, %v514
    %s517 = scalar_lea.vmem [#allocation0], 4
    %518 = vst.msk [vmem:[%s517] sm:$0xf0] %vm515, %v514
    %s520 = sshll.u32 1, 4
    %s521 = ssub.s32 %s520, 1
    %v523 = vld [vmem:[#allocation0] sm:%s521]
    %s524 = sshll.u32 1, 4
    %s525 = ssub.s32 %s524, 1
    %526 = vst [vmem:[%s1] sm:%s525] %v523
    %s527 = scalar_lea.vmem [#allocation0], 8
    %v528 = vld [vmem:[%s527] sm:%s521]
    %s529 = sshll.u32 1, 4
    %s530 = ssub.s32 %s529, 1
    %s531 = scalar_lea.vmem %s1, 4
    %532 = vst [vmem:[%s531] sm:%s530] %v528

// kernel: crfrnn_forward.1
$region0: #{crfrnn_forward.1}
  #allocation0 [shape = 'u32[]', space=smem, size = 0x4, offset = 0x4, fixed_abs, tag = 'smem constant byte address 0x4 - core index']
  #allocation1 [shape = 'u32[144,128]{1,0:T(1,128)}', space=vmem, size = 0x12000, scoped, tag = 'internal scratch']
  #allocation2 [shape = 'bf16[512,256]{1,0:T(8,128)(2,1)}', space=vmem, size = 0x40000, scoped, tag = 'scratch operand']
  %s0 = inlined_call_operand.vmem [shape: f32[256,8], index: 0, kind: input, shape index: {}]
  %s1 = inlined_call_operand.vmem [shape: f32[256,8], index: 1, kind: input, shape index: {}]
  %s2 = inlined_call_operand.vmem [shape: f32[256,8], index: 2, kind: input, shape index: {}]
  %s3 = inlined_call_operand.vmem [shape: f32[256,8], index: 3, kind: input, shape index: {}]
  %s4 = inlined_call_operand.vmem [shape: f32[8,256], index: 4, kind: input, shape index: {}]
  %s5 = inlined_call_operand.vmem [shape: f32[8,256], index: 5, kind: input, shape index: {}]
  %s6 = inlined_call_operand.vmem [shape: f32[8,8], index: 6, kind: input, shape index: {}]
  %s7 = inlined_call_operand.vmem [shape: f32[8,8], index: 7, kind: input, shape index: {}]
  %s8 = inlined_call_operand.vmem [shape: f32[8,256], index: 8, kind: output, shape index: {}]
  %s9 = sld [smem:[#allocation0]]
  $region42: #{crfrnn_forward.1} parent=0
    _
  %s11 = ssub.s32 1, %s9
  %s12 = scalar_select 0, %s11, %s9
  // Predicated region
  $region2: #{crfrnn_forward.1} parent=0 // pred_check
    _
  $region3: #{crfrnn_forward.1} parent=0 // pred_check_branch
    %14 = sbr.rel (0) target = $region5
  $region4: #{crfrnn_forward.1} parent=0 // pred_region
    _
  $region5: #{crfrnn_forward.1} parent=0 // pred_fallthru
    _
  // Predicated region
  $region6: #{crfrnn_forward.1} parent=0 // pred_check
    _
  $region7: #{crfrnn_forward.1} parent=0 // pred_check_branch
    %16 = sbr.rel (0) target = $region9
  $region8: #{crfrnn_forward.1} parent=0 // pred_region
    _
  $region9: #{crfrnn_forward.1} parent=0 // pred_fallthru
    _
  // Predicated region
  $region10: #{crfrnn_forward.1} parent=0 // pred_check
    _
  $region11: #{crfrnn_forward.1} parent=0 // pred_check_branch
    %18 = sbr.rel (0) target = $region13
  $region12: #{crfrnn_forward.1} parent=0 // pred_region
    _
  $region13: #{crfrnn_forward.1} parent=0 // pred_fallthru
    _
  // Predicated region
  $region14: #{crfrnn_forward.1} parent=0 // pred_check
    _
  $region15: #{crfrnn_forward.1} parent=0 // pred_check_branch
    %20 = sbr.rel (0) target = $region17
  $region16: #{crfrnn_forward.1} parent=0 // pred_region
    _
  $region17: #{crfrnn_forward.1} parent=0 // pred_fallthru
    _
  // Predicated region
  $region18: #{crfrnn_forward.1} parent=0 // pred_check
    _
  $region19: #{crfrnn_forward.1} parent=0 // pred_check_branch
    %22 = sbr.rel (0) target = $region21
  $region20: #{crfrnn_forward.1} parent=0 // pred_region
    _
  $region21: #{crfrnn_forward.1} parent=0 // pred_fallthru
    _
  // Predicated region
  $region22: #{crfrnn_forward.1} parent=0 // pred_check
    _
  $region23: #{crfrnn_forward.1} parent=0 // pred_check_branch
    %24 = sbr.rel (0) target = $region25
  $region24: #{crfrnn_forward.1} parent=0 // pred_region
    _
  $region25: #{crfrnn_forward.1} parent=0 // pred_fallthru
    _
  // Predicated region
  $region26: #{crfrnn_forward.1} parent=0 // pred_check
    _
  $region27: #{crfrnn_forward.1} parent=0 // pred_check_branch
    %26 = sbr.rel (0) target = $region29
  $region28: #{crfrnn_forward.1} parent=0 // pred_region
    _
  $region29: #{crfrnn_forward.1} parent=0 // pred_fallthru
    _
  // Predicated region
  $region30: #{crfrnn_forward.1} parent=0 // pred_check
    _
  $region31: #{crfrnn_forward.1} parent=0 // pred_check_branch
    %28 = sbr.rel (0) target = $region33
  $region32: #{crfrnn_forward.1} parent=0 // pred_region
    _
  $region33: #{crfrnn_forward.1} parent=0 // pred_fallthru
    _
  %v29 = vld [vmem:[%s1] sm:$0xff]
  %v30 = vld [vmem:[%s1 + $0x8] sm:$0xff]
  %v31 = vld [vmem:[%s1 + $0x10] sm:$0xff]
  %v32 = vld [vmem:[%s1 + $0x18] sm:$0xff]
  %v33 = vld [vmem:[%s1 + $0x20] sm:$0xff]
  %v34 = vld [vmem:[%s1 + $0x28] sm:$0xff]
  %v35 = vld [vmem:[%s1 + $0x30] sm:$0xff]
  %v36 = vld [vmem:[%s1 + $0x38] sm:$0xff]
  %v37 = vld [vmem:[%s1 + $0x40] sm:$0xff]
  %v38 = vld [vmem:[%s1 + $0x48] sm:$0xff]
  %v39 = vld [vmem:[%s1 + $0x50] sm:$0xff]
  %v40 = vld [vmem:[%s1 + $0x58] sm:$0xff]
  %v41 = vld [vmem:[%s1 + $0x60] sm:$0xff]
  %v42 = vld [vmem:[%s1 + $0x68] sm:$0xff]
  %v43 = vld [vmem:[%s1 + $0x70] sm:$0xff]
  %v44 = vld [vmem:[%s1 + $0x78] sm:$0xff]
  %v45 = vld [vmem:[%s1 + $0x80] sm:$0xff]
  %v46 = vld [vmem:[%s1 + $0x88] sm:$0xff]
  %v47 = vld [vmem:[%s1 + $0x90] sm:$0xff]
  %v48 = vld [vmem:[%s1 + $0x98] sm:$0xff]
  %v49 = vld [vmem:[%s1 + $0xa0] sm:$0xff]
  %v50 = vld [vmem:[%s1 + $0xa8] sm:$0xff]
  %v51 = vld [vmem:[%s1 + $0xb0] sm:$0xff]
  %v52 = vld [vmem:[%s1 + $0xb8] sm:$0xff]
  %v53 = vld [vmem:[%s1 + $0xc0] sm:$0xff]
  %v54 = vld [vmem:[%s1 + $0xc8] sm:$0xff]
  %v55 = vld [vmem:[%s1 + $0xd0] sm:$0xff]
  %v56 = vld [vmem:[%s1 + $0xd8] sm:$0xff]
  %v57 = vld [vmem:[%s1 + $0xe0] sm:$0xff]
  %v58 = vld [vmem:[%s1 + $0xe8] sm:$0xff]
  %v59 = vld [vmem:[%s1 + $0xf0] sm:$0xff]
  %v60 = vld [vmem:[%s1 + $0xf8] sm:$0xff]
  %v61 = vld [vmem:[%s0] sm:$0xff]
  %v62 = vld [vmem:[%s0 + $0x8] sm:$0xff]
  %v63 = vld [vmem:[%s0 + $0x10] sm:$0xff]
  %v64 = vld [vmem:[%s0 + $0x18] sm:$0xff]
  %v65 = vld [vmem:[%s0 + $0x20] sm:$0xff]
  %v66 = vld [vmem:[%s0 + $0x28] sm:$0xff]
  %v67 = vld [vmem:[%s0 + $0x30] sm:$0xff]
  %v68 = vld [vmem:[%s0 + $0x38] sm:$0xff]
  %v69 = vld [vmem:[%s0 + $0x40] sm:$0xff]
  %v70 = vld [vmem:[%s0 + $0x48] sm:$0xff]
  %v71 = vld [vmem:[%s0 + $0x50] sm:$0xff]
  %v72 = vld [vmem:[%s0 + $0x58] sm:$0xff]
  %v73 = vld [vmem:[%s0 + $0x60] sm:$0xff]
  %v74 = vld [vmem:[%s0 + $0x68] sm:$0xff]
  %v75 = vld [vmem:[%s0 + $0x70] sm:$0xff]
  %v76 = vld [vmem:[%s0 + $0x78] sm:$0xff]
  %v77 = vld [vmem:[%s0 + $0x80] sm:$0xff]
  %v78 = vld [vmem:[%s0 + $0x88] sm:$0xff]
  %v79 = vld [vmem:[%s0 + $0x90] sm:$0xff]
  %v80 = vld [vmem:[%s0 + $0x98] sm:$0xff]
  %v81 = vld [vmem:[%s0 + $0xa0] sm:$0xff]
  %v82 = vld [vmem:[%s0 + $0xa8] sm:$0xff]
  %v83 = vld [vmem:[%s0 + $0xb0] sm:$0xff]
  %v84 = vld [vmem:[%s0 + $0xb8] sm:$0xff]
  %v85 = vld [vmem:[%s0 + $0xc0] sm:$0xff]
  %v86 = vld [vmem:[%s0 + $0xc8] sm:$0xff]
  %v87 = vld [vmem:[%s0 + $0xd0] sm:$0xff]
  %v88 = vld [vmem:[%s0 + $0xd8] sm:$0xff]
  %v89 = vld [vmem:[%s0 + $0xe0] sm:$0xff]
  %v90 = vld [vmem:[%s0 + $0xe8] sm:$0xff]
  %v91 = vld [vmem:[%s0 + $0xf0] sm:$0xff]
  %v92 = vld [vmem:[%s0 + $0xf8] sm:$0xff]
  %vm93 = vcmask 64512
  %v95 = vsel %vm93, %v61, 0
  %v98 = vsel %vm93, %v62, 0
  %v101 = vsel %vm93, %v63, 0
  %v104 = vsel %vm93, %v64, 0
  %v107 = vsel %vm93, %v65, 0
  %v110 = vsel %vm93, %v66, 0
  %v113 = vsel %vm93, %v67, 0
  %v116 = vsel %vm93, %v68, 0
  %v119 = vsel %vm93, %v69, 0
  %v122 = vsel %vm93, %v70, 0
  %v125 = vsel %vm93, %v71, 0
  %v128 = vsel %vm93, %v72, 0
  %v131 = vsel %vm93, %v73, 0
  %v134 = vsel %vm93, %v74, 0
  %v137 = vsel %vm93, %v75, 0
  %v140 = vsel %vm93, %v76, 0
  %v143 = vsel %vm93, %v77, 0
  %v146 = vsel %vm93, %v78, 0
  %v149 = vsel %vm93, %v79, 0
  %v152 = vsel %vm93, %v80, 0
  %v155 = vsel %vm93, %v81, 0
  %v158 = vsel %vm93, %v82, 0
  %v161 = vsel %vm93, %v83, 0
  %v164 = vsel %vm93, %v84, 0
  %v167 = vsel %vm93, %v85, 0
  %v170 = vsel %vm93, %v86, 0
  %v173 = vsel %vm93, %v87, 0
  %v176 = vsel %vm93, %v88, 0
  %v179 = vsel %vm93, %v89, 0
  %v182 = vsel %vm93, %v90, 0
  %v185 = vsel %vm93, %v91, 0
  %v188 = vsel %vm93, %v92, 0
  %v191 = vsel %vm93, %v29, 0
  %v194 = vsel %vm93, %v30, 0
  %v197 = vsel %vm93, %v31, 0
  %v200 = vsel %vm93, %v32, 0
  %v203 = vsel %vm93, %v33, 0
  %v206 = vsel %vm93, %v34, 0
  %v209 = vsel %vm93, %v35, 0
  %v212 = vsel %vm93, %v36, 0
  %v215 = vsel %vm93, %v37, 0
  %v218 = vsel %vm93, %v38, 0
  %v221 = vsel %vm93, %v39, 0
  %v224 = vsel %vm93, %v40, 0
  %v227 = vsel %vm93, %v41, 0
  %v230 = vsel %vm93, %v42, 0
  %v233 = vsel %vm93, %v43, 0
  %v236 = vsel %vm93, %v44, 0
  %v239 = vsel %vm93, %v45, 0
  %v242 = vsel %vm93, %v46, 0
  %v245 = vsel %vm93, %v47, 0
  %v248 = vsel %vm93, %v48, 0
  %v251 = vsel %vm93, %v49, 0
  %v254 = vsel %vm93, %v50, 0
  %v257 = vsel %vm93, %v51, 0
  %v260 = vsel %vm93, %v52, 0
  %v263 = vsel %vm93, %v53, 0
  %v266 = vsel %vm93, %v54, 0
  %v269 = vsel %vm93, %v55, 0
  %v272 = vsel %vm93, %v56, 0
  %v275 = vsel %vm93, %v57, 0
  %v278 = vsel %vm93, %v58, 0
  %v281 = vsel %vm93, %v59, 0
  %v284 = vsel %vm93, %v60, 0
  %286 = vmatprep.subr.mxu0 0.0
  %287 = vmatpush1.xpose.msra.mxu0 %v236
  %288 = vmatprep.subr.mxu0 0.0
  %289 = vmatpush1.xpose.msra.mxu0 %v233
  %290 = vmatprep.subr.mxu0 0.0
  %291 = vmatpush1.xpose.msra.mxu0 %v230
  %292 = vmatprep.subr.mxu0 0.0
  %293 = vmatpush1.xpose.msra.mxu0 %v227
  %294 = vmatprep.subr.mxu0 0.0
  %295 = vmatpush1.xpose.msra.mxu0 %v224
  %296 = vmatprep.subr.mxu0 0.0
  %297 = vmatpush1.xpose.msra.mxu0 %v221
  %298 = vmatprep.subr.mxu0 0.0
  %299 = vmatpush1.xpose.msra.mxu0 %v218
  %300 = vmatprep.subr.mxu0 0.0
  %301 = vmatpush1.xpose.msra.mxu0 %v215
  %302 = vmatprep.subr.mxu0 0.0
  %303 = vmatpush1.xpose.msra.mxu0 %v212
  %304 = vmatprep.subr.mxu0 0.0
  %305 = vmatpush1.xpose.msra.mxu0 %v209
  %306 = vmatprep.subr.mxu0 0.0
  %307 = vmatpush1.xpose.msra.mxu0 %v206
  %308 = vmatprep.subr.mxu0 0.0
  %309 = vmatpush1.xpose.msra.mxu0 %v203
  %310 = vmatprep.subr.mxu0 0.0
  %311 = vmatpush1.xpose.msra.mxu0 %v200
  %312 = vmatprep.subr.mxu0 0.0
  %313 = vmatpush1.xpose.msra.mxu0 %v197
  %314 = vmatprep.subr.mxu0 0.0
  %315 = vmatpush1.xpose.msra.mxu0 %v194
  %316 = vmatprep.subr.mxu0 0.0
  %317 = vmatpush1.xpose.msra.mxu0 %v191
  %318 = vmatprep.subr.mxu0 0.0
  %319 = vmatpush2.xpose.msra.mxu0 %v284
  %320 = vmatprep.subr.mxu0 0.0
  %321 = vmatpush2.xpose.msra.mxu0 %v281
  %322 = vmatprep.subr.mxu0 0.0
  %323 = vmatpush2.xpose.msra.mxu0 %v278
  %324 = vmatprep.subr.mxu0 0.0
  %325 = vmatpush2.xpose.msra.mxu0 %v275
  %326 = vmatprep.subr.mxu0 0.0
  %327 = vmatpush2.xpose.msra.mxu0 %v272
  %328 = vmatprep.subr.mxu0 0.0
  %329 = vmatpush2.xpose.msra.mxu0 %v269
  %330 = vmatprep.subr.mxu0 0.0
  %331 = vmatpush2.xpose.msra.mxu0 %v266
  %332 = vmatprep.subr.mxu0 0.0
  %333 = vmatpush2.xpose.msra.mxu0 %v263
  %334 = vmatprep.subr.mxu0 0.0
  %335 = vmatpush2.xpose.msra.mxu0 %v260
  %336 = vmatprep.subr.mxu0 0.0
  %337 = vmatpush2.xpose.msra.mxu0 %v257
  %338 = vmatprep.subr.mxu0 0.0
  %339 = vmatpush2.xpose.msra.mxu0 %v254
  %340 = vmatprep.subr.mxu0 0.0
  %341 = vmatpush2.xpose.msra.mxu0 %v251
  %342 = vmatprep.subr.mxu0 0.0
  %343 = vmatpush2.xpose.msra.mxu0 %v248
  %344 = vmatprep.subr.mxu0 0.0
  %345 = vmatpush2.xpose.msra.mxu0 %v245
  %346 = vmatprep.subr.mxu0 0.0
  %347 = vmatpush2.xpose.msra.mxu0 %v242
  %348 = vmatprep.subr.mxu0 0.0
  %349 = vmatpush2.xpose.msra.mxu0 %v239
  %350 = vmatprep.mubr.f32.mxu0 0.0
  %351 = vmatmul.mubr.f32.gmra.mxu0 %v95
  %v352 = vpop.f32.mrf.mxu0
  %v353 = vadd.f32 0.0, %v352
  %v354 = vpop.f32.mrf.mxu0
  %v355 = vadd.f32 0.0, %v354
  %356 = vmatprep.mubr.f32.mxu0 0.0
  %357 = vmatmul.mubr.f32.gmra.mxu0 %v98
  %v358 = vpop.f32.mrf.mxu0
  %v359 = vadd.f32 0.0, %v358
  %v360 = vpop.f32.mrf.mxu0
  %v361 = vadd.f32 0.0, %v360
  %362 = vmatprep.mubr.f32.mxu0 0.0
  %363 = vmatmul.mubr.f32.gmra.mxu0 %v101
  %v364 = vpop.f32.mrf.mxu0
  %v365 = vadd.f32 0.0, %v364
  %v366 = vpop.f32.mrf.mxu0
  %v367 = vadd.f32 0.0, %v366
  %368 = vmatprep.mubr.f32.mxu0 0.0
  %369 = vmatmul.mubr.f32.gmra.mxu0 %v104
  %v370 = vpop.f32.mrf.mxu0
  %v371 = vadd.f32 0.0, %v370
  %v372 = vpop.f32.mrf.mxu0
  %v373 = vadd.f32 0.0, %v372
  %374 = vmatprep.mubr.f32.mxu0 0.0
  %375 = vmatmul.mubr.f32.gmra.mxu0 %v107
  %v376 = vpop.f32.mrf.mxu0
  %v377 = vadd.f32 0.0, %v376
  %v378 = vpop.f32.mrf.mxu0
  %v379 = vadd.f32 0.0, %v378
  %380 = vmatprep.mubr.f32.mxu0 0.0
  %381 = vmatmul.mubr.f32.gmra.mxu0 %v110
  %v382 = vpop.f32.mrf.mxu0
  %v383 = vadd.f32 0.0, %v382
  %v384 = vpop.f32.mrf.mxu0
  %v385 = vadd.f32 0.0, %v384
  %386 = vmatprep.mubr.f32.mxu0 0.0
  %387 = vmatmul.mubr.f32.gmra.mxu0 %v113
  %v388 = vpop.f32.mrf.mxu0
  %v389 = vadd.f32 0.0, %v388
  %v390 = vpop.f32.mrf.mxu0
  %v391 = vadd.f32 0.0, %v390
  %392 = vmatprep.mubr.f32.mxu0 0.0
  %393 = vmatmul.mubr.f32.gmra.mxu0 %v116
  %v394 = vpop.f32.mrf.mxu0
  %v395 = vadd.f32 0.0, %v394
  %v396 = vpop.f32.mrf.mxu0
  %v397 = vadd.f32 0.0, %v396
  %398 = vmatprep.mubr.f32.mxu0 0.0
  %399 = vmatmul.mubr.f32.gmra.mxu0 %v119
  %v400 = vpop.f32.mrf.mxu0
  %v401 = vadd.f32 0.0, %v400
  %v402 = vpop.f32.mrf.mxu0
  %v403 = vadd.f32 0.0, %v402
  %404 = vmatprep.mubr.f32.mxu0 0.0
  %405 = vmatmul.mubr.f32.gmra.mxu0 %v122
  %v406 = vpop.f32.mrf.mxu0
  %v407 = vadd.f32 0.0, %v406
  %v408 = vpop.f32.mrf.mxu0
  %v409 = vadd.f32 0.0, %v408
  %410 = vmatprep.mubr.f32.mxu0 0.0
  %411 = vmatmul.mubr.f32.gmra.mxu0 %v125
  %v412 = vpop.f32.mrf.mxu0
  %v413 = vadd.f32 0.0, %v412
  %v414 = vpop.f32.mrf.mxu0
  %v415 = vadd.f32 0.0, %v414
  %416 = vmatprep.mubr.f32.mxu0 0.0
  %417 = vmatmul.mubr.f32.gmra.mxu0 %v128
  %v418 = vpop.f32.mrf.mxu0
  %v419 = vadd.f32 0.0, %v418
  %v420 = vpop.f32.mrf.mxu0
  %v421 = vadd.f32 0.0, %v420
  %422 = vmatprep.mubr.f32.mxu0 0.0
  %423 = vmatmul.mubr.f32.gmra.mxu0 %v131
  %v424 = vpop.f32.mrf.mxu0
  %v425 = vadd.f32 0.0, %v424
  %v426 = vpop.f32.mrf.mxu0
  %v427 = vadd.f32 0.0, %v426
  %428 = vmatprep.mubr.f32.mxu0 0.0
  %429 = vmatmul.mubr.f32.gmra.mxu0 %v134
  %v430 = vpop.f32.mrf.mxu0
  %v431 = vadd.f32 0.0, %v430
  %v432 = vpop.f32.mrf.mxu0
  %v433 = vadd.f32 0.0, %v432
  %434 = vmatprep.mubr.f32.mxu0 0.0
  %435 = vmatmul.mubr.f32.gmra.mxu0 %v137
  %v436 = vpop.f32.mrf.mxu0
  %v437 = vadd.f32 0.0, %v436
  %v438 = vpop.f32.mrf.mxu0
  %v439 = vadd.f32 0.0, %v438
  %440 = vmatprep.mubr.f32.mxu0 0.0
  %441 = vmatmul.mubr.f32.gmra.mxu0 %v140
  %v442 = vpop.f32.mrf.mxu0
  %v443 = vadd.f32 0.0, %v442
  %v444 = vpop.f32.mrf.mxu0
  %v445 = vadd.f32 0.0, %v444
  %446 = vmatprep.mubr.f32.mxu0 0.0
  %447 = vmatmul.mubr.f32.gmra.mxu0 %v143
  %v448 = vpop.f32.mrf.mxu0
  %v449 = vadd.f32 0.0, %v448
  %v450 = vpop.f32.mrf.mxu0
  %v451 = vadd.f32 0.0, %v450
  %452 = vmatprep.mubr.f32.mxu0 0.0
  %453 = vmatmul.mubr.f32.gmra.mxu0 %v146
  %v454 = vpop.f32.mrf.mxu0
  %v455 = vadd.f32 0.0, %v454
  %v456 = vpop.f32.mrf.mxu0
  %v457 = vadd.f32 0.0, %v456
  %458 = vmatprep.mubr.f32.mxu0 0.0
  %459 = vmatmul.mubr.f32.gmra.mxu0 %v149
  %v460 = vpop.f32.mrf.mxu0
  %v461 = vadd.f32 0.0, %v460
  %v462 = vpop.f32.mrf.mxu0
  %v463 = vadd.f32 0.0, %v462
  %464 = vmatprep.mubr.f32.mxu0 0.0
  %465 = vmatmul.mubr.f32.gmra.mxu0 %v152
  %v466 = vpop.f32.mrf.mxu0
  %v467 = vadd.f32 0.0, %v466
  %v468 = vpop.f32.mrf.mxu0
  %v469 = vadd.f32 0.0, %v468
  %470 = vmatprep.mubr.f32.mxu0 0.0
  %471 = vmatmul.mubr.f32.gmra.mxu0 %v155
  %v472 = vpop.f32.mrf.mxu0
  %v473 = vadd.f32 0.0, %v472
  %v474 = vpop.f32.mrf.mxu0
  %v475 = vadd.f32 0.0, %v474
  %476 = vmatprep.mubr.f32.mxu0 0.0
  %477 = vmatmul.mubr.f32.gmra.mxu0 %v158
  %v478 = vpop.f32.mrf.mxu0
  %v479 = vadd.f32 0.0, %v478
  %v480 = vpop.f32.mrf.mxu0
  %v481 = vadd.f32 0.0, %v480
  %482 = vmatprep.mubr.f32.mxu0 0.0
  %483 = vmatmul.mubr.f32.gmra.mxu0 %v161
  %v484 = vpop.f32.mrf.mxu0
  %v485 = vadd.f32 0.0, %v484
  %v486 = vpop.f32.mrf.mxu0
  %v487 = vadd.f32 0.0, %v486
  %488 = vmatprep.mubr.f32.mxu0 0.0
  %489 = vmatmul.mubr.f32.gmra.mxu0 %v164
  %v490 = vpop.f32.mrf.mxu0
  %v491 = vadd.f32 0.0, %v490
  %v492 = vpop.f32.mrf.mxu0
  %v493 = vadd.f32 0.0, %v492
  %494 = vmatprep.mubr.f32.mxu0 0.0
  %495 = vmatmul.mubr.f32.gmra.mxu0 %v167
  %v496 = vpop.f32.mrf.mxu0
  %v497 = vadd.f32 0.0, %v496
  %v498 = vpop.f32.mrf.mxu0
  %v499 = vadd.f32 0.0, %v498
  %500 = vmatprep.mubr.f32.mxu0 0.0
  %501 = vmatmul.mubr.f32.gmra.mxu0 %v170
  %v502 = vpop.f32.mrf.mxu0
  %v503 = vadd.f32 0.0, %v502
  %v504 = vpop.f32.mrf.mxu0
  %v505 = vadd.f32 0.0, %v504
  %506 = vmatprep.mubr.f32.mxu0 0.0
  %507 = vmatmul.mubr.f32.gmra.mxu0 %v173
  %v508 = vpop.f32.mrf.mxu0
  %v509 = vadd.f32 0.0, %v508
  %v510 = vpop.f32.mrf.mxu0
  %v511 = vadd.f32 0.0, %v510
  %512 = vmatprep.mubr.f32.mxu0 0.0
  %513 = vmatmul.mubr.f32.gmra.mxu0 %v176
  %v514 = vpop.f32.mrf.mxu0
  %v515 = vadd.f32 0.0, %v514
  %v516 = vpop.f32.mrf.mxu0
  %v517 = vadd.f32 0.0, %v516
  %518 = vmatprep.mubr.f32.mxu0 0.0
  %519 = vmatmul.mubr.f32.gmra.mxu0 %v179
  %v520 = vpop.f32.mrf.mxu0
  %v521 = vadd.f32 0.0, %v520
  %v522 = vpop.f32.mrf.mxu0
  %v523 = vadd.f32 0.0, %v522
  %524 = vmatprep.mubr.f32.mxu0 0.0
  %525 = vmatmul.mubr.f32.gmra.mxu0 %v182
  %v526 = vpop.f32.mrf.mxu0
  %v527 = vadd.f32 0.0, %v526
  %v528 = vpop.f32.mrf.mxu0
  %v529 = vadd.f32 0.0, %v528
  %530 = vmatprep.mubr.f32.mxu0 0.0
  %531 = vmatmul.mubr.f32.gmra.mxu0 %v185
  %v532 = vpop.f32.mrf.mxu0
  %v533 = vadd.f32 0.0, %v532
  %v534 = vpop.f32.mrf.mxu0
  %v535 = vadd.f32 0.0, %v534
  %536 = vmatprep.mubr.f32.mxu0 0.0
  %537 = vmatmul.mubr.f32.gmra.mxu0 %v188
  %v538 = vpop.f32.mrf.mxu0
  %v539 = vadd.f32 0.0, %v538
  %v540 = vpop.f32.mrf.mxu0
  %v541 = vadd.f32 0.0, %v540
  %542 = vdwg.mxu0
  %v543 = vmul.f32 %v353, 1.442695
  %v544 = vpow.pop %v543
  %v545 = vmul.f32 %v355, 1.442695
  %v546 = vpow.pop %v545
  %v547 = vmul.f32 %v359, 1.442695
  %v548 = vpow.pop %v547
  %v549 = vmul.f32 %v361, 1.442695
  %v550 = vpow.pop %v549
  %v551 = vmul.f32 %v365, 1.442695
  %v552 = vpow.pop %v551
  %v553 = vmul.f32 %v367, 1.442695
  %v554 = vpow.pop %v553
  %v555 = vmul.f32 %v371, 1.442695
  %v556 = vpow.pop %v555
  %v557 = vmul.f32 %v373, 1.442695
  %v558 = vpow.pop %v557
  %v559 = vmul.f32 %v377, 1.442695
  %v560 = vpow.pop %v559
  %v561 = vmul.f32 %v379, 1.442695
  %v562 = vpow.pop %v561
  %v563 = vmul.f32 %v383, 1.442695
  %v564 = vpow.pop %v563
  %v565 = vmul.f32 %v385, 1.442695
  %v566 = vpow.pop %v565
  %v567 = vmul.f32 %v389, 1.442695
  %v568 = vpow.pop %v567
  %v569 = vmul.f32 %v391, 1.442695
  %v570 = vpow.pop %v569
  %v571 = vmul.f32 %v395, 1.442695
  %v572 = vpow.pop %v571
  %v573 = vmul.f32 %v397, 1.442695
  %v574 = vpow.pop %v573
  %v575 = vmul.f32 %v401, 1.442695
  %v576 = vpow.pop %v575
  %v577 = vmul.f32 %v403, 1.442695
  %v578 = vpow.pop %v577
  %v579 = vmul.f32 %v407, 1.442695
  %v580 = vpow.pop %v579
  %v581 = vmul.f32 %v409, 1.442695
  %v582 = vpow.pop %v581
  %v583 = vmul.f32 %v413, 1.442695
  %v584 = vpow.pop %v583
  %v585 = vmul.f32 %v415, 1.442695
  %v586 = vpow.pop %v585
  %v587 = vmul.f32 %v419, 1.442695
  %v588 = vpow.pop %v587
  %v589 = vmul.f32 %v421, 1.442695
  %v590 = vpow.pop %v589
  %v591 = vmul.f32 %v425, 1.442695
  %v592 = vpow.pop %v591
  %v593 = vmul.f32 %v427, 1.442695
  %v594 = vpow.pop %v593
  %v595 = vmul.f32 %v431, 1.442695
  %v596 = vpow.pop %v595
  %v597 = vmul.f32 %v433, 1.442695
  %v598 = vpow.pop %v597
  %v599 = vmul.f32 %v437, 1.442695
  %v600 = vpow.pop %v599
  %v601 = vmul.f32 %v439, 1.442695
  %v602 = vpow.pop %v601
  %v603 = vmul.f32 %v443, 1.442695
  %v604 = vpow.pop %v603
  %v605 = vmul.f32 %v445, 1.442695
  %v606 = vpow.pop %v605
  %v607 = vmul.f32 %v449, 1.442695
  %v608 = vpow.pop %v607
  %v609 = vmul.f32 %v451, 1.442695
  %v610 = vpow.pop %v609
  %v611 = vmul.f32 %v455, 1.442695
  %v612 = vpow.pop %v611
  %v613 = vmul.f32 %v457, 1.442695
  %v614 = vpow.pop %v613
  %v615 = vmul.f32 %v461, 1.442695
  %v616 = vpow.pop %v615
  %v617 = vmul.f32 %v463, 1.442695
  %v618 = vpow.pop %v617
  %v619 = vmul.f32 %v467, 1.442695
  %v620 = vpow.pop %v619
  %v621 = vmul.f32 %v469, 1.442695
  %v622 = vpow.pop %v621
  %v623 = vmul.f32 %v473, 1.442695
  %v624 = vpow.pop %v623
  %v625 = vmul.f32 %v475, 1.442695
  %v626 = vpow.pop %v625
  %v627 = vmul.f32 %v479, 1.442695
  %v628 = vpow.pop %v627
  %v629 = vmul.f32 %v481, 1.442695
  %v630 = vpow.pop %v629
  %v631 = vmul.f32 %v485, 1.442695
  %v632 = vpow.pop %v631
  %v633 = vmul.f32 %v487, 1.442695
  %v634 = vpow.pop %v633
  %v635 = vmul.f32 %v491, 1.442695
  %v636 = vpow.pop %v635
  %v637 = vmul.f32 %v493, 1.442695
  %v638 = vpow.pop %v637
  %v639 = vmul.f32 %v497, 1.442695
  %v640 = vpow.pop %v639
  %v641 = vmul.f32 %v499, 1.442695
  %v642 = vpow.pop %v641
  %v643 = vmul.f32 %v503, 1.442695
  %v644 = vpow.pop %v643
  %v645 = vmul.f32 %v505, 1.442695
  %v646 = vpow.pop %v645
  %v647 = vmul.f32 %v509, 1.442695
  %v648 = vpow.pop %v647
  %v649 = vmul.f32 %v511, 1.442695
  %v650 = vpow.pop %v649
  %v651 = vmul.f32 %v515, 1.442695
  %v652 = vpow.pop %v651
  %v653 = vmul.f32 %v517, 1.442695
  %v654 = vpow.pop %v653
  %v655 = vmul.f32 %v521, 1.442695
  %v656 = vpow.pop %v655
  %v657 = vmul.f32 %v523, 1.442695
  %v658 = vpow.pop %v657
  %v659 = vmul.f32 %v527, 1.442695
  %v660 = vpow.pop %v659
  %v661 = vmul.f32 %v529, 1.442695
  %v662 = vpow.pop %v661
  %v663 = vmul.f32 %v533, 1.442695
  %v664 = vpow.pop %v663
  %v665 = vmul.f32 %v535, 1.442695
  %v666 = vpow.pop %v665
  %v667 = vmul.f32 %v539, 1.442695
  %v668 = vpow.pop %v667
  %v669 = vmul.f32 %v541, 1.442695
  %v670 = vpow.pop %v669
  %v671 = vadd.f32 %v544, %v548
  %v672 = vadd.f32 %v671, %v552
  %v673 = vadd.f32 %v672, %v556
  %v674 = vadd.f32 %v673, %v560
  %v675 = vadd.f32 %v674, %v564
  %v676 = vadd.f32 %v675, %v568
  %v677 = vadd.f32 %v676, %v572
  %v678 = vadd.f32 %v677, %v576
  %v679 = vadd.f32 %v678, %v580
  %v680 = vadd.f32 %v679, %v584
  %v681 = vadd.f32 %v680, %v588
  %v682 = vadd.f32 %v681, %v592
  %v683 = vadd.f32 %v682, %v596
  %v684 = vadd.f32 %v683, %v600
  %v685 = vadd.f32 %v684, %v604
  %v686 = vadd.f32 %v685, %v608
  %v687 = vadd.f32 %v686, %v612
  %v688 = vadd.f32 %v687, %v616
  %v689 = vadd.f32 %v688, %v620
  %v690 = vadd.f32 %v689, %v624
  %v691 = vadd.f32 %v690, %v628
  %v692 = vadd.f32 %v691, %v632
  %v693 = vadd.f32 %v692, %v636
  %v694 = vadd.f32 %v693, %v640
  %v695 = vadd.f32 %v694, %v644
  %v696 = vadd.f32 %v695, %v648
  %v697 = vadd.f32 %v696, %v652
  %v698 = vadd.f32 %v697, %v656
  %v699 = vadd.f32 %v698, %v660
  %v700 = vadd.f32 %v699, %v664
  %v701 = vadd.f32 %v700, %v668
  %v702 = vrot.slane %v701, 4
  %v703 = vadd.f32 %v701, %v702
  %v704 = vrot.slane %v703, 2
  %v705 = vadd.f32 %v703, %v704
  %v706 = vrot.slane %v705, 1
  %v707 = vadd.f32 %v705, %v706
  %v708 = vadd.f32 %v546, %v550
  %v709 = vadd.f32 %v708, %v554
  %v710 = vadd.f32 %v709, %v558
  %v711 = vadd.f32 %v710, %v562
  %v712 = vadd.f32 %v711, %v566
  %v713 = vadd.f32 %v712, %v570
  %v714 = vadd.f32 %v713, %v574
  %v715 = vadd.f32 %v714, %v578
  %v716 = vadd.f32 %v715, %v582
  %v717 = vadd.f32 %v716, %v586
  %v718 = vadd.f32 %v717, %v590
  %v719 = vadd.f32 %v718, %v594
  %v720 = vadd.f32 %v719, %v598
  %v721 = vadd.f32 %v720, %v602
  %v722 = vadd.f32 %v721, %v606
  %v723 = vadd.f32 %v722, %v610
  %v724 = vadd.f32 %v723, %v614
  %v725 = vadd.f32 %v724, %v618
  %v726 = vadd.f32 %v725, %v622
  %v727 = vadd.f32 %v726, %v626
  %v728 = vadd.f32 %v727, %v630
  %v729 = vadd.f32 %v728, %v634
  %v730 = vadd.f32 %v729, %v638
  %v731 = vadd.f32 %v730, %v642
  %v732 = vadd.f32 %v731, %v646
  %v733 = vadd.f32 %v732, %v650
  %v734 = vadd.f32 %v733, %v654
  %v735 = vadd.f32 %v734, %v658
  %v736 = vadd.f32 %v735, %v662
  %v737 = vadd.f32 %v736, %v666
  %v738 = vadd.f32 %v737, %v670
  %v739 = vrot.slane %v738, 4
  %v740 = vadd.f32 %v738, %v739
  %v741 = vrot.slane %v740, 2
  %v742 = vadd.f32 %v740, %v741
  %v743 = vrot.slane %v742, 1
  %v744 = vadd.f32 %v742, %v743
  %v745 = vadd.f32 %v707, 1e-08
  %v746 = vadd.f32 %v744, 1e-08
  %v747 = vrcp.pop %v745
  %v748 = vmul.f32 1.0, %v747
  %v749 = vrcp.pop %v746
  %v750 = vmul.f32 1.0, %v749
  %v751 = vmul.f32 %v544, %v748
  %v752 = vmul.f32 %v546, %v750
  %v753 = vmul.f32 %v548, %v748
  %v754 = vmul.f32 %v550, %v750
  %v755 = vmul.f32 %v552, %v748
  %v756 = vmul.f32 %v554, %v750
  %v757 = vmul.f32 %v556, %v748
  %v758 = vmul.f32 %v558, %v750
  %v759 = vmul.f32 %v560, %v748
  %v760 = vmul.f32 %v562, %v750
  %v761 = vmul.f32 %v564, %v748
  %v762 = vmul.f32 %v566, %v750
  %v763 = vmul.f32 %v568, %v748
  %v764 = vmul.f32 %v570, %v750
  %v765 = vmul.f32 %v572, %v748
  %v766 = vmul.f32 %v574, %v750
  %v767 = vmul.f32 %v576, %v748
  %v768 = vmul.f32 %v578, %v750
  %v769 = vmul.f32 %v580, %v748
  %v770 = vmul.f32 %v582, %v750
  %v771 = vmul.f32 %v584, %v748
  %v772 = vmul.f32 %v586, %v750
  %v773 = vmul.f32 %v588, %v748
  %v774 = vmul.f32 %v590, %v750
  %v775 = vmul.f32 %v592, %v748
  %v776 = vmul.f32 %v594, %v750
  %v777 = vmul.f32 %v596, %v748
  %v778 = vmul.f32 %v598, %v750
  %v779 = vmul.f32 %v600, %v748
  %v780 = vmul.f32 %v602, %v750
  %v781 = vmul.f32 %v604, %v748
  %v782 = vmul.f32 %v606, %v750
  %v783 = vmul.f32 %v608, %v748
  %v784 = vmul.f32 %v610, %v750
  %v785 = vmul.f32 %v612, %v748
  %v786 = vmul.f32 %v614, %v750
  %v787 = vmul.f32 %v616, %v748
  %v788 = vmul.f32 %v618, %v750
  %v789 = vmul.f32 %v620, %v748
  %v790 = vmul.f32 %v622, %v750
  %v791 = vmul.f32 %v624, %v748
  %v792 = vmul.f32 %v626, %v750
  %v793 = vmul.f32 %v628, %v748
  %v794 = vmul.f32 %v630, %v750
  %v795 = vmul.f32 %v632, %v748
  %v796 = vmul.f32 %v634, %v750
  %v797 = vmul.f32 %v636, %v748
  %v798 = vmul.f32 %v638, %v750
  %v799 = vmul.f32 %v640, %v748
  %v800 = vmul.f32 %v642, %v750
  %v801 = vmul.f32 %v644, %v748
  %v802 = vmul.f32 %v646, %v750
  %v803 = vmul.f32 %v648, %v748
  %v804 = vmul.f32 %v650, %v750
  %v805 = vmul.f32 %v652, %v748
  %v806 = vmul.f32 %v654, %v750
  %v807 = vmul.f32 %v656, %v748
  %v808 = vmul.f32 %v658, %v750
  %v809 = vmul.f32 %v660, %v748
  %v810 = vmul.f32 %v662, %v750
  %v811 = vmul.f32 %v664, %v748
  %v812 = vmul.f32 %v666, %v750
  %v813 = vmul.f32 %v668, %v748
  %v814 = vmul.f32 %v670, %v750
  %v815 = vpack.c.bf16 %v753, %v751
  %v816 = vpack.c.bf16 %v754, %v752
  %v817 = vpack.c.bf16 %v757, %v755
  %v818 = vpack.c.bf16 %v758, %v756
  %v819 = vpack.c.bf16 %v761, %v759
  %v820 = vpack.c.bf16 %v762, %v760
  %v821 = vpack.c.bf16 %v765, %v763
  %v822 = vpack.c.bf16 %v766, %v764
  %v823 = vpack.c.bf16 %v769, %v767
  %v824 = vpack.c.bf16 %v770, %v768
  %v825 = vpack.c.bf16 %v773, %v771
  %v826 = vpack.c.bf16 %v774, %v772
  %v827 = vpack.c.bf16 %v777, %v775
  %v828 = vpack.c.bf16 %v778, %v776
  %v829 = vpack.c.bf16 %v781, %v779
  %v830 = vpack.c.bf16 %v782, %v780
  %v831 = vpack.c.bf16 %v785, %v783
  %v832 = vpack.c.bf16 %v786, %v784
  %v833 = vpack.c.bf16 %v789, %v787
  %v834 = vpack.c.bf16 %v790, %v788
  %v835 = vpack.c.bf16 %v793, %v791
  %v836 = vpack.c.bf16 %v794, %v792
  %v837 = vpack.c.bf16 %v797, %v795
  %v838 = vpack.c.bf16 %v798, %v796
  %v839 = vpack.c.bf16 %v801, %v799
  %v840 = vpack.c.bf16 %v802, %v800
  %v841 = vpack.c.bf16 %v805, %v803
  %v842 = vpack.c.bf16 %v806, %v804
  %v843 = vpack.c.bf16 %v809, %v807
  %v844 = vpack.c.bf16 %v810, %v808
  %v845 = vpack.c.bf16 %v813, %v811
  %v846 = vpack.c.bf16 %v814, %v812
  %v879 = vunpack.c.l.b16 %v815
  %v880 = vunpack.c.l.b16 %v816
  %v881 = vunpack.c.h.b16 %v815
  %v882 = vunpack.c.h.b16 %v816
  %v883 = vunpack.c.l.b16 %v817
  %v884 = vunpack.c.l.b16 %v818
  %v885 = vunpack.c.h.b16 %v817
  %v886 = vunpack.c.h.b16 %v818
  %v887 = vunpack.c.l.b16 %v819
  %v888 = vunpack.c.l.b16 %v820
  %v889 = vunpack.c.h.b16 %v819
  %v890 = vunpack.c.h.b16 %v820
  %v891 = vunpack.c.l.b16 %v821
  %v892 = vunpack.c.l.b16 %v822
  %v893 = vunpack.c.h.b16 %v821
  %v894 = vunpack.c.h.b16 %v822
  %v895 = vunpack.c.l.b16 %v823
  %v896 = vunpack.c.l.b16 %v824
  %v897 = vunpack.c.h.b16 %v823
  %v898 = vunpack.c.h.b16 %v824
  %v899 = vunpack.c.l.b16 %v825
  %v900 = vunpack.c.l.b16 %v826
  %v901 = vunpack.c.h.b16 %v825
  %v902 = vunpack.c.h.b16 %v826
  %v903 = vunpack.c.l.b16 %v827
  %v904 = vunpack.c.l.b16 %v828
  %v905 = vunpack.c.h.b16 %v827
  %v906 = vunpack.c.h.b16 %v828
  %v907 = vunpack.c.l.b16 %v829
  %v908 = vunpack.c.l.b16 %v830
  %v909 = vunpack.c.h.b16 %v829
  %v910 = vunpack.c.h.b16 %v830
  %v911 = vunpack.c.l.b16 %v831
  %v912 = vunpack.c.l.b16 %v832
  %v913 = vunpack.c.h.b16 %v831
  %v914 = vunpack.c.h.b16 %v832
  %v915 = vunpack.c.l.b16 %v833
  %v916 = vunpack.c.l.b16 %v834
  %v917 = vunpack.c.h.b16 %v833
  %v918 = vunpack.c.h.b16 %v834
  %v919 = vunpack.c.l.b16 %v835
  %v920 = vunpack.c.l.b16 %v836
  %v921 = vunpack.c.h.b16 %v835
  %v922 = vunpack.c.h.b16 %v836
  %v923 = vunpack.c.l.b16 %v837
  %v924 = vunpack.c.l.b16 %v838
  %v925 = vunpack.c.h.b16 %v837
  %v926 = vunpack.c.h.b16 %v838
  %v927 = vunpack.c.l.b16 %v839
  %v928 = vunpack.c.l.b16 %v840
  %v929 = vunpack.c.h.b16 %v839
  %v930 = vunpack.c.h.b16 %v840
  %v931 = vunpack.c.l.b16 %v841
  %v932 = vunpack.c.l.b16 %v842
  %v933 = vunpack.c.h.b16 %v841
  %v934 = vunpack.c.h.b16 %v842
  %v935 = vunpack.c.l.b16 %v843
  %v936 = vunpack.c.l.b16 %v844
  %v937 = vunpack.c.h.b16 %v843
  %v938 = vunpack.c.h.b16 %v844
  %v939 = vunpack.c.l.b16 %v845
  %v940 = vunpack.c.l.b16 %v846
  %v941 = vunpack.c.h.b16 %v845
  %v942 = vunpack.c.h.b16 %v846
  %v943 = vpack.c.b16 %v880, %v879
  %v944 = vpack.c.b16 %v882, %v881
  %v945 = vpack.c.b16 %v884, %v883
  %v946 = vpack.c.b16 %v886, %v885
  %v947 = vpack.c.b16 %v888, %v887
  %v948 = vpack.c.b16 %v890, %v889
  %v949 = vpack.c.b16 %v892, %v891
  %v950 = vpack.c.b16 %v894, %v893
  %v951 = vpack.c.b16 %v896, %v895
  %v952 = vpack.c.b16 %v898, %v897
  %v953 = vpack.c.b16 %v900, %v899
  %v954 = vpack.c.b16 %v902, %v901
  %v955 = vpack.c.b16 %v904, %v903
  %v956 = vpack.c.b16 %v906, %v905
  %v957 = vpack.c.b16 %v908, %v907
  %v958 = vpack.c.b16 %v910, %v909
  %v959 = vpack.c.b16 %v912, %v911
  %v960 = vpack.c.b16 %v914, %v913
  %v961 = vpack.c.b16 %v916, %v915
  %v962 = vpack.c.b16 %v918, %v917
  %v963 = vpack.c.b16 %v920, %v919
  %v964 = vpack.c.b16 %v922, %v921
  %v965 = vpack.c.b16 %v924, %v923
  %v966 = vpack.c.b16 %v926, %v925
  %v967 = vpack.c.b16 %v928, %v927
  %v968 = vpack.c.b16 %v930, %v929
  %v969 = vpack.c.b16 %v932, %v931
  %v970 = vpack.c.b16 %v934, %v933
  %v971 = vpack.c.b16 %v936, %v935
  %v972 = vpack.c.b16 %v938, %v937
  %v973 = vpack.c.b16 %v940, %v939
  %v974 = vpack.c.b16 %v942, %v941
  %1007 = vst [vmem:[#allocation2] sm:$0xff] %v943
  %1008 = vst [vmem:[#allocation2 + $0x8] sm:$0xff] %v944
  %1009 = vst [vmem:[#allocation2 + $0x10] sm:$0xff] %v945
  %1010 = vst [vmem:[#allocation2 + $0x18] sm:$0xff] %v946
  %1011 = vst [vmem:[#allocation2 + $0x20] sm:$0xff] %v947
  %1012 = vst [vmem:[#allocation2 + $0x28] sm:$0xff] %v948
  %1013 = vst [vmem:[#allocation2 + $0x30] sm:$0xff] %v949
  %1014 = vst [vmem:[#allocation2 + $0x38] sm:$0xff] %v950
  %1015 = vst [vmem:[#allocation2 + $0x40] sm:$0xff] %v951
  %1016 = vst [vmem:[#allocation2 + $0x48] sm:$0xff] %v952
  %1017 = vst [vmem:[#allocation2 + $0x50] sm:$0xff] %v953
  %1018 = vst [vmem:[#allocation2 + $0x58] sm:$0xff] %v954
  %1019 = vst [vmem:[#allocation2 + $0x60] sm:$0xff] %v955
  %1020 = vst [vmem:[#allocation2 + $0x68] sm:$0xff] %v956
  %1021 = vst [vmem:[#allocation2 + $0x70] sm:$0xff] %v957
  %1022 = vst [vmem:[#allocation2 + $0x78] sm:$0xff] %v958
  %1023 = vst [vmem:[#allocation2 + $0x80] sm:$0xff] %v959
  %1024 = vst [vmem:[#allocation2 + $0x88] sm:$0xff] %v960
  %1025 = vst [vmem:[#allocation2 + $0x90] sm:$0xff] %v961
  %1026 = vst [vmem:[#allocation2 + $0x98] sm:$0xff] %v962
  %1027 = vst [vmem:[#allocation2 + $0xa0] sm:$0xff] %v963
  %1028 = vst [vmem:[#allocation2 + $0xa8] sm:$0xff] %v964
  %1029 = vst [vmem:[#allocation2 + $0xb0] sm:$0xff] %v965
  %1030 = vst [vmem:[#allocation2 + $0xb8] sm:$0xff] %v966
  %1031 = vst [vmem:[#allocation2 + $0xc0] sm:$0xff] %v967
  %1032 = vst [vmem:[#allocation2 + $0xc8] sm:$0xff] %v968
  %1033 = vst [vmem:[#allocation2 + $0xd0] sm:$0xff] %v969
  %1034 = vst [vmem:[#allocation2 + $0xd8] sm:$0xff] %v970
  %1035 = vst [vmem:[#allocation2 + $0xe0] sm:$0xff] %v971
  %1036 = vst [vmem:[#allocation2 + $0xe8] sm:$0xff] %v972
  %1037 = vst [vmem:[#allocation2 + $0xf0] sm:$0xff] %v973
  %1038 = vst [vmem:[#allocation2 + $0xf8] sm:$0xff] %v974
  %v1039 = vld [vmem:[%s3] sm:$0xff]
  %v1040 = vld [vmem:[%s3 + $0x8] sm:$0xff]
  %v1041 = vld [vmem:[%s3 + $0x10] sm:$0xff]
  %v1042 = vld [vmem:[%s3 + $0x18] sm:$0xff]
  %v1043 = vld [vmem:[%s3 + $0x20] sm:$0xff]
  %v1044 = vld [vmem:[%s3 + $0x28] sm:$0xff]
  %v1045 = vld [vmem:[%s3 + $0x30] sm:$0xff]
  %v1046 = vld [vmem:[%s3 + $0x38] sm:$0xff]
  %v1047 = vld [vmem:[%s3 + $0x40] sm:$0xff]
  %v1048 = vld [vmem:[%s3 + $0x48] sm:$0xff]
  %v1049 = vld [vmem:[%s3 + $0x50] sm:$0xff]
  %v1050 = vld [vmem:[%s3 + $0x58] sm:$0xff]
  %v1051 = vld [vmem:[%s3 + $0x60] sm:$0xff]
  %v1052 = vld [vmem:[%s3 + $0x68] sm:$0xff]
  %v1053 = vld [vmem:[%s3 + $0x70] sm:$0xff]
  %v1054 = vld [vmem:[%s3 + $0x78] sm:$0xff]
  %v1055 = vld [vmem:[%s3 + $0x80] sm:$0xff]
  %v1056 = vld [vmem:[%s3 + $0x88] sm:$0xff]
  %v1057 = vld [vmem:[%s3 + $0x90] sm:$0xff]
  %v1058 = vld [vmem:[%s3 + $0x98] sm:$0xff]
  %v1059 = vld [vmem:[%s3 + $0xa0] sm:$0xff]
  %v1060 = vld [vmem:[%s3 + $0xa8] sm:$0xff]
  %v1061 = vld [vmem:[%s3 + $0xb0] sm:$0xff]
  %v1062 = vld [vmem:[%s3 + $0xb8] sm:$0xff]
  %v1063 = vld [vmem:[%s3 + $0xc0] sm:$0xff]
  %v1064 = vld [vmem:[%s3 + $0xc8] sm:$0xff]
  %v1065 = vld [vmem:[%s3 + $0xd0] sm:$0xff]
  %v1066 = vld [vmem:[%s3 + $0xd8] sm:$0xff]
  %v1067 = vld [vmem:[%s3 + $0xe0] sm:$0xff]
  %v1068 = vld [vmem:[%s3 + $0xe8] sm:$0xff]
  %v1069 = vld [vmem:[%s3 + $0xf0] sm:$0xff]
  %v1070 = vld [vmem:[%s3 + $0xf8] sm:$0xff]
  %v1071 = vld [vmem:[%s2] sm:$0xff]
  %v1072 = vld [vmem:[%s2 + $0x8] sm:$0xff]
  %v1073 = vld [vmem:[%s2 + $0x10] sm:$0xff]
  %v1074 = vld [vmem:[%s2 + $0x18] sm:$0xff]
  %v1075 = vld [vmem:[%s2 + $0x20] sm:$0xff]
  %v1076 = vld [vmem:[%s2 + $0x28] sm:$0xff]
  %v1077 = vld [vmem:[%s2 + $0x30] sm:$0xff]
  %v1078 = vld [vmem:[%s2 + $0x38] sm:$0xff]
  %v1079 = vld [vmem:[%s2 + $0x40] sm:$0xff]
  %v1080 = vld [vmem:[%s2 + $0x48] sm:$0xff]
  %v1081 = vld [vmem:[%s2 + $0x50] sm:$0xff]
  %v1082 = vld [vmem:[%s2 + $0x58] sm:$0xff]
  %v1083 = vld [vmem:[%s2 + $0x60] sm:$0xff]
  %v1084 = vld [vmem:[%s2 + $0x68] sm:$0xff]
  %v1085 = vld [vmem:[%s2 + $0x70] sm:$0xff]
  %v1086 = vld [vmem:[%s2 + $0x78] sm:$0xff]
  %v1087 = vld [vmem:[%s2 + $0x80] sm:$0xff]
  %v1088 = vld [vmem:[%s2 + $0x88] sm:$0xff]
  %v1089 = vld [vmem:[%s2 + $0x90] sm:$0xff]
  %v1090 = vld [vmem:[%s2 + $0x98] sm:$0xff]
  %v1091 = vld [vmem:[%s2 + $0xa0] sm:$0xff]
  %v1092 = vld [vmem:[%s2 + $0xa8] sm:$0xff]
  %v1093 = vld [vmem:[%s2 + $0xb0] sm:$0xff]
  %v1094 = vld [vmem:[%s2 + $0xb8] sm:$0xff]
  %v1095 = vld [vmem:[%s2 + $0xc0] sm:$0xff]
  %v1096 = vld [vmem:[%s2 + $0xc8] sm:$0xff]
  %v1097 = vld [vmem:[%s2 + $0xd0] sm:$0xff]
  %v1098 = vld [vmem:[%s2 + $0xd8] sm:$0xff]
  %v1099 = vld [vmem:[%s2 + $0xe0] sm:$0xff]
  %v1100 = vld [vmem:[%s2 + $0xe8] sm:$0xff]
  %v1101 = vld [vmem:[%s2 + $0xf0] sm:$0xff]
  %v1102 = vld [vmem:[%s2 + $0xf8] sm:$0xff]
  %v1104 = vsel %vm93, %v1071, 0
  %v1107 = vsel %vm93, %v1072, 0
  %v1110 = vsel %vm93, %v1073, 0
  %v1113 = vsel %vm93, %v1074, 0
  %v1116 = vsel %vm93, %v1075, 0
  %v1119 = vsel %vm93, %v1076, 0
  %v1122 = vsel %vm93, %v1077, 0
  %v1125 = vsel %vm93, %v1078, 0
  %v1128 = vsel %vm93, %v1079, 0
  %v1131 = vsel %vm93, %v1080, 0
  %v1134 = vsel %vm93, %v1081, 0
  %v1137 = vsel %vm93, %v1082, 0
  %v1140 = vsel %vm93, %v1083, 0
  %v1143 = vsel %vm93, %v1084, 0
  %v1146 = vsel %vm93, %v1085, 0
  %v1149 = vsel %vm93, %v1086, 0
  %v1152 = vsel %vm93, %v1087, 0
  %v1155 = vsel %vm93, %v1088, 0
  %v1158 = vsel %vm93, %v1089, 0
  %v1161 = vsel %vm93, %v1090, 0
  %v1164 = vsel %vm93, %v1091, 0
  %v1167 = vsel %vm93, %v1092, 0
  %v1170 = vsel %vm93, %v1093, 0
  %v1173 = vsel %vm93, %v1094, 0
  %v1176 = vsel %vm93, %v1095, 0
  %v1179 = vsel %vm93, %v1096, 0
  %v1182 = vsel %vm93, %v1097, 0
  %v1185 = vsel %vm93, %v1098, 0
  %v1188 = vsel %vm93, %v1099, 0
  %v1191 = vsel %vm93, %v1100, 0
  %v1194 = vsel %vm93, %v1101, 0
  %v1197 = vsel %vm93, %v1102, 0
  %v1200 = vsel %vm93, %v1039, 0
  %v1203 = vsel %vm93, %v1040, 0
  %v1206 = vsel %vm93, %v1041, 0
  %v1209 = vsel %vm93, %v1042, 0
  %v1212 = vsel %vm93, %v1043, 0
  %v1215 = vsel %vm93, %v1044, 0
  %v1218 = vsel %vm93, %v1045, 0
  %v1221 = vsel %vm93, %v1046, 0
  %v1224 = vsel %vm93, %v1047, 0
  %v1227 = vsel %vm93, %v1048, 0
  %v1230 = vsel %vm93, %v1049, 0
  %v1233 = vsel %vm93, %v1050, 0
  %v1236 = vsel %vm93, %v1051, 0
  %v1239 = vsel %vm93, %v1052, 0
  %v1242 = vsel %vm93, %v1053, 0
  %v1245 = vsel %vm93, %v1054, 0
  %v1248 = vsel %vm93, %v1055, 0
  %v1251 = vsel %vm93, %v1056, 0
  %v1254 = vsel %vm93, %v1057, 0
  %v1257 = vsel %vm93, %v1058, 0
  %v1260 = vsel %vm93, %v1059, 0
  %v1263 = vsel %vm93, %v1060, 0
  %v1266 = vsel %vm93, %v1061, 0
  %v1269 = vsel %vm93, %v1062, 0
  %v1272 = vsel %vm93, %v1063, 0
  %v1275 = vsel %vm93, %v1064, 0
  %v1278 = vsel %vm93, %v1065, 0
  %v1281 = vsel %vm93, %v1066, 0
  %v1284 = vsel %vm93, %v1067, 0
  %v1287 = vsel %vm93, %v1068, 0
  %v1290 = vsel %vm93, %v1069, 0
  %v1293 = vsel %vm93, %v1070, 0
  %1295 = vmatprep.subr.mxu0 0.0
  %1296 = vmatpush1.xpose.msra.mxu0 %v1245
  %1297 = vmatprep.subr.mxu0 0.0
  %1298 = vmatpush1.xpose.msra.mxu0 %v1242
  %1299 = vmatprep.subr.mxu0 0.0
  %1300 = vmatpush1.xpose.msra.mxu0 %v1239
  %1301 = vmatprep.subr.mxu0 0.0
  %1302 = vmatpush1.xpose.msra.mxu0 %v1236
  %1303 = vmatprep.subr.mxu0 0.0
  %1304 = vmatpush1.xpose.msra.mxu0 %v1233
  %1305 = vmatprep.subr.mxu0 0.0
  %1306 = vmatpush1.xpose.msra.mxu0 %v1230
  %1307 = vmatprep.subr.mxu0 0.0
  %1308 = vmatpush1.xpose.msra.mxu0 %v1227
  %1309 = vmatprep.subr.mxu0 0.0
  %1310 = vmatpush1.xpose.msra.mxu0 %v1224
  %1311 = vmatprep.subr.mxu0 0.0
  %1312 = vmatpush1.xpose.msra.mxu0 %v1221
  %1313 = vmatprep.subr.mxu0 0.0
  %1314 = vmatpush1.xpose.msra.mxu0 %v1218
  %1315 = vmatprep.subr.mxu0 0.0
  %1316 = vmatpush1.xpose.msra.mxu0 %v1215
  %1317 = vmatprep.subr.mxu0 0.0
  %1318 = vmatpush1.xpose.msra.mxu0 %v1212
  %1319 = vmatprep.subr.mxu0 0.0
  %1320 = vmatpush1.xpose.msra.mxu0 %v1209
  %1321 = vmatprep.subr.mxu0 0.0
  %1322 = vmatpush1.xpose.msra.mxu0 %v1206
  %1323 = vmatprep.subr.mxu0 0.0
  %1324 = vmatpush1.xpose.msra.mxu0 %v1203
  %1325 = vmatprep.subr.mxu0 0.0
  %1326 = vmatpush1.xpose.msra.mxu0 %v1200
  %1327 = vmatprep.subr.mxu0 0.0
  %1328 = vmatpush2.xpose.msra.mxu0 %v1293
  %1329 = vmatprep.subr.mxu0 0.0
  %1330 = vmatpush2.xpose.msra.mxu0 %v1290
  %1331 = vmatprep.subr.mxu0 0.0
  %1332 = vmatpush2.xpose.msra.mxu0 %v1287
  %1333 = vmatprep.subr.mxu0 0.0
  %1334 = vmatpush2.xpose.msra.mxu0 %v1284
  %1335 = vmatprep.subr.mxu0 0.0
  %1336 = vmatpush2.xpose.msra.mxu0 %v1281
  %1337 = vmatprep.subr.mxu0 0.0
  %1338 = vmatpush2.xpose.msra.mxu0 %v1278
  %1339 = vmatprep.subr.mxu0 0.0
  %1340 = vmatpush2.xpose.msra.mxu0 %v1275
  %1341 = vmatprep.subr.mxu0 0.0
  %1342 = vmatpush2.xpose.msra.mxu0 %v1272
  %1343 = vmatprep.subr.mxu0 0.0
  %1344 = vmatpush2.xpose.msra.mxu0 %v1269
  %1345 = vmatprep.subr.mxu0 0.0
  %1346 = vmatpush2.xpose.msra.mxu0 %v1266
  %1347 = vmatprep.subr.mxu0 0.0
  %1348 = vmatpush2.xpose.msra.mxu0 %v1263
  %1349 = vmatprep.subr.mxu0 0.0
  %1350 = vmatpush2.xpose.msra.mxu0 %v1260
  %1351 = vmatprep.subr.mxu0 0.0
  %1352 = vmatpush2.xpose.msra.mxu0 %v1257
  %1353 = vmatprep.subr.mxu0 0.0
  %1354 = vmatpush2.xpose.msra.mxu0 %v1254
  %1355 = vmatprep.subr.mxu0 0.0
  %1356 = vmatpush2.xpose.msra.mxu0 %v1251
  %1357 = vmatprep.subr.mxu0 0.0
  %1358 = vmatpush2.xpose.msra.mxu0 %v1248
  %1359 = vmatprep.mubr.f32.mxu0 0.0
  %1360 = vmatmul.mubr.f32.gmra.mxu0 %v1104
  %v1361 = vpop.f32.mrf.mxu0
  %v1362 = vadd.f32 0.0, %v1361
  %v1363 = vpop.f32.mrf.mxu0
  %v1364 = vadd.f32 0.0, %v1363
  %1365 = vmatprep.mubr.f32.mxu0 0.0
  %1366 = vmatmul.mubr.f32.gmra.mxu0 %v1107
  %v1367 = vpop.f32.mrf.mxu0
  %v1368 = vadd.f32 0.0, %v1367
  %v1369 = vpop.f32.mrf.mxu0
  %v1370 = vadd.f32 0.0, %v1369
  %1371 = vmatprep.mubr.f32.mxu0 0.0
  %1372 = vmatmul.mubr.f32.gmra.mxu0 %v1110
  %v1373 = vpop.f32.mrf.mxu0
  %v1374 = vadd.f32 0.0, %v1373
  %v1375 = vpop.f32.mrf.mxu0
  %v1376 = vadd.f32 0.0, %v1375
  %1377 = vmatprep.mubr.f32.mxu0 0.0
  %1378 = vmatmul.mubr.f32.gmra.mxu0 %v1113
  %v1379 = vpop.f32.mrf.mxu0
  %v1380 = vadd.f32 0.0, %v1379
  %v1381 = vpop.f32.mrf.mxu0
  %v1382 = vadd.f32 0.0, %v1381
  %1383 = vmatprep.mubr.f32.mxu0 0.0
  %1384 = vmatmul.mubr.f32.gmra.mxu0 %v1116
  %v1385 = vpop.f32.mrf.mxu0
  %v1386 = vadd.f32 0.0, %v1385
  %v1387 = vpop.f32.mrf.mxu0
  %v1388 = vadd.f32 0.0, %v1387
  %1389 = vmatprep.mubr.f32.mxu0 0.0
  %1390 = vmatmul.mubr.f32.gmra.mxu0 %v1119
  %v1391 = vpop.f32.mrf.mxu0
  %v1392 = vadd.f32 0.0, %v1391
  %v1393 = vpop.f32.mrf.mxu0
  %v1394 = vadd.f32 0.0, %v1393
  %1395 = vmatprep.mubr.f32.mxu0 0.0
  %1396 = vmatmul.mubr.f32.gmra.mxu0 %v1122
  %v1397 = vpop.f32.mrf.mxu0
  %v1398 = vadd.f32 0.0, %v1397
  %v1399 = vpop.f32.mrf.mxu0
  %v1400 = vadd.f32 0.0, %v1399
  %1401 = vmatprep.mubr.f32.mxu0 0.0
  %1402 = vmatmul.mubr.f32.gmra.mxu0 %v1125
  %v1403 = vpop.f32.mrf.mxu0
  %v1404 = vadd.f32 0.0, %v1403
  %v1405 = vpop.f32.mrf.mxu0
  %v1406 = vadd.f32 0.0, %v1405
  %1407 = vmatprep.mubr.f32.mxu0 0.0
  %1408 = vmatmul.mubr.f32.gmra.mxu0 %v1128
  %v1409 = vpop.f32.mrf.mxu0
  %v1410 = vadd.f32 0.0, %v1409
  %v1411 = vpop.f32.mrf.mxu0
  %v1412 = vadd.f32 0.0, %v1411
  %1413 = vmatprep.mubr.f32.mxu0 0.0
  %1414 = vmatmul.mubr.f32.gmra.mxu0 %v1131
  %v1415 = vpop.f32.mrf.mxu0
  %v1416 = vadd.f32 0.0, %v1415
  %v1417 = vpop.f32.mrf.mxu0
  %v1418 = vadd.f32 0.0, %v1417
  %1419 = vmatprep.mubr.f32.mxu0 0.0
  %1420 = vmatmul.mubr.f32.gmra.mxu0 %v1134
  %v1421 = vpop.f32.mrf.mxu0
  %v1422 = vadd.f32 0.0, %v1421
  %v1423 = vpop.f32.mrf.mxu0
  %v1424 = vadd.f32 0.0, %v1423
  %1425 = vmatprep.mubr.f32.mxu0 0.0
  %1426 = vmatmul.mubr.f32.gmra.mxu0 %v1137
  %v1427 = vpop.f32.mrf.mxu0
  %v1428 = vadd.f32 0.0, %v1427
  %v1429 = vpop.f32.mrf.mxu0
  %v1430 = vadd.f32 0.0, %v1429
  %1431 = vmatprep.mubr.f32.mxu0 0.0
  %1432 = vmatmul.mubr.f32.gmra.mxu0 %v1140
  %v1433 = vpop.f32.mrf.mxu0
  %v1434 = vadd.f32 0.0, %v1433
  %v1435 = vpop.f32.mrf.mxu0
  %v1436 = vadd.f32 0.0, %v1435
  %1437 = vmatprep.mubr.f32.mxu0 0.0
  %1438 = vmatmul.mubr.f32.gmra.mxu0 %v1143
  %v1439 = vpop.f32.mrf.mxu0
  %v1440 = vadd.f32 0.0, %v1439
  %v1441 = vpop.f32.mrf.mxu0
  %v1442 = vadd.f32 0.0, %v1441
  %1443 = vmatprep.mubr.f32.mxu0 0.0
  %1444 = vmatmul.mubr.f32.gmra.mxu0 %v1146
  %v1445 = vpop.f32.mrf.mxu0
  %v1446 = vadd.f32 0.0, %v1445
  %v1447 = vpop.f32.mrf.mxu0
  %v1448 = vadd.f32 0.0, %v1447
  %1449 = vmatprep.mubr.f32.mxu0 0.0
  %1450 = vmatmul.mubr.f32.gmra.mxu0 %v1149
  %v1451 = vpop.f32.mrf.mxu0
  %v1452 = vadd.f32 0.0, %v1451
  %v1453 = vpop.f32.mrf.mxu0
  %v1454 = vadd.f32 0.0, %v1453
  %1455 = vmatprep.mubr.f32.mxu0 0.0
  %1456 = vmatmul.mubr.f32.gmra.mxu0 %v1152
  %v1457 = vpop.f32.mrf.mxu0
  %v1458 = vadd.f32 0.0, %v1457
  %v1459 = vpop.f32.mrf.mxu0
  %v1460 = vadd.f32 0.0, %v1459
  %1461 = vmatprep.mubr.f32.mxu0 0.0
  %1462 = vmatmul.mubr.f32.gmra.mxu0 %v1155
  %v1463 = vpop.f32.mrf.mxu0
  %v1464 = vadd.f32 0.0, %v1463
  %v1465 = vpop.f32.mrf.mxu0
  %v1466 = vadd.f32 0.0, %v1465
  %1467 = vmatprep.mubr.f32.mxu0 0.0
  %1468 = vmatmul.mubr.f32.gmra.mxu0 %v1158
  %v1469 = vpop.f32.mrf.mxu0
  %v1470 = vadd.f32 0.0, %v1469
  %v1471 = vpop.f32.mrf.mxu0
  %v1472 = vadd.f32 0.0, %v1471
  %1473 = vmatprep.mubr.f32.mxu0 0.0
  %1474 = vmatmul.mubr.f32.gmra.mxu0 %v1161
  %v1475 = vpop.f32.mrf.mxu0
  %v1476 = vadd.f32 0.0, %v1475
  %v1477 = vpop.f32.mrf.mxu0
  %v1478 = vadd.f32 0.0, %v1477
  %1479 = vmatprep.mubr.f32.mxu0 0.0
  %1480 = vmatmul.mubr.f32.gmra.mxu0 %v1164
  %v1481 = vpop.f32.mrf.mxu0
  %v1482 = vadd.f32 0.0, %v1481
  %v1483 = vpop.f32.mrf.mxu0
  %v1484 = vadd.f32 0.0, %v1483
  %1485 = vmatprep.mubr.f32.mxu0 0.0
  %1486 = vmatmul.mubr.f32.gmra.mxu0 %v1167
  %v1487 = vpop.f32.mrf.mxu0
  %v1488 = vadd.f32 0.0, %v1487
  %v1489 = vpop.f32.mrf.mxu0
  %v1490 = vadd.f32 0.0, %v1489
  %1491 = vmatprep.mubr.f32.mxu0 0.0
  %1492 = vmatmul.mubr.f32.gmra.mxu0 %v1170
  %v1493 = vpop.f32.mrf.mxu0
  %v1494 = vadd.f32 0.0, %v1493
  %v1495 = vpop.f32.mrf.mxu0
  %v1496 = vadd.f32 0.0, %v1495
  %1497 = vmatprep.mubr.f32.mxu0 0.0
  %1498 = vmatmul.mubr.f32.gmra.mxu0 %v1173
  %v1499 = vpop.f32.mrf.mxu0
  %v1500 = vadd.f32 0.0, %v1499
  %v1501 = vpop.f32.mrf.mxu0
  %v1502 = vadd.f32 0.0, %v1501
  %1503 = vmatprep.mubr.f32.mxu0 0.0
  %1504 = vmatmul.mubr.f32.gmra.mxu0 %v1176
  %v1505 = vpop.f32.mrf.mxu0
  %v1506 = vadd.f32 0.0, %v1505
  %v1507 = vpop.f32.mrf.mxu0
  %v1508 = vadd.f32 0.0, %v1507
  %1509 = vmatprep.mubr.f32.mxu0 0.0
  %1510 = vmatmul.mubr.f32.gmra.mxu0 %v1179
  %v1511 = vpop.f32.mrf.mxu0
  %v1512 = vadd.f32 0.0, %v1511
  %v1513 = vpop.f32.mrf.mxu0
  %v1514 = vadd.f32 0.0, %v1513
  %1515 = vmatprep.mubr.f32.mxu0 0.0
  %1516 = vmatmul.mubr.f32.gmra.mxu0 %v1182
  %v1517 = vpop.f32.mrf.mxu0
  %v1518 = vadd.f32 0.0, %v1517
  %v1519 = vpop.f32.mrf.mxu0
  %v1520 = vadd.f32 0.0, %v1519
  %1521 = vmatprep.mubr.f32.mxu0 0.0
  %1522 = vmatmul.mubr.f32.gmra.mxu0 %v1185
  %v1523 = vpop.f32.mrf.mxu0
  %v1524 = vadd.f32 0.0, %v1523
  %v1525 = vpop.f32.mrf.mxu0
  %v1526 = vadd.f32 0.0, %v1525
  %1527 = vmatprep.mubr.f32.mxu0 0.0
  %1528 = vmatmul.mubr.f32.gmra.mxu0 %v1188
  %v1529 = vpop.f32.mrf.mxu0
  %v1530 = vadd.f32 0.0, %v1529
  %v1531 = vpop.f32.mrf.mxu0
  %v1532 = vadd.f32 0.0, %v1531
  %1533 = vmatprep.mubr.f32.mxu0 0.0
  %1534 = vmatmul.mubr.f32.gmra.mxu0 %v1191
  %v1535 = vpop.f32.mrf.mxu0
  %v1536 = vadd.f32 0.0, %v1535
  %v1537 = vpop.f32.mrf.mxu0
  %v1538 = vadd.f32 0.0, %v1537
  %1539 = vmatprep.mubr.f32.mxu0 0.0
  %1540 = vmatmul.mubr.f32.gmra.mxu0 %v1194
  %v1541 = vpop.f32.mrf.mxu0
  %v1542 = vadd.f32 0.0, %v1541
  %v1543 = vpop.f32.mrf.mxu0
  %v1544 = vadd.f32 0.0, %v1543
  %1545 = vmatprep.mubr.f32.mxu0 0.0
  %1546 = vmatmul.mubr.f32.gmra.mxu0 %v1197
  %v1547 = vpop.f32.mrf.mxu0
  %v1548 = vadd.f32 0.0, %v1547
  %v1549 = vpop.f32.mrf.mxu0
  %v1550 = vadd.f32 0.0, %v1549
  %1551 = vdwg.mxu0
  %v1552 = vmul.f32 %v1362, 1.442695
  %v1553 = vpow.pop %v1552
  %v1554 = vmul.f32 %v1364, 1.442695
  %v1555 = vpow.pop %v1554
  %v1556 = vmul.f32 %v1368, 1.442695
  %v1557 = vpow.pop %v1556
  %v1558 = vmul.f32 %v1370, 1.442695
  %v1559 = vpow.pop %v1558
  %v1560 = vmul.f32 %v1374, 1.442695
  %v1561 = vpow.pop %v1560
  %v1562 = vmul.f32 %v1376, 1.442695
  %v1563 = vpow.pop %v1562
  %v1564 = vmul.f32 %v1380, 1.442695
  %v1565 = vpow.pop %v1564
  %v1566 = vmul.f32 %v1382, 1.442695
  %v1567 = vpow.pop %v1566
  %v1568 = vmul.f32 %v1386, 1.442695
  %v1569 = vpow.pop %v1568
  %v1570 = vmul.f32 %v1388, 1.442695
  %v1571 = vpow.pop %v1570
  %v1572 = vmul.f32 %v1392, 1.442695
  %v1573 = vpow.pop %v1572
  %v1574 = vmul.f32 %v1394, 1.442695
  %v1575 = vpow.pop %v1574
  %v1576 = vmul.f32 %v1398, 1.442695
  %v1577 = vpow.pop %v1576
  %v1578 = vmul.f32 %v1400, 1.442695
  %v1579 = vpow.pop %v1578
  %v1580 = vmul.f32 %v1404, 1.442695
  %v1581 = vpow.pop %v1580
  %v1582 = vmul.f32 %v1406, 1.442695
  %v1583 = vpow.pop %v1582
  %v1584 = vmul.f32 %v1410, 1.442695
  %v1585 = vpow.pop %v1584
  %v1586 = vmul.f32 %v1412, 1.442695
  %v1587 = vpow.pop %v1586
  %v1588 = vmul.f32 %v1416, 1.442695
  %v1589 = vpow.pop %v1588
  %v1590 = vmul.f32 %v1418, 1.442695
  %v1591 = vpow.pop %v1590
  %v1592 = vmul.f32 %v1422, 1.442695
  %v1593 = vpow.pop %v1592
  %v1594 = vmul.f32 %v1424, 1.442695
  %v1595 = vpow.pop %v1594
  %v1596 = vmul.f32 %v1428, 1.442695
  %v1597 = vpow.pop %v1596
  %v1598 = vmul.f32 %v1430, 1.442695
  %v1599 = vpow.pop %v1598
  %v1600 = vmul.f32 %v1434, 1.442695
  %v1601 = vpow.pop %v1600
  %v1602 = vmul.f32 %v1436, 1.442695
  %v1603 = vpow.pop %v1602
  %v1604 = vmul.f32 %v1440, 1.442695
  %v1605 = vpow.pop %v1604
  %v1606 = vmul.f32 %v1442, 1.442695
  %v1607 = vpow.pop %v1606
  %v1608 = vmul.f32 %v1446, 1.442695
  %v1609 = vpow.pop %v1608
  %v1610 = vmul.f32 %v1448, 1.442695
  %v1611 = vpow.pop %v1610
  %v1612 = vmul.f32 %v1452, 1.442695
  %v1613 = vpow.pop %v1612
  %v1614 = vmul.f32 %v1454, 1.442695
  %v1615 = vpow.pop %v1614
  %v1616 = vmul.f32 %v1458, 1.442695
  %v1617 = vpow.pop %v1616
  %v1618 = vmul.f32 %v1460, 1.442695
  %v1619 = vpow.pop %v1618
  %v1620 = vmul.f32 %v1464, 1.442695
  %v1621 = vpow.pop %v1620
  %v1622 = vmul.f32 %v1466, 1.442695
  %v1623 = vpow.pop %v1622
  %v1624 = vmul.f32 %v1470, 1.442695
  %v1625 = vpow.pop %v1624
  %v1626 = vmul.f32 %v1472, 1.442695
  %v1627 = vpow.pop %v1626
  %v1628 = vmul.f32 %v1476, 1.442695
  %v1629 = vpow.pop %v1628
  %v1630 = vmul.f32 %v1478, 1.442695
  %v1631 = vpow.pop %v1630
  %v1632 = vmul.f32 %v1482, 1.442695
  %v1633 = vpow.pop %v1632
  %v1634 = vmul.f32 %v1484, 1.442695
  %v1635 = vpow.pop %v1634
  %v1636 = vmul.f32 %v1488, 1.442695
  %v1637 = vpow.pop %v1636
  %v1638 = vmul.f32 %v1490, 1.442695
  %v1639 = vpow.pop %v1638
  %v1640 = vmul.f32 %v1494, 1.442695
  %v1641 = vpow.pop %v1640
  %v1642 = vmul.f32 %v1496, 1.442695
  %v1643 = vpow.pop %v1642
  %v1644 = vmul.f32 %v1500, 1.442695
  %v1645 = vpow.pop %v1644
  %v1646 = vmul.f32 %v1502, 1.442695
  %v1647 = vpow.pop %v1646
  %v1648 = vmul.f32 %v1506, 1.442695
  %v1649 = vpow.pop %v1648
  %v1650 = vmul.f32 %v1508, 1.442695
  %v1651 = vpow.pop %v1650
  %v1652 = vmul.f32 %v1512, 1.442695
  %v1653 = vpow.pop %v1652
  %v1654 = vmul.f32 %v1514, 1.442695
  %v1655 = vpow.pop %v1654
  %v1656 = vmul.f32 %v1518, 1.442695
  %v1657 = vpow.pop %v1656
  %v1658 = vmul.f32 %v1520, 1.442695
  %v1659 = vpow.pop %v1658
  %v1660 = vmul.f32 %v1524, 1.442695
  %v1661 = vpow.pop %v1660
  %v1662 = vmul.f32 %v1526, 1.442695
  %v1663 = vpow.pop %v1662
  %v1664 = vmul.f32 %v1530, 1.442695
  %v1665 = vpow.pop %v1664
  %v1666 = vmul.f32 %v1532, 1.442695
  %v1667 = vpow.pop %v1666
  %v1668 = vmul.f32 %v1536, 1.442695
  %v1669 = vpow.pop %v1668
  %v1670 = vmul.f32 %v1538, 1.442695
  %v1671 = vpow.pop %v1670
  %v1672 = vmul.f32 %v1542, 1.442695
  %v1673 = vpow.pop %v1672
  %v1674 = vmul.f32 %v1544, 1.442695
  %v1675 = vpow.pop %v1674
  %v1676 = vmul.f32 %v1548, 1.442695
  %v1677 = vpow.pop %v1676
  %v1678 = vmul.f32 %v1550, 1.442695
  %v1679 = vpow.pop %v1678
  %v1680 = vadd.f32 %v1553, %v1557
  %v1681 = vadd.f32 %v1680, %v1561
  %v1682 = vadd.f32 %v1681, %v1565
  %v1683 = vadd.f32 %v1682, %v1569
  %v1684 = vadd.f32 %v1683, %v1573
  %v1685 = vadd.f32 %v1684, %v1577
  %v1686 = vadd.f32 %v1685, %v1581
  %v1687 = vadd.f32 %v1686, %v1585
  %v1688 = vadd.f32 %v1687, %v1589
  %v1689 = vadd.f32 %v1688, %v1593
  %v1690 = vadd.f32 %v1689, %v1597
  %v1691 = vadd.f32 %v1690, %v1601
  %v1692 = vadd.f32 %v1691, %v1605
  %v1693 = vadd.f32 %v1692, %v1609
  %v1694 = vadd.f32 %v1693, %v1613
  %v1695 = vadd.f32 %v1694, %v1617
  %v1696 = vadd.f32 %v1695, %v1621
  %v1697 = vadd.f32 %v1696, %v1625
  %v1698 = vadd.f32 %v1697, %v1629
  %v1699 = vadd.f32 %v1698, %v1633
  %v1700 = vadd.f32 %v1699, %v1637
  %v1701 = vadd.f32 %v1700, %v1641
  %v1702 = vadd.f32 %v1701, %v1645
  %v1703 = vadd.f32 %v1702, %v1649
  %v1704 = vadd.f32 %v1703, %v1653
  %v1705 = vadd.f32 %v1704, %v1657
  %v1706 = vadd.f32 %v1705, %v1661
  %v1707 = vadd.f32 %v1706, %v1665
  %v1708 = vadd.f32 %v1707, %v1669
  %v1709 = vadd.f32 %v1708, %v1673
  %v1710 = vadd.f32 %v1709, %v1677
  %v1711 = vrot.slane %v1710, 4
  %v1712 = vadd.f32 %v1710, %v1711
  %v1713 = vrot.slane %v1712, 2
  %v1714 = vadd.f32 %v1712, %v1713
  %v1715 = vrot.slane %v1714, 1
  %v1716 = vadd.f32 %v1714, %v1715
  %v1717 = vadd.f32 %v1555, %v1559
  %v1718 = vadd.f32 %v1717, %v1563
  %v1719 = vadd.f32 %v1718, %v1567
  %v1720 = vadd.f32 %v1719, %v1571
  %v1721 = vadd.f32 %v1720, %v1575
  %v1722 = vadd.f32 %v1721, %v1579
  %v1723 = vadd.f32 %v1722, %v1583
  %v1724 = vadd.f32 %v1723, %v1587
  %v1725 = vadd.f32 %v1724, %v1591
  %v1726 = vadd.f32 %v1725, %v1595
  %v1727 = vadd.f32 %v1726, %v1599
  %v1728 = vadd.f32 %v1727, %v1603
  %v1729 = vadd.f32 %v1728, %v1607
  %v1730 = vadd.f32 %v1729, %v1611
  %v1731 = vadd.f32 %v1730, %v1615
  %v1732 = vadd.f32 %v1731, %v1619
  %v1733 = vadd.f32 %v1732, %v1623
  %v1734 = vadd.f32 %v1733, %v1627
  %v1735 = vadd.f32 %v1734, %v1631
  %v1736 = vadd.f32 %v1735, %v1635
  %v1737 = vadd.f32 %v1736, %v1639
  %v1738 = vadd.f32 %v1737, %v1643
  %v1739 = vadd.f32 %v1738, %v1647
  %v1740 = vadd.f32 %v1739, %v1651
  %v1741 = vadd.f32 %v1740, %v1655
  %v1742 = vadd.f32 %v1741, %v1659
  %v1743 = vadd.f32 %v1742, %v1663
  %v1744 = vadd.f32 %v1743, %v1667
  %v1745 = vadd.f32 %v1744, %v1671
  %v1746 = vadd.f32 %v1745, %v1675
  %v1747 = vadd.f32 %v1746, %v1679
  %v1748 = vrot.slane %v1747, 4
  %v1749 = vadd.f32 %v1747, %v1748
  %v1750 = vrot.slane %v1749, 2
  %v1751 = vadd.f32 %v1749, %v1750
  %v1752 = vrot.slane %v1751, 1
  %v1753 = vadd.f32 %v1751, %v1752
  %v1754 = vadd.f32 %v1716, 1e-08
  %v1755 = vadd.f32 %v1753, 1e-08
  %v1756 = vrcp.pop %v1754
  %v1757 = vmul.f32 1.0, %v1756
  %v1758 = vrcp.pop %v1755
  %v1759 = vmul.f32 1.0, %v1758
  %v1760 = vmul.f32 %v1553, %v1757
  %v1761 = vmul.f32 %v1555, %v1759
  %v1762 = vmul.f32 %v1557, %v1757
  %v1763 = vmul.f32 %v1559, %v1759
  %v1764 = vmul.f32 %v1561, %v1757
  %v1765 = vmul.f32 %v1563, %v1759
  %v1766 = vmul.f32 %v1565, %v1757
  %v1767 = vmul.f32 %v1567, %v1759
  %v1768 = vmul.f32 %v1569, %v1757
  %v1769 = vmul.f32 %v1571, %v1759
  %v1770 = vmul.f32 %v1573, %v1757
  %v1771 = vmul.f32 %v1575, %v1759
  %v1772 = vmul.f32 %v1577, %v1757
  %v1773 = vmul.f32 %v1579, %v1759
  %v1774 = vmul.f32 %v1581, %v1757
  %v1775 = vmul.f32 %v1583, %v1759
  %v1776 = vmul.f32 %v1585, %v1757
  %v1777 = vmul.f32 %v1587, %v1759
  %v1778 = vmul.f32 %v1589, %v1757
  %v1779 = vmul.f32 %v1591, %v1759
  %v1780 = vmul.f32 %v1593, %v1757
  %v1781 = vmul.f32 %v1595, %v1759
  %v1782 = vmul.f32 %v1597, %v1757
  %v1783 = vmul.f32 %v1599, %v1759
  %v1784 = vmul.f32 %v1601, %v1757
  %v1785 = vmul.f32 %v1603, %v1759
  %v1786 = vmul.f32 %v1605, %v1757
  %v1787 = vmul.f32 %v1607, %v1759
  %v1788 = vmul.f32 %v1609, %v1757
  %v1789 = vmul.f32 %v1611, %v1759
  %v1790 = vmul.f32 %v1613, %v1757
  %v1791 = vmul.f32 %v1615, %v1759
  %v1792 = vmul.f32 %v1617, %v1757
  %v1793 = vmul.f32 %v1619, %v1759
  %v1794 = vmul.f32 %v1621, %v1757
  %v1795 = vmul.f32 %v1623, %v1759
  %v1796 = vmul.f32 %v1625, %v1757
  %v1797 = vmul.f32 %v1627, %v1759
  %v1798 = vmul.f32 %v1629, %v1757
  %v1799 = vmul.f32 %v1631, %v1759
  %v1800 = vmul.f32 %v1633, %v1757
  %v1801 = vmul.f32 %v1635, %v1759
  %v1802 = vmul.f32 %v1637, %v1757
  %v1803 = vmul.f32 %v1639, %v1759
  %v1804 = vmul.f32 %v1641, %v1757
  %v1805 = vmul.f32 %v1643, %v1759
  %v1806 = vmul.f32 %v1645, %v1757
  %v1807 = vmul.f32 %v1647, %v1759
  %v1808 = vmul.f32 %v1649, %v1757
  %v1809 = vmul.f32 %v1651, %v1759
  %v1810 = vmul.f32 %v1653, %v1757
  %v1811 = vmul.f32 %v1655, %v1759
  %v1812 = vmul.f32 %v1657, %v1757
  %v1813 = vmul.f32 %v1659, %v1759
  %v1814 = vmul.f32 %v1661, %v1757
  %v1815 = vmul.f32 %v1663, %v1759
  %v1816 = vmul.f32 %v1665, %v1757
  %v1817 = vmul.f32 %v1667, %v1759
  %v1818 = vmul.f32 %v1669, %v1757
  %v1819 = vmul.f32 %v1671, %v1759
  %v1820 = vmul.f32 %v1673, %v1757
  %v1821 = vmul.f32 %v1675, %v1759
  %v1822 = vmul.f32 %v1677, %v1757
  %v1823 = vmul.f32 %v1679, %v1759
  %v1824 = vpack.c.bf16 %v1762, %v1760
  %v1825 = vpack.c.bf16 %v1763, %v1761
  %v1826 = vpack.c.bf16 %v1766, %v1764
  %v1827 = vpack.c.bf16 %v1767, %v1765
  %v1828 = vpack.c.bf16 %v1770, %v1768
  %v1829 = vpack.c.bf16 %v1771, %v1769
  %v1830 = vpack.c.bf16 %v1774, %v1772
  %v1831 = vpack.c.bf16 %v1775, %v1773
  %v1832 = vpack.c.bf16 %v1778, %v1776
  %v1833 = vpack.c.bf16 %v1779, %v1777
  %v1834 = vpack.c.bf16 %v1782, %v1780
  %v1835 = vpack.c.bf16 %v1783, %v1781
  %v1836 = vpack.c.bf16 %v1786, %v1784
  %v1837 = vpack.c.bf16 %v1787, %v1785
  %v1838 = vpack.c.bf16 %v1790, %v1788
  %v1839 = vpack.c.bf16 %v1791, %v1789
  %v1840 = vpack.c.bf16 %v1794, %v1792
  %v1841 = vpack.c.bf16 %v1795, %v1793
  %v1842 = vpack.c.bf16 %v1798, %v1796
  %v1843 = vpack.c.bf16 %v1799, %v1797
  %v1844 = vpack.c.bf16 %v1802, %v1800
  %v1845 = vpack.c.bf16 %v1803, %v1801
  %v1846 = vpack.c.bf16 %v1806, %v1804
  %v1847 = vpack.c.bf16 %v1807, %v1805
  %v1848 = vpack.c.bf16 %v1810, %v1808
  %v1849 = vpack.c.bf16 %v1811, %v1809
  %v1850 = vpack.c.bf16 %v1814, %v1812
  %v1851 = vpack.c.bf16 %v1815, %v1813
  %v1852 = vpack.c.bf16 %v1818, %v1816
  %v1853 = vpack.c.bf16 %v1819, %v1817
  %v1854 = vpack.c.bf16 %v1822, %v1820
  %v1855 = vpack.c.bf16 %v1823, %v1821
  %v1888 = vunpack.c.l.b16 %v1824
  %v1889 = vunpack.c.l.b16 %v1825
  %v1890 = vunpack.c.h.b16 %v1824
  %v1891 = vunpack.c.h.b16 %v1825
  %v1892 = vunpack.c.l.b16 %v1826
  %v1893 = vunpack.c.l.b16 %v1827
  %v1894 = vunpack.c.h.b16 %v1826
  %v1895 = vunpack.c.h.b16 %v1827
  %v1896 = vunpack.c.l.b16 %v1828
  %v1897 = vunpack.c.l.b16 %v1829
  %v1898 = vunpack.c.h.b16 %v1828
  %v1899 = vunpack.c.h.b16 %v1829
  %v1900 = vunpack.c.l.b16 %v1830
  %v1901 = vunpack.c.l.b16 %v1831
  %v1902 = vunpack.c.h.b16 %v1830
  %v1903 = vunpack.c.h.b16 %v1831
  %v1904 = vunpack.c.l.b16 %v1832
  %v1905 = vunpack.c.l.b16 %v1833
  %v1906 = vunpack.c.h.b16 %v1832
  %v1907 = vunpack.c.h.b16 %v1833
  %v1908 = vunpack.c.l.b16 %v1834
  %v1909 = vunpack.c.l.b16 %v1835
  %v1910 = vunpack.c.h.b16 %v1834
  %v1911 = vunpack.c.h.b16 %v1835
  %v1912 = vunpack.c.l.b16 %v1836
  %v1913 = vunpack.c.l.b16 %v1837
  %v1914 = vunpack.c.h.b16 %v1836
  %v1915 = vunpack.c.h.b16 %v1837
  %v1916 = vunpack.c.l.b16 %v1838
  %v1917 = vunpack.c.l.b16 %v1839
  %v1918 = vunpack.c.h.b16 %v1838
  %v1919 = vunpack.c.h.b16 %v1839
  %v1920 = vunpack.c.l.b16 %v1840
  %v1921 = vunpack.c.l.b16 %v1841
  %v1922 = vunpack.c.h.b16 %v1840
  %v1923 = vunpack.c.h.b16 %v1841
  %v1924 = vunpack.c.l.b16 %v1842
  %v1925 = vunpack.c.l.b16 %v1843
  %v1926 = vunpack.c.h.b16 %v1842
  %v1927 = vunpack.c.h.b16 %v1843
  %v1928 = vunpack.c.l.b16 %v1844
  %v1929 = vunpack.c.l.b16 %v1845
  %v1930 = vunpack.c.h.b16 %v1844
  %v1931 = vunpack.c.h.b16 %v1845
  %v1932 = vunpack.c.l.b16 %v1846
  %v1933 = vunpack.c.l.b16 %v1847
  %v1934 = vunpack.c.h.b16 %v1846
  %v1935 = vunpack.c.h.b16 %v1847
  %v1936 = vunpack.c.l.b16 %v1848
  %v1937 = vunpack.c.l.b16 %v1849
  %v1938 = vunpack.c.h.b16 %v1848
  %v1939 = vunpack.c.h.b16 %v1849
  %v1940 = vunpack.c.l.b16 %v1850
  %v1941 = vunpack.c.l.b16 %v1851
  %v1942 = vunpack.c.h.b16 %v1850
  %v1943 = vunpack.c.h.b16 %v1851
  %v1944 = vunpack.c.l.b16 %v1852
  %v1945 = vunpack.c.l.b16 %v1853
  %v1946 = vunpack.c.h.b16 %v1852
  %v1947 = vunpack.c.h.b16 %v1853
  %v1948 = vunpack.c.l.b16 %v1854
  %v1949 = vunpack.c.l.b16 %v1855
  %v1950 = vunpack.c.h.b16 %v1854
  %v1951 = vunpack.c.h.b16 %v1855
  %v1952 = vpack.c.b16 %v1889, %v1888
  %v1953 = vpack.c.b16 %v1891, %v1890
  %v1954 = vpack.c.b16 %v1893, %v1892
  %v1955 = vpack.c.b16 %v1895, %v1894
  %v1956 = vpack.c.b16 %v1897, %v1896
  %v1957 = vpack.c.b16 %v1899, %v1898
  %v1958 = vpack.c.b16 %v1901, %v1900
  %v1959 = vpack.c.b16 %v1903, %v1902
  %v1960 = vpack.c.b16 %v1905, %v1904
  %v1961 = vpack.c.b16 %v1907, %v1906
  %v1962 = vpack.c.b16 %v1909, %v1908
  %v1963 = vpack.c.b16 %v1911, %v1910
  %v1964 = vpack.c.b16 %v1913, %v1912
  %v1965 = vpack.c.b16 %v1915, %v1914
  %v1966 = vpack.c.b16 %v1917, %v1916
  %v1967 = vpack.c.b16 %v1919, %v1918
  %v1968 = vpack.c.b16 %v1921, %v1920
  %v1969 = vpack.c.b16 %v1923, %v1922
  %v1970 = vpack.c.b16 %v1925, %v1924
  %v1971 = vpack.c.b16 %v1927, %v1926
  %v1972 = vpack.c.b16 %v1929, %v1928
  %v1973 = vpack.c.b16 %v1931, %v1930
  %v1974 = vpack.c.b16 %v1933, %v1932
  %v1975 = vpack.c.b16 %v1935, %v1934
  %v1976 = vpack.c.b16 %v1937, %v1936
  %v1977 = vpack.c.b16 %v1939, %v1938
  %v1978 = vpack.c.b16 %v1941, %v1940
  %v1979 = vpack.c.b16 %v1943, %v1942
  %v1980 = vpack.c.b16 %v1945, %v1944
  %v1981 = vpack.c.b16 %v1947, %v1946
  %v1982 = vpack.c.b16 %v1949, %v1948
  %v1983 = vpack.c.b16 %v1951, %v1950
  %2016 = vst [vmem:[#allocation2 + $0x100] sm:$0xff] %v1952
  %2017 = vst [vmem:[#allocation2 + $0x108] sm:$0xff] %v1953
  %2018 = vst [vmem:[#allocation2 + $0x110] sm:$0xff] %v1954
  %2019 = vst [vmem:[#allocation2 + $0x118] sm:$0xff] %v1955
  %2020 = vst [vmem:[#allocation2 + $0x120] sm:$0xff] %v1956
  %2021 = vst [vmem:[#allocation2 + $0x128] sm:$0xff] %v1957
  %2022 = vst [vmem:[#allocation2 + $0x130] sm:$0xff] %v1958
  %2023 = vst [vmem:[#allocation2 + $0x138] sm:$0xff] %v1959
  %2024 = vst [vmem:[#allocation2 + $0x140] sm:$0xff] %v1960
  %2025 = vst [vmem:[#allocation2 + $0x148] sm:$0xff] %v1961
  %2026 = vst [vmem:[#allocation2 + $0x150] sm:$0xff] %v1962
  %2027 = vst [vmem:[#allocation2 + $0x158] sm:$0xff] %v1963
  %2028 = vst [vmem:[#allocation2 + $0x160] sm:$0xff] %v1964
  %2029 = vst [vmem:[#allocation2 + $0x168] sm:$0xff] %v1965
  %2030 = vst [vmem:[#allocation2 + $0x170] sm:$0xff] %v1966
  %2031 = vst [vmem:[#allocation2 + $0x178] sm:$0xff] %v1967
  %2032 = vst [vmem:[#allocation2 + $0x180] sm:$0xff] %v1968
  %2033 = vst [vmem:[#allocation2 + $0x188] sm:$0xff] %v1969
  %2034 = vst [vmem:[#allocation2 + $0x190] sm:$0xff] %v1970
  %2035 = vst [vmem:[#allocation2 + $0x198] sm:$0xff] %v1971
  %2036 = vst [vmem:[#allocation2 + $0x1a0] sm:$0xff] %v1972
  %2037 = vst [vmem:[#allocation2 + $0x1a8] sm:$0xff] %v1973
  %2038 = vst [vmem:[#allocation2 + $0x1b0] sm:$0xff] %v1974
  %2039 = vst [vmem:[#allocation2 + $0x1b8] sm:$0xff] %v1975
  %2040 = vst [vmem:[#allocation2 + $0x1c0] sm:$0xff] %v1976
  %2041 = vst [vmem:[#allocation2 + $0x1c8] sm:$0xff] %v1977
  %2042 = vst [vmem:[#allocation2 + $0x1d0] sm:$0xff] %v1978
  %2043 = vst [vmem:[#allocation2 + $0x1d8] sm:$0xff] %v1979
  %2044 = vst [vmem:[#allocation2 + $0x1e0] sm:$0xff] %v1980
  %2045 = vst [vmem:[#allocation2 + $0x1e8] sm:$0xff] %v1981
  %2046 = vst [vmem:[#allocation2 + $0x1f0] sm:$0xff] %v1982
  %2047 = vst [vmem:[#allocation2 + $0x1f8] sm:$0xff] %v1983
  %v2048 = vld [vmem:[%s6] sm:$0xff]
  %v2049 = vld [vmem:[%s7] sm:$0xff]
  %v2050 = vld [vmem:[%s5] sm:$0xff]
  %v2051 = vld [vmem:[%s5 + $0x8] sm:$0xff]
  %v2052 = vld [vmem:[%s4] sm:$0xff]
  %v2053 = vld [vmem:[%s4 + $0x8] sm:$0xff]
  %v2054 = vrot.slane %v2052, 4
  %v2055 = vmax.f32 %v2052, %v2054
  %v2056 = vrot.slane %v2055, 2
  %v2057 = vmax.f32 %v2055, %v2056
  %v2058 = vrot.slane %v2057, 1
  %v2059 = vmax.f32 %v2057, %v2058
  %v2060 = vrot.slane %v2053, 4
  %v2061 = vmax.f32 %v2053, %v2060
  %v2062 = vrot.slane %v2061, 2
  %v2063 = vmax.f32 %v2061, %v2062
  %v2064 = vrot.slane %v2063, 1
  %v2065 = vmax.f32 %v2063, %v2064
  %v2066 = vsub.f32 %v2052, %v2059
  %v2067 = vsub.f32 %v2053, %v2065
  %v2068 = vmul.f32 %v2066, 1.442695
  %v2069 = vpow.pop %v2068
  %v2070 = vmul.f32 %v2067, 1.442695
  %v2071 = vpow.pop %v2070
  %v2072 = vrot.slane %v2069, 4
  %v2073 = vadd.f32 %v2069, %v2072
  %v2074 = vrot.slane %v2073, 2
  %v2075 = vadd.f32 %v2073, %v2074
  %v2076 = vrot.slane %v2075, 1
  %v2077 = vadd.f32 %v2075, %v2076
  %v2078 = vrot.slane %v2071, 4
  %v2079 = vadd.f32 %v2071, %v2078
  %v2080 = vrot.slane %v2079, 2
  %v2081 = vadd.f32 %v2079, %v2080
  %v2082 = vrot.slane %v2081, 1
  %v2083 = vadd.f32 %v2081, %v2082
  %v2084 = vrcp.pop %v2077
  %v2085 = vrcp.pop %v2083
  %v2086 = vmul.f32 %v2069, %v2084
  %v2087 = vmul.f32 %v2071, %v2085
  %v2089 = vsel %vm93, %v2048, 0
  %2091 = vmatprep.subr.mxu0 0.0
  %2092 = vmatpush1.msra.mxu0 0.0
  %2093 = vmatprep.subr.mxu0 0.0
  %2094 = vmatpush1.msra.mxu0 0.0
  %2095 = vmatprep.subr.mxu0 0.0
  %2096 = vmatpush1.msra.mxu0 0.0
  %2097 = vmatprep.subr.mxu0 0.0
  %2098 = vmatpush1.msra.mxu0 0.0
  %2099 = vmatprep.subr.mxu0 0.0
  %2100 = vmatpush1.msra.mxu0 0.0
  %2101 = vmatprep.subr.mxu0 0.0
  %2102 = vmatpush1.msra.mxu0 0.0
  %2103 = vmatprep.subr.mxu0 0.0
  %2104 = vmatpush1.msra.mxu0 0.0
  %2105 = vmatprep.subr.mxu0 0.0
  %2106 = vmatpush1.msra.mxu0 0.0
  %2107 = vmatprep.subr.mxu0 0.0
  %2108 = vmatpush1.msra.mxu0 0.0
  %2109 = vmatprep.subr.mxu0 0.0
  %2110 = vmatpush1.msra.mxu0 0.0
  %2111 = vmatprep.subr.mxu0 0.0
  %2112 = vmatpush1.msra.mxu0 0.0
  %2113 = vmatprep.subr.mxu0 0.0
  %2114 = vmatpush1.msra.mxu0 0.0
  %2115 = vmatprep.subr.mxu0 0.0
  %2116 = vmatpush1.msra.mxu0 0.0
  %2117 = vmatprep.subr.mxu0 0.0
  %2118 = vmatpush1.msra.mxu0 0.0
  %2119 = vmatprep.subr.mxu0 0.0
  %2120 = vmatpush1.msra.mxu0 0.0
  %2121 = vmatprep.subr.mxu0 %v2087
  %2122 = vmatpush1.msra.mxu0 %v2086
  %2123 = vmatprep.subr.mxu0 0.0
  %2124 = vmatpush2.msra.mxu0 0.0
  %2125 = vmatprep.subr.mxu0 0.0
  %2126 = vmatpush2.msra.mxu0 0.0
  %2127 = vmatprep.subr.mxu0 0.0
  %2128 = vmatpush2.msra.mxu0 0.0
  %2129 = vmatprep.subr.mxu0 0.0
  %2130 = vmatpush2.msra.mxu0 0.0
  %2131 = vmatprep.subr.mxu0 0.0
  %2132 = vmatpush2.msra.mxu0 0.0
  %2133 = vmatprep.subr.mxu0 0.0
  %2134 = vmatpush2.msra.mxu0 0.0
  %2135 = vmatprep.subr.mxu0 0.0
  %2136 = vmatpush2.msra.mxu0 0.0
  %2137 = vmatprep.subr.mxu0 0.0
  %2138 = vmatpush2.msra.mxu0 0.0
  %2139 = vmatprep.subr.mxu0 0.0
  %2140 = vmatpush2.msra.mxu0 0.0
  %2141 = vmatprep.subr.mxu0 0.0
  %2142 = vmatpush2.msra.mxu0 0.0
  %2143 = vmatprep.subr.mxu0 0.0
  %2144 = vmatpush2.msra.mxu0 0.0
  %2145 = vmatprep.subr.mxu0 0.0
  %2146 = vmatpush2.msra.mxu0 0.0
  %2147 = vmatprep.subr.mxu0 0.0
  %2148 = vmatpush2.msra.mxu0 0.0
  %2149 = vmatprep.subr.mxu0 0.0
  %2150 = vmatpush2.msra.mxu0 0.0
  %2151 = vmatprep.subr.mxu0 0.0
  %2152 = vmatpush2.msra.mxu0 0.0
  %2153 = vmatprep.subr.mxu0 0.0
  %2154 = vmatpush2.msra.mxu0 0.0
  %2155 = vmatprep.mubr.f32.mxu0 0.0
  %2156 = vmatmul.mubr.f32.gmra.mxu0 %v2089
  %v2157 = vpop.f32.mrf.mxu0
  %v2158 = vadd.f32 0.0, %v2157
  %v2159 = vpop.f32.mrf.mxu0
  %v2160 = vadd.f32 0.0, %v2159
  %2161 = vdwg.mxu0
  %v2163 = vsel %vm93, %v2049, 0
  %2165 = vmatprep.subr.mxu0 0.0
  %2166 = vmatpush1.msra.mxu0 0.0
  %2167 = vmatprep.subr.mxu0 0.0
  %2168 = vmatpush1.msra.mxu0 0.0
  %2169 = vmatprep.subr.mxu0 0.0
  %2170 = vmatpush1.msra.mxu0 0.0
  %2171 = vmatprep.subr.mxu0 0.0
  %2172 = vmatpush1.msra.mxu0 0.0
  %2173 = vmatprep.subr.mxu0 0.0
  %2174 = vmatpush1.msra.mxu0 0.0
  %2175 = vmatprep.subr.mxu0 0.0
  %2176 = vmatpush1.msra.mxu0 0.0
  %2177 = vmatprep.subr.mxu0 0.0
  %2178 = vmatpush1.msra.mxu0 0.0
  %2179 = vmatprep.subr.mxu0 0.0
  %2180 = vmatpush1.msra.mxu0 0.0
  %2181 = vmatprep.subr.mxu0 0.0
  %2182 = vmatpush1.msra.mxu0 0.0
  %2183 = vmatprep.subr.mxu0 0.0
  %2184 = vmatpush1.msra.mxu0 0.0
  %2185 = vmatprep.subr.mxu0 0.0
  %2186 = vmatpush1.msra.mxu0 0.0
  %2187 = vmatprep.subr.mxu0 0.0
  %2188 = vmatpush1.msra.mxu0 0.0
  %2189 = vmatprep.subr.mxu0 0.0
  %2190 = vmatpush1.msra.mxu0 0.0
  %2191 = vmatprep.subr.mxu0 0.0
  %2192 = vmatpush1.msra.mxu0 0.0
  %2193 = vmatprep.subr.mxu0 0.0
  %2194 = vmatpush1.msra.mxu0 0.0
  %2195 = vmatprep.subr.mxu0 %v2087
  %2196 = vmatpush1.msra.mxu0 %v2086
  %2197 = vmatprep.subr.mxu0 0.0
  %2198 = vmatpush2.msra.mxu0 0.0
  %2199 = vmatprep.subr.mxu0 0.0
  %2200 = vmatpush2.msra.mxu0 0.0
  %2201 = vmatprep.subr.mxu0 0.0
  %2202 = vmatpush2.msra.mxu0 0.0
  %2203 = vmatprep.subr.mxu0 0.0
  %2204 = vmatpush2.msra.mxu0 0.0
  %2205 = vmatprep.subr.mxu0 0.0
  %2206 = vmatpush2.msra.mxu0 0.0
  %2207 = vmatprep.subr.mxu0 0.0
  %2208 = vmatpush2.msra.mxu0 0.0
  %2209 = vmatprep.subr.mxu0 0.0
  %2210 = vmatpush2.msra.mxu0 0.0
  %2211 = vmatprep.subr.mxu0 0.0
  %2212 = vmatpush2.msra.mxu0 0.0
  %2213 = vmatprep.subr.mxu0 0.0
  %2214 = vmatpush2.msra.mxu0 0.0
  %2215 = vmatprep.subr.mxu0 0.0
  %2216 = vmatpush2.msra.mxu0 0.0
  %2217 = vmatprep.subr.mxu0 0.0
  %2218 = vmatpush2.msra.mxu0 0.0
  %2219 = vmatprep.subr.mxu0 0.0
  %2220 = vmatpush2.msra.mxu0 0.0
  %2221 = vmatprep.subr.mxu0 0.0
  %2222 = vmatpush2.msra.mxu0 0.0
  %2223 = vmatprep.subr.mxu0 0.0
  %2224 = vmatpush2.msra.mxu0 0.0
  %2225 = vmatprep.subr.mxu0 0.0
  %2226 = vmatpush2.msra.mxu0 0.0
  %2227 = vmatprep.subr.mxu0 0.0
  %2228 = vmatpush2.msra.mxu0 0.0
  %2229 = vmatprep.mubr.f32.mxu0 0.0
  %2230 = vmatmul.mubr.f32.gmra.mxu0 %v2163
  %v2231 = vpop.f32.mrf.mxu0
  %v2232 = vadd.f32 0.0, %v2231
  %v2233 = vpop.f32.mrf.mxu0
  %v2234 = vadd.f32 0.0, %v2233
  %2235 = vdwg.mxu0
  %v2236 = vpack.c.bf16 %v2158, %v2158
  %v2237 = vpack.c.bf16 %v2160, %v2160
  %v2238 = vpack.c.bf16 %v2232, %v2232
  %v2239 = vpack.c.bf16 %v2234, %v2234
  %v2240 = vld [vmem:[#allocation2] sm:$0xff]
  %v2241 = vld [vmem:[#allocation2 + $0x8] sm:$0xff]
  %v2242 = vld [vmem:[#allocation2 + $0x10] sm:$0xff]
  %v2243 = vld [vmem:[#allocation2 + $0x18] sm:$0xff]
  %v2244 = vld [vmem:[#allocation2 + $0x20] sm:$0xff]
  %v2245 = vld [vmem:[#allocation2 + $0x28] sm:$0xff]
  %v2246 = vld [vmem:[#allocation2 + $0x30] sm:$0xff]
  %v2247 = vld [vmem:[#allocation2 + $0x38] sm:$0xff]
  %v2248 = vld [vmem:[#allocation2 + $0x40] sm:$0xff]
  %v2249 = vld [vmem:[#allocation2 + $0x48] sm:$0xff]
  %v2250 = vld [vmem:[#allocation2 + $0x50] sm:$0xff]
  %v2251 = vld [vmem:[#allocation2 + $0x58] sm:$0xff]
  %v2252 = vld [vmem:[#allocation2 + $0x60] sm:$0xff]
  %v2253 = vld [vmem:[#allocation2 + $0x68] sm:$0xff]
  %v2254 = vld [vmem:[#allocation2 + $0x70] sm:$0xff]
  %v2255 = vld [vmem:[#allocation2 + $0x78] sm:$0xff]
  %v2256 = vld [vmem:[#allocation2 + $0x80] sm:$0xff]
  %v2257 = vld [vmem:[#allocation2 + $0x88] sm:$0xff]
  %v2258 = vld [vmem:[#allocation2 + $0x90] sm:$0xff]
  %v2259 = vld [vmem:[#allocation2 + $0x98] sm:$0xff]
  %v2260 = vld [vmem:[#allocation2 + $0xa0] sm:$0xff]
  %v2261 = vld [vmem:[#allocation2 + $0xa8] sm:$0xff]
  %v2262 = vld [vmem:[#allocation2 + $0xb0] sm:$0xff]
  %v2263 = vld [vmem:[#allocation2 + $0xb8] sm:$0xff]
  %v2264 = vld [vmem:[#allocation2 + $0xc0] sm:$0xff]
  %v2265 = vld [vmem:[#allocation2 + $0xc8] sm:$0xff]
  %v2266 = vld [vmem:[#allocation2 + $0xd0] sm:$0xff]
  %v2267 = vld [vmem:[#allocation2 + $0xd8] sm:$0xff]
  %v2268 = vld [vmem:[#allocation2 + $0xe0] sm:$0xff]
  %v2269 = vld [vmem:[#allocation2 + $0xe8] sm:$0xff]
  %v2270 = vld [vmem:[#allocation2 + $0xf0] sm:$0xff]
  %v2271 = vld [vmem:[#allocation2 + $0xf8] sm:$0xff]
  %v2272 = vld [vmem:[#allocation2 + $0x100] sm:$0xff]
  %v2273 = vld [vmem:[#allocation2 + $0x108] sm:$0xff]
  %v2274 = vld [vmem:[#allocation2 + $0x110] sm:$0xff]
  %v2275 = vld [vmem:[#allocation2 + $0x118] sm:$0xff]
  %v2276 = vld [vmem:[#allocation2 + $0x120] sm:$0xff]
  %v2277 = vld [vmem:[#allocation2 + $0x128] sm:$0xff]
  %v2278 = vld [vmem:[#allocation2 + $0x130] sm:$0xff]
  %v2279 = vld [vmem:[#allocation2 + $0x138] sm:$0xff]
  %v2280 = vld [vmem:[#allocation2 + $0x140] sm:$0xff]
  %v2281 = vld [vmem:[#allocation2 + $0x148] sm:$0xff]
  %v2282 = vld [vmem:[#allocation2 + $0x150] sm:$0xff]
  %v2283 = vld [vmem:[#allocation2 + $0x158] sm:$0xff]
  %v2284 = vld [vmem:[#allocation2 + $0x160] sm:$0xff]
  %v2285 = vld [vmem:[#allocation2 + $0x168] sm:$0xff]
  %v2286 = vld [vmem:[#allocation2 + $0x170] sm:$0xff]
  %v2287 = vld [vmem:[#allocation2 + $0x178] sm:$0xff]
  %v2288 = vld [vmem:[#allocation2 + $0x180] sm:$0xff]
  %v2289 = vld [vmem:[#allocation2 + $0x188] sm:$0xff]
  %v2290 = vld [vmem:[#allocation2 + $0x190] sm:$0xff]
  %v2291 = vld [vmem:[#allocation2 + $0x198] sm:$0xff]
  %v2292 = vld [vmem:[#allocation2 + $0x1a0] sm:$0xff]
  %v2293 = vld [vmem:[#allocation2 + $0x1a8] sm:$0xff]
  %v2294 = vld [vmem:[#allocation2 + $0x1b0] sm:$0xff]
  %v2295 = vld [vmem:[#allocation2 + $0x1b8] sm:$0xff]
  %v2296 = vld [vmem:[#allocation2 + $0x1c0] sm:$0xff]
  %v2297 = vld [vmem:[#allocation2 + $0x1c8] sm:$0xff]
  %v2298 = vld [vmem:[#allocation2 + $0x1d0] sm:$0xff]
  %v2299 = vld [vmem:[#allocation2 + $0x1d8] sm:$0xff]
  %v2300 = vld [vmem:[#allocation2 + $0x1e0] sm:$0xff]
  %v2301 = vld [vmem:[#allocation2 + $0x1e8] sm:$0xff]
  %v2302 = vld [vmem:[#allocation2 + $0x1f0] sm:$0xff]
  %v2303 = vld [vmem:[#allocation2 + $0x1f8] sm:$0xff]
  %v2368 = vunpack.c.l.b16 %v2240
  %v2369 = vunpack.c.h.b16 %v2240
  %v2370 = vunpack.c.l.b16 %v2241
  %v2371 = vunpack.c.h.b16 %v2241
  %v2372 = vunpack.c.l.b16 %v2242
  %v2373 = vunpack.c.h.b16 %v2242
  %v2374 = vunpack.c.l.b16 %v2243
  %v2375 = vunpack.c.h.b16 %v2243
  %v2376 = vunpack.c.l.b16 %v2244
  %v2377 = vunpack.c.h.b16 %v2244
  %v2378 = vunpack.c.l.b16 %v2245
  %v2379 = vunpack.c.h.b16 %v2245
  %v2380 = vunpack.c.l.b16 %v2246
  %v2381 = vunpack.c.h.b16 %v2246
  %v2382 = vunpack.c.l.b16 %v2247
  %v2383 = vunpack.c.h.b16 %v2247
  %v2384 = vunpack.c.l.b16 %v2248
  %v2385 = vunpack.c.h.b16 %v2248
  %v2386 = vunpack.c.l.b16 %v2249
  %v2387 = vunpack.c.h.b16 %v2249
  %v2388 = vunpack.c.l.b16 %v2250
  %v2389 = vunpack.c.h.b16 %v2250
  %v2390 = vunpack.c.l.b16 %v2251
  %v2391 = vunpack.c.h.b16 %v2251
  %v2392 = vunpack.c.l.b16 %v2252
  %v2393 = vunpack.c.h.b16 %v2252
  %v2394 = vunpack.c.l.b16 %v2253
  %v2395 = vunpack.c.h.b16 %v2253
  %v2396 = vunpack.c.l.b16 %v2254
  %v2397 = vunpack.c.h.b16 %v2254
  %v2398 = vunpack.c.l.b16 %v2255
  %v2399 = vunpack.c.h.b16 %v2255
  %v2400 = vunpack.c.l.b16 %v2256
  %v2401 = vunpack.c.h.b16 %v2256
  %v2402 = vunpack.c.l.b16 %v2257
  %v2403 = vunpack.c.h.b16 %v2257
  %v2404 = vunpack.c.l.b16 %v2258
  %v2405 = vunpack.c.h.b16 %v2258
  %v2406 = vunpack.c.l.b16 %v2259
  %v2407 = vunpack.c.h.b16 %v2259
  %v2408 = vunpack.c.l.b16 %v2260
  %v2409 = vunpack.c.h.b16 %v2260
  %v2410 = vunpack.c.l.b16 %v2261
  %v2411 = vunpack.c.h.b16 %v2261
  %v2412 = vunpack.c.l.b16 %v2262
  %v2413 = vunpack.c.h.b16 %v2262
  %v2414 = vunpack.c.l.b16 %v2263
  %v2415 = vunpack.c.h.b16 %v2263
  %v2416 = vunpack.c.l.b16 %v2264
  %v2417 = vunpack.c.h.b16 %v2264
  %v2418 = vunpack.c.l.b16 %v2265
  %v2419 = vunpack.c.h.b16 %v2265
  %v2420 = vunpack.c.l.b16 %v2266
  %v2421 = vunpack.c.h.b16 %v2266
  %v2422 = vunpack.c.l.b16 %v2267
  %v2423 = vunpack.c.h.b16 %v2267
  %v2424 = vunpack.c.l.b16 %v2268
  %v2425 = vunpack.c.h.b16 %v2268
  %v2426 = vunpack.c.l.b16 %v2269
  %v2427 = vunpack.c.h.b16 %v2269
  %v2428 = vunpack.c.l.b16 %v2270
  %v2429 = vunpack.c.h.b16 %v2270
  %v2430 = vunpack.c.l.b16 %v2271
  %v2431 = vunpack.c.h.b16 %v2271
  %v2432 = vunpack.c.l.b16 %v2272
  %v2433 = vunpack.c.h.b16 %v2272
  %v2434 = vunpack.c.l.b16 %v2273
  %v2435 = vunpack.c.h.b16 %v2273
  %v2436 = vunpack.c.l.b16 %v2274
  %v2437 = vunpack.c.h.b16 %v2274
  %v2438 = vunpack.c.l.b16 %v2275
  %v2439 = vunpack.c.h.b16 %v2275
  %v2440 = vunpack.c.l.b16 %v2276
  %v2441 = vunpack.c.h.b16 %v2276
  %v2442 = vunpack.c.l.b16 %v2277
  %v2443 = vunpack.c.h.b16 %v2277
  %v2444 = vunpack.c.l.b16 %v2278
  %v2445 = vunpack.c.h.b16 %v2278
  %v2446 = vunpack.c.l.b16 %v2279
  %v2447 = vunpack.c.h.b16 %v2279
  %v2448 = vunpack.c.l.b16 %v2280
  %v2449 = vunpack.c.h.b16 %v2280
  %v2450 = vunpack.c.l.b16 %v2281
  %v2451 = vunpack.c.h.b16 %v2281
  %v2452 = vunpack.c.l.b16 %v2282
  %v2453 = vunpack.c.h.b16 %v2282
  %v2454 = vunpack.c.l.b16 %v2283
  %v2455 = vunpack.c.h.b16 %v2283
  %v2456 = vunpack.c.l.b16 %v2284
  %v2457 = vunpack.c.h.b16 %v2284
  %v2458 = vunpack.c.l.b16 %v2285
  %v2459 = vunpack.c.h.b16 %v2285
  %v2460 = vunpack.c.l.b16 %v2286
  %v2461 = vunpack.c.h.b16 %v2286
  %v2462 = vunpack.c.l.b16 %v2287
  %v2463 = vunpack.c.h.b16 %v2287
  %v2464 = vunpack.c.l.b16 %v2288
  %v2465 = vunpack.c.h.b16 %v2288
  %v2466 = vunpack.c.l.b16 %v2289
  %v2467 = vunpack.c.h.b16 %v2289
  %v2468 = vunpack.c.l.b16 %v2290
  %v2469 = vunpack.c.h.b16 %v2290
  %v2470 = vunpack.c.l.b16 %v2291
  %v2471 = vunpack.c.h.b16 %v2291
  %v2472 = vunpack.c.l.b16 %v2292
  %v2473 = vunpack.c.h.b16 %v2292
  %v2474 = vunpack.c.l.b16 %v2293
  %v2475 = vunpack.c.h.b16 %v2293
  %v2476 = vunpack.c.l.b16 %v2294
  %v2477 = vunpack.c.h.b16 %v2294
  %v2478 = vunpack.c.l.b16 %v2295
  %v2479 = vunpack.c.h.b16 %v2295
  %v2480 = vunpack.c.l.b16 %v2296
  %v2481 = vunpack.c.h.b16 %v2296
  %v2482 = vunpack.c.l.b16 %v2297
  %v2483 = vunpack.c.h.b16 %v2297
  %v2484 = vunpack.c.l.b16 %v2298
  %v2485 = vunpack.c.h.b16 %v2298
  %v2486 = vunpack.c.l.b16 %v2299
  %v2487 = vunpack.c.h.b16 %v2299
  %v2488 = vunpack.c.l.b16 %v2300
  %v2489 = vunpack.c.h.b16 %v2300
  %v2490 = vunpack.c.l.b16 %v2301
  %v2491 = vunpack.c.h.b16 %v2301
  %v2492 = vunpack.c.l.b16 %v2302
  %v2493 = vunpack.c.h.b16 %v2302
  %v2494 = vunpack.c.l.b16 %v2303
  %v2495 = vunpack.c.h.b16 %v2303
  %v2496 = vpack.c.b16 %v2370, %v2368
  %v2497 = vpack.c.b16 %v2371, %v2369
  %v2498 = vpack.c.b16 %v2374, %v2372
  %v2499 = vpack.c.b16 %v2375, %v2373
  %v2500 = vpack.c.b16 %v2378, %v2376
  %v2501 = vpack.c.b16 %v2379, %v2377
  %v2502 = vpack.c.b16 %v2382, %v2380
  %v2503 = vpack.c.b16 %v2383, %v2381
  %v2504 = vpack.c.b16 %v2386, %v2384
  %v2505 = vpack.c.b16 %v2387, %v2385
  %v2506 = vpack.c.b16 %v2390, %v2388
  %v2507 = vpack.c.b16 %v2391, %v2389
  %v2508 = vpack.c.b16 %v2394, %v2392
  %v2509 = vpack.c.b16 %v2395, %v2393
  %v2510 = vpack.c.b16 %v2398, %v2396
  %v2511 = vpack.c.b16 %v2399, %v2397
  %v2512 = vpack.c.b16 %v2402, %v2400
  %v2513 = vpack.c.b16 %v2403, %v2401
  %v2514 = vpack.c.b16 %v2406, %v2404
  %v2515 = vpack.c.b16 %v2407, %v2405
  %v2516 = vpack.c.b16 %v2410, %v2408
  %v2517 = vpack.c.b16 %v2411, %v2409
  %v2518 = vpack.c.b16 %v2414, %v2412
  %v2519 = vpack.c.b16 %v2415, %v2413
  %v2520 = vpack.c.b16 %v2418, %v2416
  %v2521 = vpack.c.b16 %v2419, %v2417
  %v2522 = vpack.c.b16 %v2422, %v2420
  %v2523 = vpack.c.b16 %v2423, %v2421
  %v2524 = vpack.c.b16 %v2426, %v2424
  %v2525 = vpack.c.b16 %v2427, %v2425
  %v2526 = vpack.c.b16 %v2430, %v2428
  %v2527 = vpack.c.b16 %v2431, %v2429
  %v2528 = vpack.c.b16 %v2434, %v2432
  %v2529 = vpack.c.b16 %v2435, %v2433
  %v2530 = vpack.c.b16 %v2438, %v2436
  %v2531 = vpack.c.b16 %v2439, %v2437
  %v2532 = vpack.c.b16 %v2442, %v2440
  %v2533 = vpack.c.b16 %v2443, %v2441
  %v2534 = vpack.c.b16 %v2446, %v2444
  %v2535 = vpack.c.b16 %v2447, %v2445
  %v2536 = vpack.c.b16 %v2450, %v2448
  %v2537 = vpack.c.b16 %v2451, %v2449
  %v2538 = vpack.c.b16 %v2454, %v2452
  %v2539 = vpack.c.b16 %v2455, %v2453
  %v2540 = vpack.c.b16 %v2458, %v2456
  %v2541 = vpack.c.b16 %v2459, %v2457
  %v2542 = vpack.c.b16 %v2462, %v2460
  %v2543 = vpack.c.b16 %v2463, %v2461
  %v2544 = vpack.c.b16 %v2466, %v2464
  %v2545 = vpack.c.b16 %v2467, %v2465
  %v2546 = vpack.c.b16 %v2470, %v2468
  %v2547 = vpack.c.b16 %v2471, %v2469
  %v2548 = vpack.c.b16 %v2474, %v2472
  %v2549 = vpack.c.b16 %v2475, %v2473
  %v2550 = vpack.c.b16 %v2478, %v2476
  %v2551 = vpack.c.b16 %v2479, %v2477
  %v2552 = vpack.c.b16 %v2482, %v2480
  %v2553 = vpack.c.b16 %v2483, %v2481
  %v2554 = vpack.c.b16 %v2486, %v2484
  %v2555 = vpack.c.b16 %v2487, %v2485
  %v2556 = vpack.c.b16 %v2490, %v2488
  %v2557 = vpack.c.b16 %v2491, %v2489
  %v2558 = vpack.c.b16 %v2494, %v2492
  %v2559 = vpack.c.b16 %v2495, %v2493
  %2624 = vmatprep.subr.bf16.mxu0 %v2511
  %2625 = vmatpush1.bf16.msra.mxu0 %v2510
  %2626 = vmatprep.subr.bf16.mxu0 %v2509
  %2627 = vmatpush1.bf16.msra.mxu0 %v2508
  %2628 = vmatprep.subr.bf16.mxu0 %v2507
  %2629 = vmatpush1.bf16.msra.mxu0 %v2506
  %2630 = vmatprep.subr.bf16.mxu0 %v2505
  %2631 = vmatpush1.bf16.msra.mxu0 %v2504
  %2632 = vmatprep.subr.bf16.mxu0 %v2503
  %2633 = vmatpush1.bf16.msra.mxu0 %v2502
  %2634 = vmatprep.subr.bf16.mxu0 %v2501
  %2635 = vmatpush1.bf16.msra.mxu0 %v2500
  %2636 = vmatprep.subr.bf16.mxu0 %v2499
  %2637 = vmatpush1.bf16.msra.mxu0 %v2498
  %2638 = vmatprep.subr.bf16.mxu0 %v2497
  %2639 = vmatpush1.bf16.msra.mxu0 %v2496
  %2640 = vmatprep.subr.bf16.mxu0 %v2527
  %2641 = vmatpush2.bf16.msra.mxu0 %v2526
  %2642 = vmatprep.subr.bf16.mxu0 %v2525
  %2643 = vmatpush2.bf16.msra.mxu0 %v2524
  %2644 = vmatprep.subr.bf16.mxu0 %v2523
  %2645 = vmatpush2.bf16.msra.mxu0 %v2522
  %2646 = vmatprep.subr.bf16.mxu0 %v2521
  %2647 = vmatpush2.bf16.msra.mxu0 %v2520
  %2648 = vmatprep.subr.bf16.mxu0 %v2519
  %2649 = vmatpush2.bf16.msra.mxu0 %v2518
  %2650 = vmatprep.subr.bf16.mxu0 %v2517
  %2651 = vmatpush2.bf16.msra.mxu0 %v2516
  %2652 = vmatprep.subr.bf16.mxu0 %v2515
  %2653 = vmatpush2.bf16.msra.mxu0 %v2514
  %2654 = vmatprep.subr.bf16.mxu0 %v2513
  %2655 = vmatpush2.bf16.msra.mxu0 %v2512
  %2656 = vmatprep.mubr.bf16.mxu0 %v2237
  %2657 = vmatmul.mubr.bf16.gmra.mxu0 %v2236
  %v2658 = vpop.f32.mrf.mxu0
  %v2659 = vadd.f32 0.0, %v2658
  %v2660 = vpop.f32.mrf.mxu0
  %v2661 = vadd.f32 0.0, %v2660
  %v2662 = vpop.f32.mrf.mxu0
  %v2663 = vpop.f32.mrf.mxu0
  %2664 = vdwg.mxu0
  %2665 = vmatprep.subr.bf16.mxu0 %v2543
  %2666 = vmatpush1.bf16.msra.mxu0 %v2542
  %2667 = vmatprep.subr.bf16.mxu0 %v2541
  %2668 = vmatpush1.bf16.msra.mxu0 %v2540
  %2669 = vmatprep.subr.bf16.mxu0 %v2539
  %2670 = vmatpush1.bf16.msra.mxu0 %v2538
  %2671 = vmatprep.subr.bf16.mxu0 %v2537
  %2672 = vmatpush1.bf16.msra.mxu0 %v2536
  %2673 = vmatprep.subr.bf16.mxu0 %v2535
  %2674 = vmatpush1.bf16.msra.mxu0 %v2534
  %2675 = vmatprep.subr.bf16.mxu0 %v2533
  %2676 = vmatpush1.bf16.msra.mxu0 %v2532
  %2677 = vmatprep.subr.bf16.mxu0 %v2531
  %2678 = vmatpush1.bf16.msra.mxu0 %v2530
  %2679 = vmatprep.subr.bf16.mxu0 %v2529
  %2680 = vmatpush1.bf16.msra.mxu0 %v2528
  %2681 = vmatprep.subr.bf16.mxu0 %v2559
  %2682 = vmatpush2.bf16.msra.mxu0 %v2558
  %2683 = vmatprep.subr.bf16.mxu0 %v2557
  %2684 = vmatpush2.bf16.msra.mxu0 %v2556
  %2685 = vmatprep.subr.bf16.mxu0 %v2555
  %2686 = vmatpush2.bf16.msra.mxu0 %v2554
  %2687 = vmatprep.subr.bf16.mxu0 %v2553
  %2688 = vmatpush2.bf16.msra.mxu0 %v2552
  %2689 = vmatprep.subr.bf16.mxu0 %v2551
  %2690 = vmatpush2.bf16.msra.mxu0 %v2550
  %2691 = vmatprep.subr.bf16.mxu0 %v2549
  %2692 = vmatpush2.bf16.msra.mxu0 %v2548
  %2693 = vmatprep.subr.bf16.mxu0 %v2547
  %2694 = vmatpush2.bf16.msra.mxu0 %v2546
  %2695 = vmatprep.subr.bf16.mxu0 %v2545
  %2696 = vmatpush2.bf16.msra.mxu0 %v2544
  %2697 = vmatprep.mubr.bf16.mxu0 %v2239
  %2698 = vmatmul.mubr.bf16.gmra.mxu0 %v2238
  %v2699 = vpop.f32.mrf.mxu0
  %v2700 = vadd.f32 %v2659, %v2699
  %v2701 = vpop.f32.mrf.mxu0
  %v2702 = vadd.f32 %v2661, %v2701
  %v2703 = vpop.f32.mrf.mxu0
  %v2704 = vpop.f32.mrf.mxu0
  %2705 = vdwg.mxu0
  %v2706 = vadd.f32 %v2050, %v2700
  %v2707 = vadd.f32 %v2051, %v2702
  %v2708 = vrot.slane %v2706, 4
  %v2709 = vmax.f32 %v2706, %v2708
  %v2710 = vrot.slane %v2709, 2
  %v2711 = vmax.f32 %v2709, %v2710
  %v2712 = vrot.slane %v2711, 1
  %v2713 = vmax.f32 %v2711, %v2712
  %v2714 = vrot.slane %v2707, 4
  %v2715 = vmax.f32 %v2707, %v2714
  %v2716 = vrot.slane %v2715, 2
  %v2717 = vmax.f32 %v2715, %v2716
  %v2718 = vrot.slane %v2717, 1
  %v2719 = vmax.f32 %v2717, %v2718
  %v2720 = vsub.f32 %v2706, %v2713
  %v2721 = vsub.f32 %v2707, %v2719
  %v2722 = vmul.f32 %v2720, 1.442695
  %v2723 = vpow.pop %v2722
  %v2724 = vmul.f32 %v2721, 1.442695
  %v2725 = vpow.pop %v2724
  %v2726 = vrot.slane %v2723, 4
  %v2727 = vadd.f32 %v2723, %v2726
  %v2728 = vrot.slane %v2727, 2
  %v2729 = vadd.f32 %v2727, %v2728
  %v2730 = vrot.slane %v2729, 1
  %v2731 = vadd.f32 %v2729, %v2730
  %v2732 = vrot.slane %v2725, 4
  %v2733 = vadd.f32 %v2725, %v2732
  %v2734 = vrot.slane %v2733, 2
  %v2735 = vadd.f32 %v2733, %v2734
  %v2736 = vrot.slane %v2735, 1
  %v2737 = vadd.f32 %v2735, %v2736
  %v2738 = vrcp.pop %v2731
  %v2739 = vrcp.pop %v2737
  %v2740 = vmul.f32 %v2723, %v2738
  %v2741 = vmul.f32 %v2725, %v2739
  %2742 = vmatprep.subr.mxu0 0.0
  %2743 = vmatpush1.msra.mxu0 0.0
  %2744 = vmatprep.subr.mxu0 0.0
  %2745 = vmatpush1.msra.mxu0 0.0
  %2746 = vmatprep.subr.mxu0 0.0
  %2747 = vmatpush1.msra.mxu0 0.0
  %2748 = vmatprep.subr.mxu0 0.0
  %2749 = vmatpush1.msra.mxu0 0.0
  %2750 = vmatprep.subr.mxu0 0.0
  %2751 = vmatpush1.msra.mxu0 0.0
  %2752 = vmatprep.subr.mxu0 0.0
  %2753 = vmatpush1.msra.mxu0 0.0
  %2754 = vmatprep.subr.mxu0 0.0
  %2755 = vmatpush1.msra.mxu0 0.0
  %2756 = vmatprep.subr.mxu0 0.0
  %2757 = vmatpush1.msra.mxu0 0.0
  %2758 = vmatprep.subr.mxu0 0.0
  %2759 = vmatpush1.msra.mxu0 0.0
  %2760 = vmatprep.subr.mxu0 0.0
  %2761 = vmatpush1.msra.mxu0 0.0
  %2762 = vmatprep.subr.mxu0 0.0
  %2763 = vmatpush1.msra.mxu0 0.0
  %2764 = vmatprep.subr.mxu0 0.0
  %2765 = vmatpush1.msra.mxu0 0.0
  %2766 = vmatprep.subr.mxu0 0.0
  %2767 = vmatpush1.msra.mxu0 0.0
  %2768 = vmatprep.subr.mxu0 0.0
  %2769 = vmatpush1.msra.mxu0 0.0
  %2770 = vmatprep.subr.mxu0 0.0
  %2771 = vmatpush1.msra.mxu0 0.0
  %2772 = vmatprep.subr.mxu0 %v2741
  %2773 = vmatpush1.msra.mxu0 %v2740
  %2774 = vmatprep.subr.mxu0 0.0
  %2775 = vmatpush2.msra.mxu0 0.0
  %2776 = vmatprep.subr.mxu0 0.0
  %2777 = vmatpush2.msra.mxu0 0.0
  %2778 = vmatprep.subr.mxu0 0.0
  %2779 = vmatpush2.msra.mxu0 0.0
  %2780 = vmatprep.subr.mxu0 0.0
  %2781 = vmatpush2.msra.mxu0 0.0
  %2782 = vmatprep.subr.mxu0 0.0
  %2783 = vmatpush2.msra.mxu0 0.0
  %2784 = vmatprep.subr.mxu0 0.0
  %2785 = vmatpush2.msra.mxu0 0.0
  %2786 = vmatprep.subr.mxu0 0.0
  %2787 = vmatpush2.msra.mxu0 0.0
  %2788 = vmatprep.subr.mxu0 0.0
  %2789 = vmatpush2.msra.mxu0 0.0
  %2790 = vmatprep.subr.mxu0 0.0
  %2791 = vmatpush2.msra.mxu0 0.0
  %2792 = vmatprep.subr.mxu0 0.0
  %2793 = vmatpush2.msra.mxu0 0.0
  %2794 = vmatprep.subr.mxu0 0.0
  %2795 = vmatpush2.msra.mxu0 0.0
  %2796 = vmatprep.subr.mxu0 0.0
  %2797 = vmatpush2.msra.mxu0 0.0
  %2798 = vmatprep.subr.mxu0 0.0
  %2799 = vmatpush2.msra.mxu0 0.0
  %2800 = vmatprep.subr.mxu0 0.0
  %2801 = vmatpush2.msra.mxu0 0.0
  %2802 = vmatprep.subr.mxu0 0.0
  %2803 = vmatpush2.msra.mxu0 0.0
  %2804 = vmatprep.subr.mxu0 0.0
  %2805 = vmatpush2.msra.mxu0 0.0
  %2806 = vmatprep.mubr.f32.mxu0 0.0
  %2807 = vmatmul.mubr.f32.gmra.mxu0 %v2089
  %v2808 = vpop.f32.mrf.mxu0
  %v2809 = vadd.f32 0.0, %v2808
  %v2810 = vpop.f32.mrf.mxu0
  %v2811 = vadd.f32 0.0, %v2810
  %2812 = vdwg.mxu0
  %2813 = vmatprep.subr.mxu0 0.0
  %2814 = vmatpush1.msra.mxu0 0.0
  %2815 = vmatprep.subr.mxu0 0.0
  %2816 = vmatpush1.msra.mxu0 0.0
  %2817 = vmatprep.subr.mxu0 0.0
  %2818 = vmatpush1.msra.mxu0 0.0
  %2819 = vmatprep.subr.mxu0 0.0
  %2820 = vmatpush1.msra.mxu0 0.0
  %2821 = vmatprep.subr.mxu0 0.0
  %2822 = vmatpush1.msra.mxu0 0.0
  %2823 = vmatprep.subr.mxu0 0.0
  %2824 = vmatpush1.msra.mxu0 0.0
  %2825 = vmatprep.subr.mxu0 0.0
  %2826 = vmatpush1.msra.mxu0 0.0
  %2827 = vmatprep.subr.mxu0 0.0
  %2828 = vmatpush1.msra.mxu0 0.0
  %2829 = vmatprep.subr.mxu0 0.0
  %2830 = vmatpush1.msra.mxu0 0.0
  %2831 = vmatprep.subr.mxu0 0.0
  %2832 = vmatpush1.msra.mxu0 0.0
  %2833 = vmatprep.subr.mxu0 0.0
  %2834 = vmatpush1.msra.mxu0 0.0
  %2835 = vmatprep.subr.mxu0 0.0
  %2836 = vmatpush1.msra.mxu0 0.0
  %2837 = vmatprep.subr.mxu0 0.0
  %2838 = vmatpush1.msra.mxu0 0.0
  %2839 = vmatprep.subr.mxu0 0.0
  %2840 = vmatpush1.msra.mxu0 0.0
  %2841 = vmatprep.subr.mxu0 0.0
  %2842 = vmatpush1.msra.mxu0 0.0
  %2843 = vmatprep.subr.mxu0 %v2741
  %2844 = vmatpush1.msra.mxu0 %v2740
  %2845 = vmatprep.subr.mxu0 0.0
  %2846 = vmatpush2.msra.mxu0 0.0
  %2847 = vmatprep.subr.mxu0 0.0
  %2848 = vmatpush2.msra.mxu0 0.0
  %2849 = vmatprep.subr.mxu0 0.0
  %2850 = vmatpush2.msra.mxu0 0.0
  %2851 = vmatprep.subr.mxu0 0.0
  %2852 = vmatpush2.msra.mxu0 0.0
  %2853 = vmatprep.subr.mxu0 0.0
  %2854 = vmatpush2.msra.mxu0 0.0
  %2855 = vmatprep.subr.mxu0 0.0
  %2856 = vmatpush2.msra.mxu0 0.0
  %2857 = vmatprep.subr.mxu0 0.0
  %2858 = vmatpush2.msra.mxu0 0.0
  %2859 = vmatprep.subr.mxu0 0.0
  %2860 = vmatpush2.msra.mxu0 0.0
  %2861 = vmatprep.subr.mxu0 0.0
  %2862 = vmatpush2.msra.mxu0 0.0
  %2863 = vmatprep.subr.mxu0 0.0
  %2864 = vmatpush2.msra.mxu0 0.0
  %2865 = vmatprep.subr.mxu0 0.0
  %2866 = vmatpush2.msra.mxu0 0.0
  %2867 = vmatprep.subr.mxu0 0.0
  %2868 = vmatpush2.msra.mxu0 0.0
  %2869 = vmatprep.subr.mxu0 0.0
  %2870 = vmatpush2.msra.mxu0 0.0
  %2871 = vmatprep.subr.mxu0 0.0
  %2872 = vmatpush2.msra.mxu0 0.0
  %2873 = vmatprep.subr.mxu0 0.0
  %2874 = vmatpush2.msra.mxu0 0.0
  %2875 = vmatprep.subr.mxu0 0.0
  %2876 = vmatpush2.msra.mxu0 0.0
  %2877 = vmatprep.mubr.f32.mxu0 0.0
  %2878 = vmatmul.mubr.f32.gmra.mxu0 %v2163
  %v2879 = vpop.f32.mrf.mxu0
  %v2880 = vadd.f32 0.0, %v2879
  %v2881 = vpop.f32.mrf.mxu0
  %v2882 = vadd.f32 0.0, %v2881
  %2883 = vdwg.mxu0
  %v2884 = vpack.c.bf16 %v2809, %v2809
  %v2885 = vpack.c.bf16 %v2811, %v2811
  %v2886 = vpack.c.bf16 %v2880, %v2880
  %v2887 = vpack.c.bf16 %v2882, %v2882
  %2888 = vmatprep.subr.bf16.mxu0 %v2511
  %2889 = vmatpush1.bf16.msra.mxu0 %v2510
  %2890 = vmatprep.subr.bf16.mxu0 %v2509
  %2891 = vmatpush1.bf16.msra.mxu0 %v2508
  %2892 = vmatprep.subr.bf16.mxu0 %v2507
  %2893 = vmatpush1.bf16.msra.mxu0 %v2506
  %2894 = vmatprep.subr.bf16.mxu0 %v2505
  %2895 = vmatpush1.bf16.msra.mxu0 %v2504
  %2896 = vmatprep.subr.bf16.mxu0 %v2503
  %2897 = vmatpush1.bf16.msra.mxu0 %v2502
  %2898 = vmatprep.subr.bf16.mxu0 %v2501
  %2899 = vmatpush1.bf16.msra.mxu0 %v2500
  %2900 = vmatprep.subr.bf16.mxu0 %v2499
  %2901 = vmatpush1.bf16.msra.mxu0 %v2498
  %2902 = vmatprep.subr.bf16.mxu0 %v2497
  %2903 = vmatpush1.bf16.msra.mxu0 %v2496
  %2904 = vmatprep.subr.bf16.mxu0 %v2527
  %2905 = vmatpush2.bf16.msra.mxu0 %v2526
  %2906 = vmatprep.subr.bf16.mxu0 %v2525
  %2907 = vmatpush2.bf16.msra.mxu0 %v2524
  %2908 = vmatprep.subr.bf16.mxu0 %v2523
  %2909 = vmatpush2.bf16.msra.mxu0 %v2522
  %2910 = vmatprep.subr.bf16.mxu0 %v2521
  %2911 = vmatpush2.bf16.msra.mxu0 %v2520
  %2912 = vmatprep.subr.bf16.mxu0 %v2519
  %2913 = vmatpush2.bf16.msra.mxu0 %v2518
  %2914 = vmatprep.subr.bf16.mxu0 %v2517
  %2915 = vmatpush2.bf16.msra.mxu0 %v2516
  %2916 = vmatprep.subr.bf16.mxu0 %v2515
  %2917 = vmatpush2.bf16.msra.mxu0 %v2514
  %2918 = vmatprep.subr.bf16.mxu0 %v2513
  %2919 = vmatpush2.bf16.msra.mxu0 %v2512
  %2920 = vmatprep.mubr.bf16.mxu0 %v2885
  %2921 = vmatmul.mubr.bf16.gmra.mxu0 %v2884
  %v2922 = vpop.f32.mrf.mxu0
  %v2923 = vadd.f32 0.0, %v2922
  %v2924 = vpop.f32.mrf.mxu0
  %v2925 = vadd.f32 0.0, %v2924
  %v2926 = vpop.f32.mrf.mxu0
  %v2927 = vpop.f32.mrf.mxu0
  %2928 = vdwg.mxu0
  %2929 = vmatprep.subr.bf16.mxu0 %v2543
  %2930 = vmatpush1.bf16.msra.mxu0 %v2542
  %2931 = vmatprep.subr.bf16.mxu0 %v2541
  %2932 = vmatpush1.bf16.msra.mxu0 %v2540
  %2933 = vmatprep.subr.bf16.mxu0 %v2539
  %2934 = vmatpush1.bf16.msra.mxu0 %v2538
  %2935 = vmatprep.subr.bf16.mxu0 %v2537
  %2936 = vmatpush1.bf16.msra.mxu0 %v2536
  %2937 = vmatprep.subr.bf16.mxu0 %v2535
  %2938 = vmatpush1.bf16.msra.mxu0 %v2534
  %2939 = vmatprep.subr.bf16.mxu0 %v2533
  %2940 = vmatpush1.bf16.msra.mxu0 %v2532
  %2941 = vmatprep.subr.bf16.mxu0 %v2531
  %2942 = vmatpush1.bf16.msra.mxu0 %v2530
  %2943 = vmatprep.subr.bf16.mxu0 %v2529
  %2944 = vmatpush1.bf16.msra.mxu0 %v2528
  %2945 = vmatprep.subr.bf16.mxu0 %v2559
  %2946 = vmatpush2.bf16.msra.mxu0 %v2558
  %2947 = vmatprep.subr.bf16.mxu0 %v2557
  %2948 = vmatpush2.bf16.msra.mxu0 %v2556
  %2949 = vmatprep.subr.bf16.mxu0 %v2555
  %2950 = vmatpush2.bf16.msra.mxu0 %v2554
  %2951 = vmatprep.subr.bf16.mxu0 %v2553
  %2952 = vmatpush2.bf16.msra.mxu0 %v2552
  %2953 = vmatprep.subr.bf16.mxu0 %v2551
  %2954 = vmatpush2.bf16.msra.mxu0 %v2550
  %2955 = vmatprep.subr.bf16.mxu0 %v2549
  %2956 = vmatpush2.bf16.msra.mxu0 %v2548
  %2957 = vmatprep.subr.bf16.mxu0 %v2547
  %2958 = vmatpush2.bf16.msra.mxu0 %v2546
  %2959 = vmatprep.subr.bf16.mxu0 %v2545
  %2960 = vmatpush2.bf16.msra.mxu0 %v2544
  %2961 = vmatprep.mubr.bf16.mxu0 %v2887
  %2962 = vmatmul.mubr.bf16.gmra.mxu0 %v2886
  %v2963 = vpop.f32.mrf.mxu0
  %v2964 = vadd.f32 %v2923, %v2963
  %v2965 = vpop.f32.mrf.mxu0
  %v2966 = vadd.f32 %v2925, %v2965
  %v2967 = vpop.f32.mrf.mxu0
  %v2968 = vpop.f32.mrf.mxu0
  %2969 = vdwg.mxu0
  %v2970 = vadd.f32 %v2050, %v2964
  %v2971 = vadd.f32 %v2051, %v2966
  %v2972 = vrot.slane %v2970, 4
  %v2973 = vmax.f32 %v2970, %v2972
  %v2974 = vrot.slane %v2973, 2
  %v2975 = vmax.f32 %v2973, %v2974
  %v2976 = vrot.slane %v2975, 1
  %v2977 = vmax.f32 %v2975, %v2976
  %v2978 = vrot.slane %v2971, 4
  %v2979 = vmax.f32 %v2971, %v2978
  %v2980 = vrot.slane %v2979, 2
  %v2981 = vmax.f32 %v2979, %v2980
  %v2982 = vrot.slane %v2981, 1
  %v2983 = vmax.f32 %v2981, %v2982
  %v2984 = vsub.f32 %v2970, %v2977
  %v2985 = vsub.f32 %v2971, %v2983
  %v2986 = vmul.f32 %v2984, 1.442695
  %v2987 = vpow.pop %v2986
  %v2988 = vmul.f32 %v2985, 1.442695
  %v2989 = vpow.pop %v2988
  %v2990 = vrot.slane %v2987, 4
  %v2991 = vadd.f32 %v2987, %v2990
  %v2992 = vrot.slane %v2991, 2
  %v2993 = vadd.f32 %v2991, %v2992
  %v2994 = vrot.slane %v2993, 1
  %v2995 = vadd.f32 %v2993, %v2994
  %v2996 = vrot.slane %v2989, 4
  %v2997 = vadd.f32 %v2989, %v2996
  %v2998 = vrot.slane %v2997, 2
  %v2999 = vadd.f32 %v2997, %v2998
  %v3000 = vrot.slane %v2999, 1
  %v3001 = vadd.f32 %v2999, %v3000
  %v3002 = vrcp.pop %v2995
  %v3003 = vrcp.pop %v3001
  %v3004 = vmul.f32 %v2987, %v3002
  %v3005 = vmul.f32 %v2989, %v3003
  %3006 = vmatprep.subr.mxu0 0.0
  %3007 = vmatpush1.msra.mxu0 0.0
  %3008 = vmatprep.subr.mxu0 0.0
  %3009 = vmatpush1.msra.mxu0 0.0
  %3010 = vmatprep.subr.mxu0 0.0
  %3011 = vmatpush1.msra.mxu0 0.0
  %3012 = vmatprep.subr.mxu0 0.0
  %3013 = vmatpush1.msra.mxu0 0.0
  %3014 = vmatprep.subr.mxu0 0.0
  %3015 = vmatpush1.msra.mxu0 0.0
  %3016 = vmatprep.subr.mxu0 0.0
  %3017 = vmatpush1.msra.mxu0 0.0
  %3018 = vmatprep.subr.mxu0 0.0
  %3019 = vmatpush1.msra.mxu0 0.0
  %3020 = vmatprep.subr.mxu0 0.0
  %3021 = vmatpush1.msra.mxu0 0.0
  %3022 = vmatprep.subr.mxu0 0.0
  %3023 = vmatpush1.msra.mxu0 0.0
  %3024 = vmatprep.subr.mxu0 0.0
  %3025 = vmatpush1.msra.mxu0 0.0
  %3026 = vmatprep.subr.mxu0 0.0
  %3027 = vmatpush1.msra.mxu0 0.0
  %3028 = vmatprep.subr.mxu0 0.0
  %3029 = vmatpush1.msra.mxu0 0.0
  %3030 = vmatprep.subr.mxu0 0.0
  %3031 = vmatpush1.msra.mxu0 0.0
  %3032 = vmatprep.subr.mxu0 0.0
  %3033 = vmatpush1.msra.mxu0 0.0
  %3034 = vmatprep.subr.mxu0 0.0
  %3035 = vmatpush1.msra.mxu0 0.0
  %3036 = vmatprep.subr.mxu0 %v3005
  %3037 = vmatpush1.msra.mxu0 %v3004
  %3038 = vmatprep.subr.mxu0 0.0
  %3039 = vmatpush2.msra.mxu0 0.0
  %3040 = vmatprep.subr.mxu0 0.0
  %3041 = vmatpush2.msra.mxu0 0.0
  %3042 = vmatprep.subr.mxu0 0.0
  %3043 = vmatpush2.msra.mxu0 0.0
  %3044 = vmatprep.subr.mxu0 0.0
  %3045 = vmatpush2.msra.mxu0 0.0
  %3046 = vmatprep.subr.mxu0 0.0
  %3047 = vmatpush2.msra.mxu0 0.0
  %3048 = vmatprep.subr.mxu0 0.0
  %3049 = vmatpush2.msra.mxu0 0.0
  %3050 = vmatprep.subr.mxu0 0.0
  %3051 = vmatpush2.msra.mxu0 0.0
  %3052 = vmatprep.subr.mxu0 0.0
  %3053 = vmatpush2.msra.mxu0 0.0
  %3054 = vmatprep.subr.mxu0 0.0
  %3055 = vmatpush2.msra.mxu0 0.0
  %3056 = vmatprep.subr.mxu0 0.0
  %3057 = vmatpush2.msra.mxu0 0.0
  %3058 = vmatprep.subr.mxu0 0.0
  %3059 = vmatpush2.msra.mxu0 0.0
  %3060 = vmatprep.subr.mxu0 0.0
  %3061 = vmatpush2.msra.mxu0 0.0
  %3062 = vmatprep.subr.mxu0 0.0
  %3063 = vmatpush2.msra.mxu0 0.0
  %3064 = vmatprep.subr.mxu0 0.0
  %3065 = vmatpush2.msra.mxu0 0.0
  %3066 = vmatprep.subr.mxu0 0.0
  %3067 = vmatpush2.msra.mxu0 0.0
  %3068 = vmatprep.subr.mxu0 0.0
  %3069 = vmatpush2.msra.mxu0 0.0
  %3070 = vmatprep.mubr.f32.mxu0 0.0
  %3071 = vmatmul.mubr.f32.gmra.mxu0 %v2089
  %v3072 = vpop.f32.mrf.mxu0
  %v3073 = vadd.f32 0.0, %v3072
  %v3074 = vpop.f32.mrf.mxu0
  %v3075 = vadd.f32 0.0, %v3074
  %3076 = vdwg.mxu0
  %3077 = vmatprep.subr.mxu0 0.0
  %3078 = vmatpush1.msra.mxu0 0.0
  %3079 = vmatprep.subr.mxu0 0.0
  %3080 = vmatpush1.msra.mxu0 0.0
  %3081 = vmatprep.subr.mxu0 0.0
  %3082 = vmatpush1.msra.mxu0 0.0
  %3083 = vmatprep.subr.mxu0 0.0
  %3084 = vmatpush1.msra.mxu0 0.0
  %3085 = vmatprep.subr.mxu0 0.0
  %3086 = vmatpush1.msra.mxu0 0.0
  %3087 = vmatprep.subr.mxu0 0.0
  %3088 = vmatpush1.msra.mxu0 0.0
  %3089 = vmatprep.subr.mxu0 0.0
  %3090 = vmatpush1.msra.mxu0 0.0
  %3091 = vmatprep.subr.mxu0 0.0
  %3092 = vmatpush1.msra.mxu0 0.0
  %3093 = vmatprep.subr.mxu0 0.0
  %3094 = vmatpush1.msra.mxu0 0.0
  %3095 = vmatprep.subr.mxu0 0.0
  %3096 = vmatpush1.msra.mxu0 0.0
  %3097 = vmatprep.subr.mxu0 0.0
  %3098 = vmatpush1.msra.mxu0 0.0
  %3099 = vmatprep.subr.mxu0 0.0
  %3100 = vmatpush1.msra.mxu0 0.0
  %3101 = vmatprep.subr.mxu0 0.0
  %3102 = vmatpush1.msra.mxu0 0.0
  %3103 = vmatprep.subr.mxu0 0.0
  %3104 = vmatpush1.msra.mxu0 0.0
  %3105 = vmatprep.subr.mxu0 0.0
  %3106 = vmatpush1.msra.mxu0 0.0
  %3107 = vmatprep.subr.mxu0 %v3005
  %3108 = vmatpush1.msra.mxu0 %v3004
  %3109 = vmatprep.subr.mxu0 0.0
  %3110 = vmatpush2.msra.mxu0 0.0
  %3111 = vmatprep.subr.mxu0 0.0
  %3112 = vmatpush2.msra.mxu0 0.0
  %3113 = vmatprep.subr.mxu0 0.0
  %3114 = vmatpush2.msra.mxu0 0.0
  %3115 = vmatprep.subr.mxu0 0.0
  %3116 = vmatpush2.msra.mxu0 0.0
  %3117 = vmatprep.subr.mxu0 0.0
  %3118 = vmatpush2.msra.mxu0 0.0
  %3119 = vmatprep.subr.mxu0 0.0
  %3120 = vmatpush2.msra.mxu0 0.0
  %3121 = vmatprep.subr.mxu0 0.0
  %3122 = vmatpush2.msra.mxu0 0.0
  %3123 = vmatprep.subr.mxu0 0.0
  %3124 = vmatpush2.msra.mxu0 0.0
  %3125 = vmatprep.subr.mxu0 0.0
  %3126 = vmatpush2.msra.mxu0 0.0
  %3127 = vmatprep.subr.mxu0 0.0
  %3128 = vmatpush2.msra.mxu0 0.0
  %3129 = vmatprep.subr.mxu0 0.0
  %3130 = vmatpush2.msra.mxu0 0.0
  %3131 = vmatprep.subr.mxu0 0.0
  %3132 = vmatpush2.msra.mxu0 0.0
  %3133 = vmatprep.subr.mxu0 0.0
  %3134 = vmatpush2.msra.mxu0 0.0
  %3135 = vmatprep.subr.mxu0 0.0
  %3136 = vmatpush2.msra.mxu0 0.0
  %3137 = vmatprep.subr.mxu0 0.0
  %3138 = vmatpush2.msra.mxu0 0.0
  %3139 = vmatprep.subr.mxu0 0.0
  %3140 = vmatpush2.msra.mxu0 0.0
  %3141 = vmatprep.mubr.f32.mxu0 0.0
  %3142 = vmatmul.mubr.f32.gmra.mxu0 %v2163
  %v3143 = vpop.f32.mrf.mxu0
  %v3144 = vadd.f32 0.0, %v3143
  %v3145 = vpop.f32.mrf.mxu0
  %v3146 = vadd.f32 0.0, %v3145
  %3147 = vdwg.mxu0
  %v3148 = vpack.c.bf16 %v3073, %v3073
  %v3149 = vpack.c.bf16 %v3075, %v3075
  %v3150 = vpack.c.bf16 %v3144, %v3144
  %v3151 = vpack.c.bf16 %v3146, %v3146
  %3152 = vmatprep.subr.bf16.mxu0 %v2511
  %3153 = vmatpush1.bf16.msra.mxu0 %v2510
  %3154 = vmatprep.subr.bf16.mxu0 %v2509
  %3155 = vmatpush1.bf16.msra.mxu0 %v2508
  %3156 = vmatprep.subr.bf16.mxu0 %v2507
  %3157 = vmatpush1.bf16.msra.mxu0 %v2506
  %3158 = vmatprep.subr.bf16.mxu0 %v2505
  %3159 = vmatpush1.bf16.msra.mxu0 %v2504
  %3160 = vmatprep.subr.bf16.mxu0 %v2503
  %3161 = vmatpush1.bf16.msra.mxu0 %v2502
  %3162 = vmatprep.subr.bf16.mxu0 %v2501
  %3163 = vmatpush1.bf16.msra.mxu0 %v2500
  %3164 = vmatprep.subr.bf16.mxu0 %v2499
  %3165 = vmatpush1.bf16.msra.mxu0 %v2498
  %3166 = vmatprep.subr.bf16.mxu0 %v2497
  %3167 = vmatpush1.bf16.msra.mxu0 %v2496
  %3168 = vmatprep.subr.bf16.mxu0 %v2527
  %3169 = vmatpush2.bf16.msra.mxu0 %v2526
  %3170 = vmatprep.subr.bf16.mxu0 %v2525
  %3171 = vmatpush2.bf16.msra.mxu0 %v2524
  %3172 = vmatprep.subr.bf16.mxu0 %v2523
  %3173 = vmatpush2.bf16.msra.mxu0 %v2522
  %3174 = vmatprep.subr.bf16.mxu0 %v2521
  %3175 = vmatpush2.bf16.msra.mxu0 %v2520
  %3176 = vmatprep.subr.bf16.mxu0 %v2519
  %3177 = vmatpush2.bf16.msra.mxu0 %v2518
  %3178 = vmatprep.subr.bf16.mxu0 %v2517
  %3179 = vmatpush2.bf16.msra.mxu0 %v2516
  %3180 = vmatprep.subr.bf16.mxu0 %v2515
  %3181 = vmatpush2.bf16.msra.mxu0 %v2514
  %3182 = vmatprep.subr.bf16.mxu0 %v2513
  %3183 = vmatpush2.bf16.msra.mxu0 %v2512
  %3184 = vmatprep.mubr.bf16.mxu0 %v3149
  %3185 = vmatmul.mubr.bf16.gmra.mxu0 %v3148
  %v3186 = vpop.f32.mrf.mxu0
  %v3187 = vadd.f32 0.0, %v3186
  %v3188 = vpop.f32.mrf.mxu0
  %v3189 = vadd.f32 0.0, %v3188
  %v3190 = vpop.f32.mrf.mxu0
  %v3191 = vpop.f32.mrf.mxu0
  %3192 = vdwg.mxu0
  %3193 = vmatprep.subr.bf16.mxu0 %v2543
  %3194 = vmatpush1.bf16.msra.mxu0 %v2542
  %3195 = vmatprep.subr.bf16.mxu0 %v2541
  %3196 = vmatpush1.bf16.msra.mxu0 %v2540
  %3197 = vmatprep.subr.bf16.mxu0 %v2539
  %3198 = vmatpush1.bf16.msra.mxu0 %v2538
  %3199 = vmatprep.subr.bf16.mxu0 %v2537
  %3200 = vmatpush1.bf16.msra.mxu0 %v2536
  %3201 = vmatprep.subr.bf16.mxu0 %v2535
  %3202 = vmatpush1.bf16.msra.mxu0 %v2534
  %3203 = vmatprep.subr.bf16.mxu0 %v2533
  %3204 = vmatpush1.bf16.msra.mxu0 %v2532
  %3205 = vmatprep.subr.bf16.mxu0 %v2531
  %3206 = vmatpush1.bf16.msra.mxu0 %v2530
  %3207 = vmatprep.subr.bf16.mxu0 %v2529
  %3208 = vmatpush1.bf16.msra.mxu0 %v2528
  %3209 = vmatprep.subr.bf16.mxu0 %v2559
  %3210 = vmatpush2.bf16.msra.mxu0 %v2558
  %3211 = vmatprep.subr.bf16.mxu0 %v2557
  %3212 = vmatpush2.bf16.msra.mxu0 %v2556
  %3213 = vmatprep.subr.bf16.mxu0 %v2555
  %3214 = vmatpush2.bf16.msra.mxu0 %v2554
  %3215 = vmatprep.subr.bf16.mxu0 %v2553
  %3216 = vmatpush2.bf16.msra.mxu0 %v2552
  %3217 = vmatprep.subr.bf16.mxu0 %v2551
  %3218 = vmatpush2.bf16.msra.mxu0 %v2550
  %3219 = vmatprep.subr.bf16.mxu0 %v2549
  %3220 = vmatpush2.bf16.msra.mxu0 %v2548
  %3221 = vmatprep.subr.bf16.mxu0 %v2547
  %3222 = vmatpush2.bf16.msra.mxu0 %v2546
  %3223 = vmatprep.subr.bf16.mxu0 %v2545
  %3224 = vmatpush2.bf16.msra.mxu0 %v2544
  %3225 = vmatprep.mubr.bf16.mxu0 %v3151
  %3226 = vmatmul.mubr.bf16.gmra.mxu0 %v3150
  %v3227 = vpop.f32.mrf.mxu0
  %v3228 = vadd.f32 %v3187, %v3227
  %v3229 = vpop.f32.mrf.mxu0
  %v3230 = vadd.f32 %v3189, %v3229
  %v3231 = vpop.f32.mrf.mxu0
  %v3232 = vpop.f32.mrf.mxu0
  %3233 = vdwg.mxu0
  %v3234 = vadd.f32 %v2050, %v3228
  %v3235 = vadd.f32 %v2051, %v3230
  %v3236 = vrot.slane %v3234, 4
  %v3237 = vmax.f32 %v3234, %v3236
  %v3238 = vrot.slane %v3237, 2
  %v3239 = vmax.f32 %v3237, %v3238
  %v3240 = vrot.slane %v3239, 1
  %v3241 = vmax.f32 %v3239, %v3240
  %v3242 = vrot.slane %v3235, 4
  %v3243 = vmax.f32 %v3235, %v3242
  %v3244 = vrot.slane %v3243, 2
  %v3245 = vmax.f32 %v3243, %v3244
  %v3246 = vrot.slane %v3245, 1
  %v3247 = vmax.f32 %v3245, %v3246
  %v3248 = vsub.f32 %v3234, %v3241
  %v3249 = vsub.f32 %v3235, %v3247
  %v3250 = vmul.f32 %v3248, 1.442695
  %v3251 = vpow.pop %v3250
  %v3252 = vmul.f32 %v3249, 1.442695
  %v3253 = vpow.pop %v3252
  %v3254 = vrot.slane %v3251, 4
  %v3255 = vadd.f32 %v3251, %v3254
  %v3256 = vrot.slane %v3255, 2
  %v3257 = vadd.f32 %v3255, %v3256
  %v3258 = vrot.slane %v3257, 1
  %v3259 = vadd.f32 %v3257, %v3258
  %v3260 = vrot.slane %v3253, 4
  %v3261 = vadd.f32 %v3253, %v3260
  %v3262 = vrot.slane %v3261, 2
  %v3263 = vadd.f32 %v3261, %v3262
  %v3264 = vrot.slane %v3263, 1
  %v3265 = vadd.f32 %v3263, %v3264
  %v3266 = vrcp.pop %v3259
  %v3267 = vrcp.pop %v3265
  %v3268 = vmul.f32 %v3251, %v3266
  %v3269 = vmul.f32 %v3253, %v3267
  %3270 = vmatprep.subr.mxu0 0.0
  %3271 = vmatpush1.msra.mxu0 0.0
  %3272 = vmatprep.subr.mxu0 0.0
  %3273 = vmatpush1.msra.mxu0 0.0
  %3274 = vmatprep.subr.mxu0 0.0
  %3275 = vmatpush1.msra.mxu0 0.0
  %3276 = vmatprep.subr.mxu0 0.0
  %3277 = vmatpush1.msra.mxu0 0.0
  %3278 = vmatprep.subr.mxu0 0.0
  %3279 = vmatpush1.msra.mxu0 0.0
  %3280 = vmatprep.subr.mxu0 0.0
  %3281 = vmatpush1.msra.mxu0 0.0
  %3282 = vmatprep.subr.mxu0 0.0
  %3283 = vmatpush1.msra.mxu0 0.0
  %3284 = vmatprep.subr.mxu0 0.0
  %3285 = vmatpush1.msra.mxu0 0.0
  %3286 = vmatprep.subr.mxu0 0.0
  %3287 = vmatpush1.msra.mxu0 0.0
  %3288 = vmatprep.subr.mxu0 0.0
  %3289 = vmatpush1.msra.mxu0 0.0
  %3290 = vmatprep.subr.mxu0 0.0
  %3291 = vmatpush1.msra.mxu0 0.0
  %3292 = vmatprep.subr.mxu0 0.0
  %3293 = vmatpush1.msra.mxu0 0.0
  %3294 = vmatprep.subr.mxu0 0.0
  %3295 = vmatpush1.msra.mxu0 0.0
  %3296 = vmatprep.subr.mxu0 0.0
  %3297 = vmatpush1.msra.mxu0 0.0
  %3298 = vmatprep.subr.mxu0 0.0
  %3299 = vmatpush1.msra.mxu0 0.0
  %3300 = vmatprep.subr.mxu0 %v3269
  %3301 = vmatpush1.msra.mxu0 %v3268
  %3302 = vmatprep.subr.mxu0 0.0
  %3303 = vmatpush2.msra.mxu0 0.0
  %3304 = vmatprep.subr.mxu0 0.0
  %3305 = vmatpush2.msra.mxu0 0.0
  %3306 = vmatprep.subr.mxu0 0.0
  %3307 = vmatpush2.msra.mxu0 0.0
  %3308 = vmatprep.subr.mxu0 0.0
  %3309 = vmatpush2.msra.mxu0 0.0
  %3310 = vmatprep.subr.mxu0 0.0
  %3311 = vmatpush2.msra.mxu0 0.0
  %3312 = vmatprep.subr.mxu0 0.0
  %3313 = vmatpush2.msra.mxu0 0.0
  %3314 = vmatprep.subr.mxu0 0.0
  %3315 = vmatpush2.msra.mxu0 0.0
  %3316 = vmatprep.subr.mxu0 0.0
  %3317 = vmatpush2.msra.mxu0 0.0
  %3318 = vmatprep.subr.mxu0 0.0
  %3319 = vmatpush2.msra.mxu0 0.0
  %3320 = vmatprep.subr.mxu0 0.0
  %3321 = vmatpush2.msra.mxu0 0.0
  %3322 = vmatprep.subr.mxu0 0.0
  %3323 = vmatpush2.msra.mxu0 0.0
  %3324 = vmatprep.subr.mxu0 0.0
  %3325 = vmatpush2.msra.mxu0 0.0
  %3326 = vmatprep.subr.mxu0 0.0
  %3327 = vmatpush2.msra.mxu0 0.0
  %3328 = vmatprep.subr.mxu0 0.0
  %3329 = vmatpush2.msra.mxu0 0.0
  %3330 = vmatprep.subr.mxu0 0.0
  %3331 = vmatpush2.msra.mxu0 0.0
  %3332 = vmatprep.subr.mxu0 0.0
  %3333 = vmatpush2.msra.mxu0 0.0
  %3334 = vmatprep.mubr.f32.mxu0 0.0
  %3335 = vmatmul.mubr.f32.gmra.mxu0 %v2089
  %v3336 = vpop.f32.mrf.mxu0
  %v3337 = vadd.f32 0.0, %v3336
  %v3338 = vpop.f32.mrf.mxu0
  %v3339 = vadd.f32 0.0, %v3338
  %3340 = vdwg.mxu0
  %3341 = vmatprep.subr.mxu0 0.0
  %3342 = vmatpush1.msra.mxu0 0.0
  %3343 = vmatprep.subr.mxu0 0.0
  %3344 = vmatpush1.msra.mxu0 0.0
  %3345 = vmatprep.subr.mxu0 0.0
  %3346 = vmatpush1.msra.mxu0 0.0
  %3347 = vmatprep.subr.mxu0 0.0
  %3348 = vmatpush1.msra.mxu0 0.0
  %3349 = vmatprep.subr.mxu0 0.0
  %3350 = vmatpush1.msra.mxu0 0.0
  %3351 = vmatprep.subr.mxu0 0.0
  %3352 = vmatpush1.msra.mxu0 0.0
  %3353 = vmatprep.subr.mxu0 0.0
  %3354 = vmatpush1.msra.mxu0 0.0
  %3355 = vmatprep.subr.mxu0 0.0
  %3356 = vmatpush1.msra.mxu0 0.0
  %3357 = vmatprep.subr.mxu0 0.0
  %3358 = vmatpush1.msra.mxu0 0.0
  %3359 = vmatprep.subr.mxu0 0.0
  %3360 = vmatpush1.msra.mxu0 0.0
  %3361 = vmatprep.subr.mxu0 0.0
  %3362 = vmatpush1.msra.mxu0 0.0
  %3363 = vmatprep.subr.mxu0 0.0
  %3364 = vmatpush1.msra.mxu0 0.0
  %3365 = vmatprep.subr.mxu0 0.0
  %3366 = vmatpush1.msra.mxu0 0.0
  %3367 = vmatprep.subr.mxu0 0.0
  %3368 = vmatpush1.msra.mxu0 0.0
  %3369 = vmatprep.subr.mxu0 0.0
  %3370 = vmatpush1.msra.mxu0 0.0
  %3371 = vmatprep.subr.mxu0 %v3269
  %3372 = vmatpush1.msra.mxu0 %v3268
  %3373 = vmatprep.subr.mxu0 0.0
  %3374 = vmatpush2.msra.mxu0 0.0
  %3375 = vmatprep.subr.mxu0 0.0
  %3376 = vmatpush2.msra.mxu0 0.0
  %3377 = vmatprep.subr.mxu0 0.0
  %3378 = vmatpush2.msra.mxu0 0.0
  %3379 = vmatprep.subr.mxu0 0.0
  %3380 = vmatpush2.msra.mxu0 0.0
  %3381 = vmatprep.subr.mxu0 0.0
  %3382 = vmatpush2.msra.mxu0 0.0
  %3383 = vmatprep.subr.mxu0 0.0
  %3384 = vmatpush2.msra.mxu0 0.0
  %3385 = vmatprep.subr.mxu0 0.0
  %3386 = vmatpush2.msra.mxu0 0.0
  %3387 = vmatprep.subr.mxu0 0.0
  %3388 = vmatpush2.msra.mxu0 0.0
  %3389 = vmatprep.subr.mxu0 0.0
  %3390 = vmatpush2.msra.mxu0 0.0
  %3391 = vmatprep.subr.mxu0 0.0
  %3392 = vmatpush2.msra.mxu0 0.0
  %3393 = vmatprep.subr.mxu0 0.0
  %3394 = vmatpush2.msra.mxu0 0.0
  %3395 = vmatprep.subr.mxu0 0.0
  %3396 = vmatpush2.msra.mxu0 0.0
  %3397 = vmatprep.subr.mxu0 0.0
  %3398 = vmatpush2.msra.mxu0 0.0
  %3399 = vmatprep.subr.mxu0 0.0
  %3400 = vmatpush2.msra.mxu0 0.0
  %3401 = vmatprep.subr.mxu0 0.0
  %3402 = vmatpush2.msra.mxu0 0.0
  %3403 = vmatprep.subr.mxu0 0.0
  %3404 = vmatpush2.msra.mxu0 0.0
  %3405 = vmatprep.mubr.f32.mxu0 0.0
  %3406 = vmatmul.mubr.f32.gmra.mxu0 %v2163
  %v3407 = vpop.f32.mrf.mxu0
  %v3408 = vadd.f32 0.0, %v3407
  %v3409 = vpop.f32.mrf.mxu0
  %v3410 = vadd.f32 0.0, %v3409
  %3411 = vdwg.mxu0
  %v3412 = vpack.c.bf16 %v3337, %v3337
  %v3413 = vpack.c.bf16 %v3339, %v3339
  %v3414 = vpack.c.bf16 %v3408, %v3408
  %v3415 = vpack.c.bf16 %v3410, %v3410
  %3416 = vmatprep.subr.bf16.mxu0 %v2511
  %3417 = vmatpush1.bf16.msra.mxu0 %v2510
  %3418 = vmatprep.subr.bf16.mxu0 %v2509
  %3419 = vmatpush1.bf16.msra.mxu0 %v2508
  %3420 = vmatprep.subr.bf16.mxu0 %v2507
  %3421 = vmatpush1.bf16.msra.mxu0 %v2506
  %3422 = vmatprep.subr.bf16.mxu0 %v2505
  %3423 = vmatpush1.bf16.msra.mxu0 %v2504
  %3424 = vmatprep.subr.bf16.mxu0 %v2503
  %3425 = vmatpush1.bf16.msra.mxu0 %v2502
  %3426 = vmatprep.subr.bf16.mxu0 %v2501
  %3427 = vmatpush1.bf16.msra.mxu0 %v2500
  %3428 = vmatprep.subr.bf16.mxu0 %v2499
  %3429 = vmatpush1.bf16.msra.mxu0 %v2498
  %3430 = vmatprep.subr.bf16.mxu0 %v2497
  %3431 = vmatpush1.bf16.msra.mxu0 %v2496
  %3432 = vmatprep.subr.bf16.mxu0 %v2527
  %3433 = vmatpush2.bf16.msra.mxu0 %v2526
  %3434 = vmatprep.subr.bf16.mxu0 %v2525
  %3435 = vmatpush2.bf16.msra.mxu0 %v2524
  %3436 = vmatprep.subr.bf16.mxu0 %v2523
  %3437 = vmatpush2.bf16.msra.mxu0 %v2522
  %3438 = vmatprep.subr.bf16.mxu0 %v2521
  %3439 = vmatpush2.bf16.msra.mxu0 %v2520
  %3440 = vmatprep.subr.bf16.mxu0 %v2519
  %3441 = vmatpush2.bf16.msra.mxu0 %v2518
  %3442 = vmatprep.subr.bf16.mxu0 %v2517
  %3443 = vmatpush2.bf16.msra.mxu0 %v2516
  %3444 = vmatprep.subr.bf16.mxu0 %v2515
  %3445 = vmatpush2.bf16.msra.mxu0 %v2514
  %3446 = vmatprep.subr.bf16.mxu0 %v2513
  %3447 = vmatpush2.bf16.msra.mxu0 %v2512
  %3448 = vmatprep.mubr.bf16.mxu0 %v3413
  %3449 = vmatmul.mubr.bf16.gmra.mxu0 %v3412
  %v3450 = vpop.f32.mrf.mxu0
  %v3451 = vadd.f32 0.0, %v3450
  %v3452 = vpop.f32.mrf.mxu0
  %v3453 = vadd.f32 0.0, %v3452
  %v3454 = vpop.f32.mrf.mxu0
  %v3455 = vpop.f32.mrf.mxu0
  %3456 = vdwg.mxu0
  %3457 = vmatprep.subr.bf16.mxu0 %v2543
  %3458 = vmatpush1.bf16.msra.mxu0 %v2542
  %3459 = vmatprep.subr.bf16.mxu0 %v2541
  %3460 = vmatpush1.bf16.msra.mxu0 %v2540
  %3461 = vmatprep.subr.bf16.mxu0 %v2539
  %3462 = vmatpush1.bf16.msra.mxu0 %v2538
  %3463 = vmatprep.subr.bf16.mxu0 %v2537
  %3464 = vmatpush1.bf16.msra.mxu0 %v2536
  %3465 = vmatprep.subr.bf16.mxu0 %v2535
  %3466 = vmatpush1.bf16.msra.mxu0 %v2534
  %3467 = vmatprep.subr.bf16.mxu0 %v2533
  %3468 = vmatpush1.bf16.msra.mxu0 %v2532
  %3469 = vmatprep.subr.bf16.mxu0 %v2531
  %3470 = vmatpush1.bf16.msra.mxu0 %v2530
  %3471 = vmatprep.subr.bf16.mxu0 %v2529
  %3472 = vmatpush1.bf16.msra.mxu0 %v2528
  %3473 = vmatprep.subr.bf16.mxu0 %v2559
  %3474 = vmatpush2.bf16.msra.mxu0 %v2558
  %3475 = vmatprep.subr.bf16.mxu0 %v2557
  %3476 = vmatpush2.bf16.msra.mxu0 %v2556
  %3477 = vmatprep.subr.bf16.mxu0 %v2555
  %3478 = vmatpush2.bf16.msra.mxu0 %v2554
  %3479 = vmatprep.subr.bf16.mxu0 %v2553
  %3480 = vmatpush2.bf16.msra.mxu0 %v2552
  %3481 = vmatprep.subr.bf16.mxu0 %v2551
  %3482 = vmatpush2.bf16.msra.mxu0 %v2550
  %3483 = vmatprep.subr.bf16.mxu0 %v2549
  %3484 = vmatpush2.bf16.msra.mxu0 %v2548
  %3485 = vmatprep.subr.bf16.mxu0 %v2547
  %3486 = vmatpush2.bf16.msra.mxu0 %v2546
  %3487 = vmatprep.subr.bf16.mxu0 %v2545
  %3488 = vmatpush2.bf16.msra.mxu0 %v2544
  %3489 = vmatprep.mubr.bf16.mxu0 %v3415
  %3490 = vmatmul.mubr.bf16.gmra.mxu0 %v3414
  %v3491 = vpop.f32.mrf.mxu0
  %v3492 = vadd.f32 %v3451, %v3491
  %v3493 = vpop.f32.mrf.mxu0
  %v3494 = vadd.f32 %v3453, %v3493
  %v3495 = vpop.f32.mrf.mxu0
  %v3496 = vpop.f32.mrf.mxu0
  %3497 = vdwg.mxu0
  %v3498 = vadd.f32 %v2050, %v3492
  %v3499 = vadd.f32 %v2051, %v3494
  %v3500 = vrot.slane %v3498, 4
  %v3501 = vmax.f32 %v3498, %v3500
  %v3502 = vrot.slane %v3501, 2
  %v3503 = vmax.f32 %v3501, %v3502
  %v3504 = vrot.slane %v3503, 1
  %v3505 = vmax.f32 %v3503, %v3504
  %v3506 = vrot.slane %v3499, 4
  %v3507 = vmax.f32 %v3499, %v3506
  %v3508 = vrot.slane %v3507, 2
  %v3509 = vmax.f32 %v3507, %v3508
  %v3510 = vrot.slane %v3509, 1
  %v3511 = vmax.f32 %v3509, %v3510
  %v3512 = vsub.f32 %v3498, %v3505
  %v3513 = vsub.f32 %v3499, %v3511
  %v3514 = vmul.f32 %v3512, 1.442695
  %v3515 = vpow.pop %v3514
  %v3516 = vmul.f32 %v3513, 1.442695
  %v3517 = vpow.pop %v3516
  %v3518 = vrot.slane %v3515, 4
  %v3519 = vadd.f32 %v3515, %v3518
  %v3520 = vrot.slane %v3519, 2
  %v3521 = vadd.f32 %v3519, %v3520
  %v3522 = vrot.slane %v3521, 1
  %v3523 = vadd.f32 %v3521, %v3522
  %v3524 = vrot.slane %v3517, 4
  %v3525 = vadd.f32 %v3517, %v3524
  %v3526 = vrot.slane %v3525, 2
  %v3527 = vadd.f32 %v3525, %v3526
  %v3528 = vrot.slane %v3527, 1
  %v3529 = vadd.f32 %v3527, %v3528
  %v3530 = vrcp.pop %v3523
  %v3531 = vrcp.pop %v3529
  %v3532 = vmul.f32 %v3515, %v3530
  %v3533 = vmul.f32 %v3517, %v3531
  %3534 = vmatprep.subr.mxu0 0.0
  %3535 = vmatpush1.msra.mxu0 0.0
  %3536 = vmatprep.subr.mxu0 0.0
  %3537 = vmatpush1.msra.mxu0 0.0
  %3538 = vmatprep.subr.mxu0 0.0
  %3539 = vmatpush1.msra.mxu0 0.0
  %3540 = vmatprep.subr.mxu0 0.0
  %3541 = vmatpush1.msra.mxu0 0.0
  %3542 = vmatprep.subr.mxu0 0.0
  %3543 = vmatpush1.msra.mxu0 0.0
  %3544 = vmatprep.subr.mxu0 0.0
  %3545 = vmatpush1.msra.mxu0 0.0
  %3546 = vmatprep.subr.mxu0 0.0
  %3547 = vmatpush1.msra.mxu0 0.0
  %3548 = vmatprep.subr.mxu0 0.0
  %3549 = vmatpush1.msra.mxu0 0.0
  %3550 = vmatprep.subr.mxu0 0.0
  %3551 = vmatpush1.msra.mxu0 0.0
  %3552 = vmatprep.subr.mxu0 0.0
  %3553 = vmatpush1.msra.mxu0 0.0
  %3554 = vmatprep.subr.mxu0 0.0
  %3555 = vmatpush1.msra.mxu0 0.0
  %3556 = vmatprep.subr.mxu0 0.0
  %3557 = vmatpush1.msra.mxu0 0.0
  %3558 = vmatprep.subr.mxu0 0.0
  %3559 = vmatpush1.msra.mxu0 0.0
  %3560 = vmatprep.subr.mxu0 0.0
  %3561 = vmatpush1.msra.mxu0 0.0
  %3562 = vmatprep.subr.mxu0 0.0
  %3563 = vmatpush1.msra.mxu0 0.0
  %3564 = vmatprep.subr.mxu0 %v3533
  %3565 = vmatpush1.msra.mxu0 %v3532
  %3566 = vmatprep.subr.mxu0 0.0
  %3567 = vmatpush2.msra.mxu0 0.0
  %3568 = vmatprep.subr.mxu0 0.0
  %3569 = vmatpush2.msra.mxu0 0.0
  %3570 = vmatprep.subr.mxu0 0.0
  %3571 = vmatpush2.msra.mxu0 0.0
  %3572 = vmatprep.subr.mxu0 0.0
  %3573 = vmatpush2.msra.mxu0 0.0
  %3574 = vmatprep.subr.mxu0 0.0
  %3575 = vmatpush2.msra.mxu0 0.0
  %3576 = vmatprep.subr.mxu0 0.0
  %3577 = vmatpush2.msra.mxu0 0.0
  %3578 = vmatprep.subr.mxu0 0.0
  %3579 = vmatpush2.msra.mxu0 0.0
  %3580 = vmatprep.subr.mxu0 0.0
  %3581 = vmatpush2.msra.mxu0 0.0
  %3582 = vmatprep.subr.mxu0 0.0
  %3583 = vmatpush2.msra.mxu0 0.0
  %3584 = vmatprep.subr.mxu0 0.0
  %3585 = vmatpush2.msra.mxu0 0.0
  %3586 = vmatprep.subr.mxu0 0.0
  %3587 = vmatpush2.msra.mxu0 0.0
  %3588 = vmatprep.subr.mxu0 0.0
  %3589 = vmatpush2.msra.mxu0 0.0
  %3590 = vmatprep.subr.mxu0 0.0
  %3591 = vmatpush2.msra.mxu0 0.0
  %3592 = vmatprep.subr.mxu0 0.0
  %3593 = vmatpush2.msra.mxu0 0.0
  %3594 = vmatprep.subr.mxu0 0.0
  %3595 = vmatpush2.msra.mxu0 0.0
  %3596 = vmatprep.subr.mxu0 0.0
  %3597 = vmatpush2.msra.mxu0 0.0
  %3598 = vmatprep.mubr.f32.mxu0 0.0
  %3599 = vmatmul.mubr.f32.gmra.mxu0 %v2089
  %v3600 = vpop.f32.mrf.mxu0
  %v3601 = vadd.f32 0.0, %v3600
  %v3602 = vpop.f32.mrf.mxu0
  %v3603 = vadd.f32 0.0, %v3602
  %3604 = vdwg.mxu0
  %3605 = vmatprep.subr.mxu0 0.0
  %3606 = vmatpush1.msra.mxu0 0.0
  %3607 = vmatprep.subr.mxu0 0.0
  %3608 = vmatpush1.msra.mxu0 0.0
  %3609 = vmatprep.subr.mxu0 0.0
  %3610 = vmatpush1.msra.mxu0 0.0
  %3611 = vmatprep.subr.mxu0 0.0
  %3612 = vmatpush1.msra.mxu0 0.0
  %3613 = vmatprep.subr.mxu0 0.0
  %3614 = vmatpush1.msra.mxu0 0.0
  %3615 = vmatprep.subr.mxu0 0.0
  %3616 = vmatpush1.msra.mxu0 0.0
  %3617 = vmatprep.subr.mxu0 0.0
  %3618 = vmatpush1.msra.mxu0 0.0
  %3619 = vmatprep.subr.mxu0 0.0
  %3620 = vmatpush1.msra.mxu0 0.0
  %3621 = vmatprep.subr.mxu0 0.0
  %3622 = vmatpush1.msra.mxu0 0.0
  %3623 = vmatprep.subr.mxu0 0.0
  %3624 = vmatpush1.msra.mxu0 0.0
  %3625 = vmatprep.subr.mxu0 0.0
  %3626 = vmatpush1.msra.mxu0 0.0
  %3627 = vmatprep.subr.mxu0 0.0
  %3628 = vmatpush1.msra.mxu0 0.0
  %3629 = vmatprep.subr.mxu0 0.0
  %3630 = vmatpush1.msra.mxu0 0.0
  %3631 = vmatprep.subr.mxu0 0.0
  %3632 = vmatpush1.msra.mxu0 0.0
  %3633 = vmatprep.subr.mxu0 0.0
  %3634 = vmatpush1.msra.mxu0 0.0
  %3635 = vmatprep.subr.mxu0 %v3533
  %3636 = vmatpush1.msra.mxu0 %v3532
  %3637 = vmatprep.subr.mxu0 0.0
  %3638 = vmatpush2.msra.mxu0 0.0
  %3639 = vmatprep.subr.mxu0 0.0
  %3640 = vmatpush2.msra.mxu0 0.0
  %3641 = vmatprep.subr.mxu0 0.0
  %3642 = vmatpush2.msra.mxu0 0.0
  %3643 = vmatprep.subr.mxu0 0.0
  %3644 = vmatpush2.msra.mxu0 0.0
  %3645 = vmatprep.subr.mxu0 0.0
  %3646 = vmatpush2.msra.mxu0 0.0
  %3647 = vmatprep.subr.mxu0 0.0
  %3648 = vmatpush2.msra.mxu0 0.0
  %3649 = vmatprep.subr.mxu0 0.0
  %3650 = vmatpush2.msra.mxu0 0.0
  %3651 = vmatprep.subr.mxu0 0.0
  %3652 = vmatpush2.msra.mxu0 0.0
  %3653 = vmatprep.subr.mxu0 0.0
  %3654 = vmatpush2.msra.mxu0 0.0
  %3655 = vmatprep.subr.mxu0 0.0
  %3656 = vmatpush2.msra.mxu0 0.0
  %3657 = vmatprep.subr.mxu0 0.0
  %3658 = vmatpush2.msra.mxu0 0.0
  %3659 = vmatprep.subr.mxu0 0.0
  %3660 = vmatpush2.msra.mxu0 0.0
  %3661 = vmatprep.subr.mxu0 0.0
  %3662 = vmatpush2.msra.mxu0 0.0
  %3663 = vmatprep.subr.mxu0 0.0
  %3664 = vmatpush2.msra.mxu0 0.0
  %3665 = vmatprep.subr.mxu0 0.0
  %3666 = vmatpush2.msra.mxu0 0.0
  %3667 = vmatprep.subr.mxu0 0.0
  %3668 = vmatpush2.msra.mxu0 0.0
  %3669 = vmatprep.mubr.f32.mxu0 0.0
  %3670 = vmatmul.mubr.f32.gmra.mxu0 %v2163
  %v3671 = vpop.f32.mrf.mxu0
  %v3672 = vadd.f32 0.0, %v3671
  %v3673 = vpop.f32.mrf.mxu0
  %v3674 = vadd.f32 0.0, %v3673
  %3675 = vdwg.mxu0
  %v3676 = vpack.c.bf16 %v3601, %v3601
  %v3677 = vpack.c.bf16 %v3603, %v3603
  %v3678 = vpack.c.bf16 %v3672, %v3672
  %v3679 = vpack.c.bf16 %v3674, %v3674
  %3680 = vmatprep.subr.bf16.mxu0 %v2511
  %3681 = vmatpush1.bf16.msra.mxu0 %v2510
  %3682 = vmatprep.subr.bf16.mxu0 %v2509
  %3683 = vmatpush1.bf16.msra.mxu0 %v2508
  %3684 = vmatprep.subr.bf16.mxu0 %v2507
  %3685 = vmatpush1.bf16.msra.mxu0 %v2506
  %3686 = vmatprep.subr.bf16.mxu0 %v2505
  %3687 = vmatpush1.bf16.msra.mxu0 %v2504
  %3688 = vmatprep.subr.bf16.mxu0 %v2503
  %3689 = vmatpush1.bf16.msra.mxu0 %v2502
  %3690 = vmatprep.subr.bf16.mxu0 %v2501
  %3691 = vmatpush1.bf16.msra.mxu0 %v2500
  %3692 = vmatprep.subr.bf16.mxu0 %v2499
  %3693 = vmatpush1.bf16.msra.mxu0 %v2498
  %3694 = vmatprep.subr.bf16.mxu0 %v2497
  %3695 = vmatpush1.bf16.msra.mxu0 %v2496
  %3696 = vmatprep.subr.bf16.mxu0 %v2527
  %3697 = vmatpush2.bf16.msra.mxu0 %v2526
  %3698 = vmatprep.subr.bf16.mxu0 %v2525
  %3699 = vmatpush2.bf16.msra.mxu0 %v2524
  %3700 = vmatprep.subr.bf16.mxu0 %v2523
  %3701 = vmatpush2.bf16.msra.mxu0 %v2522
  %3702 = vmatprep.subr.bf16.mxu0 %v2521
  %3703 = vmatpush2.bf16.msra.mxu0 %v2520
  %3704 = vmatprep.subr.bf16.mxu0 %v2519
  %3705 = vmatpush2.bf16.msra.mxu0 %v2518
  %3706 = vmatprep.subr.bf16.mxu0 %v2517
  %3707 = vmatpush2.bf16.msra.mxu0 %v2516
  %3708 = vmatprep.subr.bf16.mxu0 %v2515
  %3709 = vmatpush2.bf16.msra.mxu0 %v2514
  %3710 = vmatprep.subr.bf16.mxu0 %v2513
  %3711 = vmatpush2.bf16.msra.mxu0 %v2512
  %3712 = vmatprep.mubr.bf16.mxu0 %v3677
  %3713 = vmatmul.mubr.bf16.gmra.mxu0 %v3676
  %v3714 = vpop.f32.mrf.mxu0
  %v3715 = vadd.f32 0.0, %v3714
  %v3716 = vpop.f32.mrf.mxu0
  %v3717 = vadd.f32 0.0, %v3716
  %v3718 = vpop.f32.mrf.mxu0
  %v3719 = vpop.f32.mrf.mxu0
  %3720 = vdwg.mxu0
  %3721 = vmatprep.subr.bf16.mxu0 %v2543
  %3722 = vmatpush1.bf16.msra.mxu0 %v2542
  %3723 = vmatprep.subr.bf16.mxu0 %v2541
  %3724 = vmatpush1.bf16.msra.mxu0 %v2540
  %3725 = vmatprep.subr.bf16.mxu0 %v2539
  %3726 = vmatpush1.bf16.msra.mxu0 %v2538
  %3727 = vmatprep.subr.bf16.mxu0 %v2537
  %3728 = vmatpush1.bf16.msra.mxu0 %v2536
  %3729 = vmatprep.subr.bf16.mxu0 %v2535
  %3730 = vmatpush1.bf16.msra.mxu0 %v2534
  %3731 = vmatprep.subr.bf16.mxu0 %v2533
  %3732 = vmatpush1.bf16.msra.mxu0 %v2532
  %3733 = vmatprep.subr.bf16.mxu0 %v2531
  %3734 = vmatpush1.bf16.msra.mxu0 %v2530
  %3735 = vmatprep.subr.bf16.mxu0 %v2529
  %3736 = vmatpush1.bf16.msra.mxu0 %v2528
  %3737 = vmatprep.subr.bf16.mxu0 %v2559
  %3738 = vmatpush2.bf16.msra.mxu0 %v2558
  %3739 = vmatprep.subr.bf16.mxu0 %v2557
  %3740 = vmatpush2.bf16.msra.mxu0 %v2556
  %3741 = vmatprep.subr.bf16.mxu0 %v2555
  %3742 = vmatpush2.bf16.msra.mxu0 %v2554
  %3743 = vmatprep.subr.bf16.mxu0 %v2553
  %3744 = vmatpush2.bf16.msra.mxu0 %v2552
  %3745 = vmatprep.subr.bf16.mxu0 %v2551
  %3746 = vmatpush2.bf16.msra.mxu0 %v2550
  %3747 = vmatprep.subr.bf16.mxu0 %v2549
  %3748 = vmatpush2.bf16.msra.mxu0 %v2548
  %3749 = vmatprep.subr.bf16.mxu0 %v2547
  %3750 = vmatpush2.bf16.msra.mxu0 %v2546
  %3751 = vmatprep.subr.bf16.mxu0 %v2545
  %3752 = vmatpush2.bf16.msra.mxu0 %v2544
  %3753 = vmatprep.mubr.bf16.mxu0 %v3679
  %3754 = vmatmul.mubr.bf16.gmra.mxu0 %v3678
  %v3755 = vpop.f32.mrf.mxu0
  %v3756 = vadd.f32 %v3715, %v3755
  %v3757 = vpop.f32.mrf.mxu0
  %v3758 = vadd.f32 %v3717, %v3757
  %v3759 = vpop.f32.mrf.mxu0
  %v3760 = vpop.f32.mrf.mxu0
  %3761 = vdwg.mxu0
  %v3762 = vadd.f32 %v2050, %v3756
  %v3763 = vadd.f32 %v2051, %v3758
  %v3764 = vrot.slane %v3762, 4
  %v3765 = vmax.f32 %v3762, %v3764
  %v3766 = vrot.slane %v3765, 2
  %v3767 = vmax.f32 %v3765, %v3766
  %v3768 = vrot.slane %v3767, 1
  %v3769 = vmax.f32 %v3767, %v3768
  %v3770 = vrot.slane %v3763, 4
  %v3771 = vmax.f32 %v3763, %v3770
  %v3772 = vrot.slane %v3771, 2
  %v3773 = vmax.f32 %v3771, %v3772
  %v3774 = vrot.slane %v3773, 1
  %v3775 = vmax.f32 %v3773, %v3774
  %v3776 = vsub.f32 %v3762, %v3769
  %v3777 = vsub.f32 %v3763, %v3775
  %v3778 = vmul.f32 %v3776, 1.442695
  %v3779 = vpow.pop %v3778
  %v3780 = vmul.f32 %v3777, 1.442695
  %v3781 = vpow.pop %v3780
  %v3782 = vrot.slane %v3779, 4
  %v3783 = vadd.f32 %v3779, %v3782
  %v3784 = vrot.slane %v3783, 2
  %v3785 = vadd.f32 %v3783, %v3784
  %v3786 = vrot.slane %v3785, 1
  %v3787 = vadd.f32 %v3785, %v3786
  %v3788 = vrot.slane %v3781, 4
  %v3789 = vadd.f32 %v3781, %v3788
  %v3790 = vrot.slane %v3789, 2
  %v3791 = vadd.f32 %v3789, %v3790
  %v3792 = vrot.slane %v3791, 1
  %v3793 = vadd.f32 %v3791, %v3792
  %v3794 = vrcp.pop %v3787
  %v3795 = vmul.f32 %v3779, %v3794
  %v3796 = vrcp.pop %v3793
  %v3797 = vmul.f32 %v3781, %v3796
  %3798 = vst [vmem:[%s8] sm:$0xff] %v3795
  %3799 = vst [vmem:[%s8 + $0x8] sm:$0xff] %v3797
  // Predicated region
  $region34: #{crfrnn_forward.1} parent=0 // pred_check
    _
  $region35: #{crfrnn_forward.1} parent=0 // pred_check_branch
    %3801 = sbr.rel (0) target = $region37
  $region36: #{crfrnn_forward.1} parent=0 // pred_region
    _
  $region37: #{crfrnn_forward.1} parent=0 // pred_fallthru
    _
  // Predicated region
  $region38: #{crfrnn_forward.1} parent=0 // pred_check
    _
  $region39: #{crfrnn_forward.1} parent=0 // pred_check_branch
    %3803 = sbr.rel (0) target = $region41
  $region40: #{crfrnn_forward.1} parent=0 // pred_region
    _
  $region41: #{crfrnn_forward.1} parent=0 // pred_fallthru
    _

</llo_original>
